<compile_context>
chip_gen: v6e
topology: v6e:2x2x1
jax: 0.10.0
libtpu: 0.0.40
codegen_flags: <defaults>
</compile_context>

<pallas_src>
import jax
import jax.numpy as jnp
from jax.experimental import pallas as pl
from jax.experimental.pallas import tpu as pltpu


def _round_up(x: int, m: int) -> int:
    return (x + m - 1) // m * m


def _vmem_capacity_bytes() -> int:
    """Best-effort VMEM capacity query with safe fallbacks."""
    try:
        info = pltpu.get_tpu_info()
        cap = getattr(info, "vmem_capacity_bytes", None)
        if cap:
            return int(cap)
    except Exception:
        pass
    try:
        kind = jax.devices()[0].device_kind.lower()
    except Exception:
        kind = ""
    if "v7" in kind or "tpu7" in kind:
        return 64 * 1024 * 1024     # v7x: 64 MiB per TensorCore
    return 128 * 1024 * 1024        # v5e / v6e: 128 MiB


def _auto_tiles(B, Nv, E, itemsize, vmem_cap, block_b, block_n):
    """Pick (block_b, block_n) so double-buffered valid ~= 30% of VMEM."""
    if block_b is None:
        block_b = 16
    block_b = _round_up(max(block_b, 16), 16)          # 16 sublanes: safe for bf16 too
    block_b = min(block_b, _round_up(B, 16))

    per_buf = max(1 << 20, int(vmem_cap * 0.15))       # each of the 2 valid buffers
    if block_n is None:
        bn = per_buf // (block_b * E * itemsize)
        block_n = max(128, min(2048, (bn // 128) * 128))
    else:
        block_n = _round_up(block_n, 128)
    block_n = min(block_n, _round_up(Nv, 128))

    # If one candidate tile already spans Nv, spend leftover budget on more
    # batch rows per step (amortizes the ~0.35us per-grid-step overhead).
    if block_n >= _round_up(Nv, 128) and B > block_b:
        bb = per_buf // (block_n * E * itemsize)
        bb = max(16, (bb // 16) * 16)
        block_b = max(block_b, min(bb, 512, _round_up(B, 16)))
    return block_b, block_n


def _make_kernel(use_mxu_scoring: bool):
    def kernel(stacked_ref, valid_ref, wv_ref, wq_ref, out_ref, attend_ref):
        """Equivalent PyTorch:
             concat = cat([hist.unsqueeze(1), short.unsqueeze(1)], 1)       (B,2,E)
             attend = softmax(matmul(tanh(matmul(concat, Wv)), Wq), dim=1)  (B,2,1)
             attend = matmul(concat.transpose(1,2), attend).squeeze(-1)     (B,E)
             dot    = sum(attend.unsqueeze(1) * valid, dim=2)               (B,Nv)
        """
        j = pl.program_id(1)
        bb = stacked_ref.shape[1]
        e = stacked_ref.shape[2]

        # --- fusion attention: once per batch tile (candidate axis is inner) ---
        @pl.when(j == 0)
        def _compute_attend():
            hs = stacked_ref[...].astype(jnp.float32)            # (2, bb, E)
            hist = hs[0]
            short = hs[1]
            wv = wv_ref[...].astype(jnp.float32)                 # (E, A)
            wq_row = wq_ref[...].astype(jnp.float32)             # (1, A)  (= Wq^T)
            flat = hs.reshape(2 * bb, e)                         # sublane-merge, no concat
            h = jnp.tanh(jnp.dot(flat, wv,
                                 preferred_element_type=jnp.float32))   # (2bb, A) MXU
            # score = tanh(x @ Wv) . wq  -> VPU mul + lane reduce (no N=1 matmul)
            s = jnp.sum(h * wq_row, axis=-1, keepdims=True)      # (2bb, 1)
            # exact 2-way softmax: a_h = sigmoid(s_h - s_s), a_s = 1 - a_h
            a_h = jax.nn.sigmoid(s[:bb] - s[bb:])                # (bb, 1)
            attend_ref[...] = a_h * hist + (1.0 - a_h) * short   # (bb, E) f32

        attend = attend_ref[...]                                 # (bb, E) f32

        # --- candidate scoring: HBM-bound stream over valid ---
        if use_mxu_scoring:
            # Reviewer-suggested v7x variant: batched (Nt,E)@(E,1) mat-vec on MXU.
            p = jnp.einsum('bne,bfe->bnf', valid_ref[...],
                           attend[:, None, :].astype(valid_ref.dtype),
                           preferred_element_type=jnp.float32)   # (bb, Nt, 1)
            out_ref[...] = p[:, :, 0]
        else:
            # VPU multiply + lane reduce; valid stays in its stored dtype and
            # promotes to f32 per-vreg (no whole-tile f32 copy).
            out_ref[...] = jnp.sum(valid_ref[...] * attend[:, None, :], axis=-1)

    return kernel


def nrms_new_forward(history_attention, short_attention, valid_news_embeddings,
                     trans_weight_v, trans_weight_q, *,
                     block_b=None, block_n=None, vmem_limit_bytes=None,
                     use_mxu_scoring=False):
    """Pallas-backed forward of the NRMS_new fusion head.

    history_attention    : (B, E)      float32 / bfloat16
    short_attention      : (B, E)      float32 / bfloat16
    valid_news_embeddings: (B, Nv, E)  float32 / bfloat16 (bf16 recommended: kernel
                                       is HBM-bound on this stream)
    trans_weight_v       : (E, A)
    trans_weight_q       : (A, 1)
    returns              : (B, Nv)     float32
    """
    B, E = history_attention.shape
    Bv, Nv, Ev = valid_news_embeddings.shape
    assert Bv == B and Ev == E
    A = trans_weight_v.shape[1]

    vmem_cap = _vmem_capacity_bytes()
    itemsize = jnp.dtype(valid_news_embeddings.dtype).itemsize
    block_b, block_n = _auto_tiles(B, Nv, E, itemsize, vmem_cap, block_b, block_n)

    if vmem_limit_bytes is None:
        valid_tile = block_b * block_n * E * itemsize
        out_tile = block_b * block_n * 4
        small = 2 * (2 * block_b * E * 4) + 2 * ((E * A + A) * 4) + block_b * E * 4
        # headroom: one f32 copy of the valid tile for compiler temporaries of
        # the fused multiply-reduce, plus 8 MiB slack
        needed = (2 * valid_tile + 2 * out_tile + small
                  + block_b * block_n * E * 4 + (8 << 20))
        vmem_limit_bytes = max(24 << 20, min(int(vmem_cap * 0.9), needed))

    # Pre-stacked user vectors: avoids an in-kernel concatenate copy.  Tiny.
    stacked = jnp.stack([history_attention, short_attention], axis=0)     # (2, B, E)
    # Wq as a lane-dense (1, A) row so the kernel avoids an N=1 MXU matmul.
    wq_row = trans_weight_q.reshape(1, A)

    # NOTE: no padding of valid_news_embeddings (or anything else) in HBM.
    # Ragged tail blocks are handled by Pallas (OOB reads undefined but only
    # feed OOB output elements, OOB stores masked).
    grid = (pl.cdiv(B, block_b), pl.cdiv(Nv, block_n))

    out = pl.pallas_call(
        _make_kernel(use_mxu_scoring),
        out_shape=jax.ShapeDtypeStruct((B, Nv), jnp.float32),
        grid=grid,
        in_specs=[
            # user vectors: re-DMA'd only when the batch tile changes
            pl.BlockSpec((2, block_b, E), lambda i, j: (0, i, 0)),
            # dominant operand: double-buffered over both grid axes
            pl.BlockSpec((block_b, block_n, E), lambda i, j: (i, j, 0)),
            # weights: constant block index -> fetched once, VMEM-resident
            pl.BlockSpec((E, A), lambda i, j: (0, 0)),
            pl.BlockSpec((1, A), lambda i, j: (0, 0)),
        ],
        out_specs=pl.BlockSpec((block_b, block_n), lambda i, j: (i, j)),
        scratch_shapes=[pltpu.VMEM((block_b, E), jnp.float32)],   # attend carry
        compiler_params=pltpu.CompilerParams(
            # batch axis parallel (v7x megacore when B >= 2*block_b);
            # candidate axis arbitrary (attend scratch carried across it).
            dimension_semantics=("parallel", "arbitrary"),
            vmem_limit_bytes=vmem_limit_bytes),
    )(stacked, valid_news_embeddings, trans_weight_v, wq_row)

    return out


def _reference_forward(hist, short, valid, wv, wq):
    """Pure-JAX reference mirroring the PyTorch ops exactly."""
    concat = jnp.concatenate([hist[:, None, :], short[:, None, :]], axis=1)   # (B,2,E)
    scores = jnp.matmul(jnp.tanh(jnp.matmul(concat, wv)), wq)                 # (B,2,1)
    attend_w = jax.nn.softmax(scores, axis=1)                                 # (B,2,1)
    attend = jnp.matmul(jnp.swapaxes(concat, 1, 2), attend_w)[..., 0]         # (B,E)
    return jnp.sum(attend[:, None, :] * valid, axis=2)                        # (B,Nv)


if __name__ == "__main__":
    # TODO(synk): the dict-based newsID lookups, pad_masking/pad_entity_masking
    # ragged padding, and the external history/recent/news encoder submodules
    # have no Pallas equivalent; their outputs are synthesized as inputs here.
    B = 4          # batch of users
    E = 128        # history_encoder.self_attn_size (encode_behavior_size)
    A = 32         # attn_vector_size
    NV = 20        # candidate ("valid") news per user (NOT 128-aligned on purpose)

    key = jax.random.PRNGKey(0)
    k1, k2, k3, k4, k5 = jax.random.split(key, 5)

    # Synthetic encoder outputs (stand-ins for the three encoder submodules).
    history_attention = jax.random.normal(k1, (B, E), dtype=jnp.float32)
    short_attention = jax.random.normal(k2, (B, E), dtype=jnp.float32)
    # Dominant tensor stored in bfloat16 (halves HBM traffic on this stream).
    valid_news_embeddings = jax.random.normal(
        k3, (B, NV, E), dtype=jnp.float32).astype(jnp.bfloat16)

    # Parameters: uniform(-1, 1), matching parameters_init().
    trans_weight_v = jax.random.uniform(k4, (E, A), dtype=jnp.float32,
                                        minval=-1.0, maxval=1.0)
    trans_weight_q = jax.random.uniform(k5, (A, 1), dtype=jnp.float32,
                                        minval=-1.0, maxval=1.0)

    out = nrms_new_forward(history_attention, short_attention,
                           valid_news_embeddings, trans_weight_v,
                           trans_weight_q)
    out = jax.block_until_ready(out)

    # Reference computed from the exact same (bf16-rounded) candidate values.
    ref = _reference_forward(history_attention, short_attention,
                             valid_news_embeddings.astype(jnp.float32),
                             trans_weight_v, trans_weight_q)
    assert out.shape == (B, NV)
    assert jnp.allclose(out, ref, atol=1e-4, rtol=1e-4), "mismatch vs reference"

    print("KERNEL_OK")
</pallas_src>

<mosaic_0001>
module attributes {stable_mosaic.version = 11 : i64} {
  func.func @kernel(%arg0: i32, %arg1: i32, %arg2: memref<2x16x128xf32, #tpu.memory_space<vmem>>, %arg3: memref<16x128x128xbf16, #tpu.memory_space<vmem>>, %arg4: memref<128x32xf32, #tpu.memory_space<vmem>>, %arg5: memref<1x32xf32, #tpu.memory_space<vmem>>, %arg6: memref<16x128xf32, #tpu.memory_space<vmem>>, %arg7: memref<16x128xf32, #tpu.memory_space<vmem>>) attributes {dimension_semantics = [#tpu.dimension_semantics<parallel>, #tpu.dimension_semantics<arbitrary>], iteration_bounds = array<i64: 1, 1>, scalar_prefetch = 0 : i64, scratch_operands = 1 : i64, tpu.core_type = #tpu.core_type<tc>, window_params = [{transform_indices = @transform_0, window_bounds = array<i64: 2, 16, 128>}, {transform_indices = @transform_1, window_bounds = array<i64: 16, 128, 128>}, {pipeline_mode = #tpu.pipeline_mode<synchronous>, transform_indices = @transform_2, window_bounds = array<i64: 128, 32>}, {pipeline_mode = #tpu.pipeline_mode<synchronous>, transform_indices = @transform_3, window_bounds = array<i64: 1, 32>}, {transform_indices = @transform_4, window_bounds = array<i64: 16, 128>}]} {
    %c0_i32 = arith.constant 0 : i32
    %0 = arith.cmpi eq, %arg1, %c0_i32 : i32
    %1 = arith.extui %0 : i1 to i32
    %c0_i32_0 = arith.constant 0 : i32
    %2 = arith.cmpi ne, %1, %c0_i32_0 : i32
    scf.if %2 {
      %c0_7 = arith.constant 0 : index
      %c0_8 = arith.constant 0 : index
      %c0_9 = arith.constant 0 : index
      %11 = vector.load %arg2[%c0_7, %c0_8, %c0_9] : memref<2x16x128xf32, #tpu.memory_space<vmem>>, vector<2x16x128xf32>
      %12 = vector.extract_strided_slice %11 {offsets = [0, 0, 0], sizes = [1, 16, 128], strides = [1, 1, 1]} : vector<2x16x128xf32> to vector<1x16x128xf32>
      %13 = vector.shape_cast %12 : vector<1x16x128xf32> to vector<16x128xf32>
      %14 = vector.extract_strided_slice %11 {offsets = [1, 0, 0], sizes = [1, 16, 128], strides = [1, 1, 1]} : vector<2x16x128xf32> to vector<1x16x128xf32>
      %15 = vector.shape_cast %14 : vector<1x16x128xf32> to vector<16x128xf32>
      %c0_10 = arith.constant 0 : index
      %c0_11 = arith.constant 0 : index
      %16 = vector.load %arg4[%c0_10, %c0_11] : memref<128x32xf32, #tpu.memory_space<vmem>>, vector<128x32xf32>
      %c0_12 = arith.constant 0 : index
      %c0_13 = arith.constant 0 : index
      %17 = vector.load %arg5[%c0_12, %c0_13] : memref<1x32xf32, #tpu.memory_space<vmem>>, vector<1x32xf32>
      %18 = vector.shape_cast %11 : vector<2x16x128xf32> to vector<32x128xf32>
      %cst_14 = arith.constant dense<0.000000e+00> : vector<32x32xf32>
      %19 = tpu.matmul %18, %16, %cst_14 {dimension_numbers = #tpu.dot_dimension_numbers<[1], [0], [0], [1], [0, 0, 1, 1], [], []>} : vector<32x128xf32>, vector<128x32xf32>, vector<32x32xf32> -> vector<32x32xf32>
      %20 = math.tanh %19 : vector<32x32xf32>
      %21 = vector.broadcast %17 : vector<1x32xf32> to vector<32x32xf32>
      %22 = arith.mulf %20, %21 : vector<32x32xf32>
      %cst_15 = arith.constant dense<0.000000e+00> : vector<32xf32>
      %23 = vector.multi_reduction <add>, %22, %cst_15 [1] : vector<32x32xf32> to vector<32xf32>
      %24 = vector.shape_cast %23 : vector<32xf32> to vector<32x1xf32>
      %25 = vector.extract_strided_slice %24 {offsets = [0, 0], sizes = [16, 1], strides = [1, 1]} : vector<32x1xf32> to vector<16x1xf32>
      %26 = vector.extract_strided_slice %24 {offsets = [16, 0], sizes = [16, 1], strides = [1, 1]} : vector<32x1xf32> to vector<16x1xf32>
      %27 = arith.subf %25, %26 : vector<16x1xf32>
      %28 = arith.negf %27 : vector<16x1xf32>
      %29 = math.exp %28 : vector<16x1xf32>
      %cst_16 = arith.constant 1.000000e+00 : f32
      %30 = vector.broadcast %cst_16 : f32 to vector<16x1xf32>
      %31 = arith.addf %30, %29 : vector<16x1xf32>
      %32 = arith.divf %30, %31 : vector<16x1xf32>
      %33 = vector.broadcast %32 : vector<16x1xf32> to vector<16x128xf32>
      %34 = arith.mulf %33, %13 : vector<16x128xf32>
      %cst_17 = arith.constant 1.000000e+00 : f32
      %35 = vector.broadcast %cst_17 : f32 to vector<16x1xf32>
      %36 = arith.subf %35, %32 : vector<16x1xf32>
      %37 = vector.broadcast %36 : vector<16x1xf32> to vector<16x128xf32>
      %38 = arith.mulf %37, %15 : vector<16x128xf32>
      %39 = arith.addf %34, %38 : vector<16x128xf32>
      %c0_18 = arith.constant 0 : index
      %c0_19 = arith.constant 0 : index
      %40 = vector.load %arg7[%c0_18, %c0_19] : memref<16x128xf32, #tpu.memory_space<vmem>>, vector<16x128xf32>
      tpu.vector_store %arg7[%c0_18, %c0_19], %39 {strides = array<i32>} : memref<16x128xf32, #tpu.memory_space<vmem>>, vector<16x128xf32>,
    } else {
    }
    %c0 = arith.constant 0 : index
    %c0_1 = arith.constant 0 : index
    %3 = vector.load %arg7[%c0, %c0_1] : memref<16x128xf32, #tpu.memory_space<vmem>>, vector<16x128xf32>
    %c0_2 = arith.constant 0 : index
    %c0_3 = arith.constant 0 : index
    %c0_4 = arith.constant 0 : index
    %4 = vector.load %arg3[%c0_2, %c0_3, %c0_4] : memref<16x128x128xbf16, #tpu.memory_space<vmem>>, vector<16x128x128xbf16>
    %5 = vector.shape_cast %3 : vector<16x128xf32> to vector<16x1x128xf32>
    %6 = arith.extf %4 : vector<16x128x128xbf16> to vector<16x128x128xf32>
    %7 = vector.broadcast %5 : vector<16x1x128xf32> to vector<16x128x128xf32>
    %8 = arith.mulf %6, %7 : vector<16x128x128xf32>
    %cst = arith.constant dense<0.000000e+00> : vector<16x128xf32>
    %9 = vector.multi_reduction <add>, %8, %cst [2] : vector<16x128x128xf32> to vector<16x128xf32>
    %c0_5 = arith.constant 0 : index
    %c0_6 = arith.constant 0 : index
    %10 = vector.load %arg6[%c0_5, %c0_6] : memref<16x128xf32, #tpu.memory_space<vmem>>, vector<16x128xf32>
    tpu.vector_store %arg6[%c0_5, %c0_6], %9 {strides = array<i32>} : memref<16x128xf32, #tpu.memory_space<vmem>>, vector<16x128xf32>,
    return
  }
  func.func @transform_0(%arg0: i32, %arg1: i32) -> (i32, i32, i32) {
    %c0_i32 = arith.constant 0 : i32
    %c0_i32_0 = arith.constant 0 : i32
    %c0_i32_1 = arith.constant 0 : i32
    return %c0_i32, %arg0, %c0_i32_0 : i32, i32, i32
  }
  func.func @transform_1(%arg0: i32, %arg1: i32) -> (i32, i32, i32) {
    %c0_i32 = arith.constant 0 : i32
    %c0_i32_0 = arith.constant 0 : i32
    return %arg0, %arg1, %c0_i32 : i32, i32, i32
  }
  func.func @transform_2(%arg0: i32, %arg1: i32) -> (i32, i32) {
    %c0_i32 = arith.constant 0 : i32
    %c0_i32_0 = arith.constant 0 : i32
    %c0_i32_1 = arith.constant 0 : i32
    return %c0_i32, %c0_i32_0 : i32, i32
  }
  func.func @transform_3(%arg0: i32, %arg1: i32) -> (i32, i32) {
    %c0_i32 = arith.constant 0 : i32
    %c0_i32_0 = arith.constant 0 : i32
    %c0_i32_1 = arith.constant 0 : i32
    return %c0_i32, %c0_i32_0 : i32, i32
  }
  func.func @transform_4(%arg0: i32, %arg1: i32) -> (i32, i32) {
    %c0_i32 = arith.constant 0 : i32
    return %arg0, %arg1 : i32, i32
  }
}

</mosaic_0001>

<llo_original>
// kernel: tpu_custom_call.1
$region0: #{tpu_custom_call.1}
  #allocation0 [shape = 'u32[]', space=smem, size = 0x4, offset = 0x4, fixed_abs, tag = 'smem constant byte address 0x4 - core index']
  #allocation1 [shape = 'u32[144,128]{1,0:T(1,128)}', space=vmem, size = 0x12000, scoped, tag = 'internal scratch']
  #allocation2 [shape = 'f32[16,128]{1,0:T(8,128)}', space=vmem, size = 0x2000, scoped, tag = 'scratch operand']
  %s0 = inlined_call_operand.vmem [shape: f32[2,4,128], index: 0, kind: input, shape index: {}]
  %s1 = inlined_call_operand.vmem [shape: bf16[4,20,128], index: 1, kind: input, shape index: {}]
  %s2 = inlined_call_operand.vmem [shape: f32[128,32], index: 2, kind: input, shape index: {}]
  %s3 = inlined_call_operand.vmem [shape: f32[1,32], index: 3, kind: input, shape index: {}]
  %s4 = inlined_call_operand.hbm [shape: f32[4,20], index: 4, kind: output, shape index: {}]
  %s5 = sld [smem:[#allocation0]]
  $region112: #{tpu_custom_call.1} parent=0
    _
  %s7 = ssub.s32 1, %s5
  %s8 = scalar_select 0, %s7, %s5
  $region1: #{tpu_custom_call.1} parent=0
    #allocation3 [shape = 'u8[16384]{0}', space=vmem, size = 0x4000, scoped, tag = 'input window, operand 0, single buffered']
    #allocation4 [shape = 'u8[524288]{0}', space=vmem, size = 0x80000, scoped, tag = 'input window, operand 1, single buffered']
    #allocation5 [shape = 'u8[8192]{0}', space=vmem, size = 0x2000, scoped, tag = 'output window, operand 0, single buffered']
    #allocation6 [shape = 's32[1]{0}', space=sflag, size = 0x4, scoped, tag = 'scoped memory for tpu_custom_call.1']
    %9 = vsyncpa [#allocation6], 0
    // Predicated region
    $region2: #{tpu_custom_call.1} parent=1 // pred_check
      _
    $region3: #{tpu_custom_call.1} parent=1 // pred_check_branch
      %11 = sbr.rel (0) target = $region5
    $region4: #{tpu_custom_call.1} parent=1 // pred_region
      // Predicated region
      $region6: #{tpu_custom_call.1} parent=4 // pred_check
        _
      $region7: #{tpu_custom_call.1} parent=4 // pred_check_branch
        %13 = sbr.rel (0) target = $region9
      $region8: #{tpu_custom_call.1} parent=4 // pred_region
        // Predicated region
        $region10: #{tpu_custom_call.1} parent=8 // pred_check
          _
        $region11: #{tpu_custom_call.1} parent=8 // pred_check_branch
          %15 = sbr.rel target = $region13
        $region12: #{tpu_custom_call.1} parent=8 // pred_region
          // Predicated region
          $region25: #{tpu_custom_call.1} parent=12 // pred_check
            _
          $region26: #{tpu_custom_call.1} parent=12 // pred_check_branch
            %33 = sbr.rel (0) target = $region28
          $region27: #{tpu_custom_call.1} parent=12 // pred_region
            loop: start=0, step=1, limit=1
            $region29: #{tpu_custom_call.1} parent=27 // loop_pre_header
              _
            $region30: #{tpu_custom_call.1} parent=27 // loop_header
              %s35 = sphi 0, %s39
              %p36 = scmp.ge.s32.totalorder %s35, 1
              %s40 = sphi %s0, %s0
              %s41 = sphi [#allocation3], [#allocation3]
            $region31: #{tpu_custom_call.1} parent=27 // loop_header_branch
              %38 = sbr.rel (%p36) target = $region35
            $region32: #{tpu_custom_call.1} parent=27 // loop_body
              _
            $region33: #{tpu_custom_call.1} parent=27 // loop_footer
              %s39 = sadd.s32 1, %s35
            $region34: #{tpu_custom_call.1} parent=27 // loop_footer_branch
              %34 = sbr.rel target = $region30
            $region35: #{tpu_custom_call.1} parent=27 // loop_exit
              _
            %s43 = ssub.s32 16, 1
            loop: start=0, step=1, limit=1
            $region36: #{tpu_custom_call.1} parent=27 // loop_pre_header
              _
            $region37: #{tpu_custom_call.1} parent=27 // loop_header
              %s45 = sphi 0, %s49
              %p46 = scmp.ge.s32.totalorder %s45, 1
              %s50 = sphi %s0, %s0
              %s51 = sphi [#allocation3], [#allocation3]
            $region38: #{tpu_custom_call.1} parent=27 // loop_header_branch
              %48 = sbr.rel (%p46) target = $region42
            $region39: #{tpu_custom_call.1} parent=27 // loop_body
              %v52 = vld [vmem:[%s50] sm:%s43]
              %53 = vst [vmem:[%s51] sm:%s43] %v52
              %v54 = vld [vmem:[%s50 + $0x4] sm:%s43]
              %55 = vst [vmem:[%s51 + $0x10] sm:%s43] %v54
            $region40: #{tpu_custom_call.1} parent=27 // loop_footer
              %s49 = sadd.s32 1, %s45
            $region41: #{tpu_custom_call.1} parent=27 // loop_footer_branch
              %44 = sbr.rel target = $region37
            $region42: #{tpu_custom_call.1} parent=27 // loop_exit
              _
          $region28: #{tpu_custom_call.1} parent=12 // pred_fallthru
            _
        $region13: #{tpu_custom_call.1} parent=8 // pred_fallthru
          _
        // Predicated region
        $region14: #{tpu_custom_call.1} parent=8 // pred_check
          _
        $region15: #{tpu_custom_call.1} parent=8 // pred_check_branch
          %17 = sbr.rel (0) target = $region17
        $region16: #{tpu_custom_call.1} parent=8 // pred_region
          %s19 = ssub.s32 16, 1
          loop: start=0, step=1, limit=1
          $region18: #{tpu_custom_call.1} parent=16 // loop_pre_header
            _
          $region19: #{tpu_custom_call.1} parent=16 // loop_header
            %s21 = sphi 0, %s25
            %p22 = scmp.ge.s32.totalorder %s21, 1
            %s26 = sphi %s0, %s0
            %s27 = sphi [#allocation3], [#allocation3]
          $region20: #{tpu_custom_call.1} parent=16 // loop_header_branch
            %24 = sbr.rel (%p22) target = $region24
          $region21: #{tpu_custom_call.1} parent=16 // loop_body
            %v28 = vld [vmem:[%s26] sm:%s19]
            %29 = vst [vmem:[%s27] sm:%s19] %v28
            %v30 = vld [vmem:[%s26 + $0x4] sm:%s19]
            %31 = vst [vmem:[%s27 + $0x10] sm:%s19] %v30
          $region22: #{tpu_custom_call.1} parent=16 // loop_footer
            %s25 = sadd.s32 1, %s21
          $region23: #{tpu_custom_call.1} parent=16 // loop_footer_branch
            %20 = sbr.rel target = $region19
          $region24: #{tpu_custom_call.1} parent=16 // loop_exit
            _
        $region17: #{tpu_custom_call.1} parent=8 // pred_fallthru
          _
      $region9: #{tpu_custom_call.1} parent=4 // pred_fallthru
        _
      %56 = vnop
    $region5: #{tpu_custom_call.1} parent=1 // pred_fallthru
      _
    // Predicated region
    $region43: #{tpu_custom_call.1} parent=1 // pred_check
      _
    $region44: #{tpu_custom_call.1} parent=1 // pred_check_branch
      %58 = sbr.rel (0) target = $region46
    $region45: #{tpu_custom_call.1} parent=1 // pred_region
      // Predicated region
      $region47: #{tpu_custom_call.1} parent=45 // pred_check
        _
      $region48: #{tpu_custom_call.1} parent=45 // pred_check_branch
        %60 = sbr.rel (0) target = $region50
      $region49: #{tpu_custom_call.1} parent=45 // pred_region
        // Predicated region
        $region51: #{tpu_custom_call.1} parent=49 // pred_check
          _
        $region52: #{tpu_custom_call.1} parent=49 // pred_check_branch
          %62 = sbr.rel target = $region54
        $region53: #{tpu_custom_call.1} parent=49 // pred_region
          // Predicated region
          $region66: #{tpu_custom_call.1} parent=53 // pred_check
            _
          $region67: #{tpu_custom_call.1} parent=53 // pred_check_branch
            %100 = sbr.rel (0) target = $region69
          $region68: #{tpu_custom_call.1} parent=53 // pred_region
            loop: start=0, step=1, limit=1
            $region70: #{tpu_custom_call.1} parent=68 // loop_pre_header
              _
            $region71: #{tpu_custom_call.1} parent=68 // loop_header
              %s102 = sphi 0, %s106
              %p103 = scmp.ge.s32.totalorder %s102, 1
              %s107 = sphi %s1, %s1
              %s108 = sphi [#allocation4], [#allocation4]
            $region72: #{tpu_custom_call.1} parent=68 // loop_header_branch
              %105 = sbr.rel (%p103) target = $region76
            $region73: #{tpu_custom_call.1} parent=68 // loop_body
              _
            $region74: #{tpu_custom_call.1} parent=68 // loop_footer
              %s106 = sadd.s32 1, %s102
            $region75: #{tpu_custom_call.1} parent=68 // loop_footer_branch
              %101 = sbr.rel target = $region71
            $region76: #{tpu_custom_call.1} parent=68 // loop_exit
              _
            %s110 = ssub.s32 16, 1
            loop: start=0, step=1, limit=1
            $region77: #{tpu_custom_call.1} parent=68 // loop_pre_header
              _
            $region78: #{tpu_custom_call.1} parent=68 // loop_header
              %s112 = sphi 0, %s116
              %p113 = scmp.ge.s32.totalorder %s112, 1
              %s117 = sphi %s1, %s1
              %s118 = sphi [#allocation4], [#allocation4]
            $region79: #{tpu_custom_call.1} parent=68 // loop_header_branch
              %115 = sbr.rel (%p113) target = $region83
            $region80: #{tpu_custom_call.1} parent=68 // loop_body
              %v119 = vld [vmem:[%s117] sm:%s110]
              %120 = vst [vmem:[%s118] sm:%s110] %v119
              %v121 = vld [vmem:[%s117 + $0x4] sm:%s110]
              %122 = vst [vmem:[%s118 + $0x4] sm:%s110] %v121
              %v123 = vld [vmem:[%s117 + $0x8] sm:%s110]
              %124 = vst [vmem:[%s118 + $0x8] sm:%s110] %v123
              %v125 = vld [vmem:[%s117 + $0xc] sm:%s110]
              %126 = vst [vmem:[%s118 + $0x40] sm:%s110] %v125
              %v127 = vld [vmem:[%s117 + $0x10] sm:%s110]
              %128 = vst [vmem:[%s118 + $0x44] sm:%s110] %v127
              %v129 = vld [vmem:[%s117 + $0x14] sm:%s110]
              %130 = vst [vmem:[%s118 + $0x48] sm:%s110] %v129
              %v131 = vld [vmem:[%s117 + $0x18] sm:%s110]
              %132 = vst [vmem:[%s118 + $0x80] sm:%s110] %v131
              %v133 = vld [vmem:[%s117 + $0x1c] sm:%s110]
              %134 = vst [vmem:[%s118 + $0x84] sm:%s110] %v133
              %v135 = vld [vmem:[%s117 + $0x20] sm:%s110]
              %136 = vst [vmem:[%s118 + $0x88] sm:%s110] %v135
              %v137 = vld [vmem:[%s117 + $0x24] sm:%s110]
              %138 = vst [vmem:[%s118 + $0xc0] sm:%s110] %v137
              %v139 = vld [vmem:[%s117 + $0x28] sm:%s110]
              %140 = vst [vmem:[%s118 + $0xc4] sm:%s110] %v139
              %v141 = vld [vmem:[%s117 + $0x2c] sm:%s110]
              %142 = vst [vmem:[%s118 + $0xc8] sm:%s110] %v141
            $region81: #{tpu_custom_call.1} parent=68 // loop_footer
              %s116 = sadd.s32 1, %s112
            $region82: #{tpu_custom_call.1} parent=68 // loop_footer_branch
              %111 = sbr.rel target = $region78
            $region83: #{tpu_custom_call.1} parent=68 // loop_exit
              _
          $region69: #{tpu_custom_call.1} parent=53 // pred_fallthru
            _
        $region54: #{tpu_custom_call.1} parent=49 // pred_fallthru
          _
        // Predicated region
        $region55: #{tpu_custom_call.1} parent=49 // pred_check
          _
        $region56: #{tpu_custom_call.1} parent=49 // pred_check_branch
          %64 = sbr.rel (0) target = $region58
        $region57: #{tpu_custom_call.1} parent=49 // pred_region
          %s66 = ssub.s32 16, 1
          loop: start=0, step=1, limit=1
          $region59: #{tpu_custom_call.1} parent=57 // loop_pre_header
            _
          $region60: #{tpu_custom_call.1} parent=57 // loop_header
            %s68 = sphi 0, %s72
            %p69 = scmp.ge.s32.totalorder %s68, 1
            %s73 = sphi %s1, %s1
            %s74 = sphi [#allocation4], [#allocation4]
          $region61: #{tpu_custom_call.1} parent=57 // loop_header_branch
            %71 = sbr.rel (%p69) target = $region65
          $region62: #{tpu_custom_call.1} parent=57 // loop_body
            %v75 = vld [vmem:[%s73] sm:%s66]
            %76 = vst [vmem:[%s74] sm:%s66] %v75
            %v77 = vld [vmem:[%s73 + $0x4] sm:%s66]
            %78 = vst [vmem:[%s74 + $0x4] sm:%s66] %v77
            %v79 = vld [vmem:[%s73 + $0x8] sm:%s66]
            %80 = vst [vmem:[%s74 + $0x8] sm:%s66] %v79
            %v81 = vld [vmem:[%s73 + $0xc] sm:%s66]
            %82 = vst [vmem:[%s74 + $0x40] sm:%s66] %v81
            %v83 = vld [vmem:[%s73 + $0x10] sm:%s66]
            %84 = vst [vmem:[%s74 + $0x44] sm:%s66] %v83
            %v85 = vld [vmem:[%s73 + $0x14] sm:%s66]
            %86 = vst [vmem:[%s74 + $0x48] sm:%s66] %v85
            %v87 = vld [vmem:[%s73 + $0x18] sm:%s66]
            %88 = vst [vmem:[%s74 + $0x80] sm:%s66] %v87
            %v89 = vld [vmem:[%s73 + $0x1c] sm:%s66]
            %90 = vst [vmem:[%s74 + $0x84] sm:%s66] %v89
            %v91 = vld [vmem:[%s73 + $0x20] sm:%s66]
            %92 = vst [vmem:[%s74 + $0x88] sm:%s66] %v91
            %v93 = vld [vmem:[%s73 + $0x24] sm:%s66]
            %94 = vst [vmem:[%s74 + $0xc0] sm:%s66] %v93
            %v95 = vld [vmem:[%s73 + $0x28] sm:%s66]
            %96 = vst [vmem:[%s74 + $0xc4] sm:%s66] %v95
            %v97 = vld [vmem:[%s73 + $0x2c] sm:%s66]
            %98 = vst [vmem:[%s74 + $0xc8] sm:%s66] %v97
          $region63: #{tpu_custom_call.1} parent=57 // loop_footer
            %s72 = sadd.s32 1, %s68
          $region64: #{tpu_custom_call.1} parent=57 // loop_footer_branch
            %67 = sbr.rel target = $region60
          $region65: #{tpu_custom_call.1} parent=57 // loop_exit
            _
        $region58: #{tpu_custom_call.1} parent=49 // pred_fallthru
          _
      $region50: #{tpu_custom_call.1} parent=45 // pred_fallthru
        _
      %143 = vnop
    $region46: #{tpu_custom_call.1} parent=1 // pred_fallthru
      _
    // Predicated region
    $region84: #{tpu_custom_call.1} parent=1 // pred_check
      _
    $region85: #{tpu_custom_call.1} parent=1 // pred_check_branch
      %145 = sbr.rel (0) target = $region87
    $region86: #{tpu_custom_call.1} parent=1 // pred_region
      _
    $region87: #{tpu_custom_call.1} parent=1 // pred_fallthru
      _
    // Predicated region
    $region88: #{tpu_custom_call.1} parent=1 // pred_check
      _
    $region89: #{tpu_custom_call.1} parent=1 // pred_check_branch
      %147 = sbr.rel (0) target = $region91
    $region90: #{tpu_custom_call.1} parent=1 // pred_region
      _
    $region91: #{tpu_custom_call.1} parent=1 // pred_fallthru
      _
    // Predicated region
    $region92: #{tpu_custom_call.1} parent=1 // pred_check
      _
    $region93: #{tpu_custom_call.1} parent=1 // pred_check_branch
      %149 = sbr.rel (0) target = $region95
    $region94: #{tpu_custom_call.1} parent=1 // pred_region
      _
    $region95: #{tpu_custom_call.1} parent=1 // pred_fallthru
      _
    // Predicated region
    $region96: #{tpu_custom_call.1} parent=1 // pred_check
      _
    $region97: #{tpu_custom_call.1} parent=1 // pred_check_branch
      %151 = sbr.rel (0) target = $region99
    $region98: #{tpu_custom_call.1} parent=1 // pred_region
      _
    $region99: #{tpu_custom_call.1} parent=1 // pred_fallthru
      _
    %p152 = scmp.eq.s32.totalorder 0, 0
    // Predicated region
    $region100: #{tpu_custom_call.1} parent=1 // pred_check
      %p153 = pneg %p152
    $region101: #{tpu_custom_call.1} parent=1 // pred_check_branch
      %155 = sbr.rel (%p153) target = $region103
    $region102: #{tpu_custom_call.1} parent=1 // pred_region
      %v156 = vld [vmem:[#allocation3] sm:$0xff]
      %v157 = vld [vmem:[#allocation3 + $0x8] sm:$0xff]
      %v158 = vld [vmem:[#allocation3 + $0x10] sm:$0xff]
      %v159 = vld [vmem:[#allocation3 + $0x18] sm:$0xff]
      %v160 = vld [vmem:[%s2] sm:$0xff]
      %v161 = vld [vmem:[%s2 + $0x8] sm:$0xff]
      %v162 = vld [vmem:[%s2 + $0x10] sm:$0xff]
      %v163 = vld [vmem:[%s2 + $0x18] sm:$0xff]
      %v164 = vld [vmem:[%s2 + $0x20] sm:$0xff]
      %v165 = vld [vmem:[%s2 + $0x28] sm:$0xff]
      %v166 = vld [vmem:[%s2 + $0x30] sm:$0xff]
      %v167 = vld [vmem:[%s2 + $0x38] sm:$0xff]
      %v168 = vld [vmem:[%s2 + $0x40] sm:$0xff]
      %v169 = vld [vmem:[%s2 + $0x48] sm:$0xff]
      %v170 = vld [vmem:[%s2 + $0x50] sm:$0xff]
      %v171 = vld [vmem:[%s2 + $0x58] sm:$0xff]
      %v172 = vld [vmem:[%s2 + $0x60] sm:$0xff]
      %v173 = vld [vmem:[%s2 + $0x68] sm:$0xff]
      %v174 = vld [vmem:[%s2 + $0x70] sm:$0xff]
      %v175 = vld [vmem:[%s2 + $0x78] sm:$0xff]
      %v176 = vld [vmem:[%s3] sm:$0x1]
      %177 = vmatprep.subr.mxu0 0.0
      %178 = vmatpush1.msra.mxu0 %v175
      %179 = vmatprep.subr.mxu0 0.0
      %180 = vmatpush1.msra.mxu0 %v174
      %181 = vmatprep.subr.mxu0 0.0
      %182 = vmatpush1.msra.mxu0 %v173
      %183 = vmatprep.subr.mxu0 0.0
      %184 = vmatpush1.msra.mxu0 %v172
      %185 = vmatprep.subr.mxu0 0.0
      %186 = vmatpush1.msra.mxu0 %v171
      %187 = vmatprep.subr.mxu0 0.0
      %188 = vmatpush1.msra.mxu0 %v170
      %189 = vmatprep.subr.mxu0 0.0
      %190 = vmatpush1.msra.mxu0 %v169
      %191 = vmatprep.subr.mxu0 0.0
      %192 = vmatpush1.msra.mxu0 %v168
      %193 = vmatprep.subr.mxu0 0.0
      %194 = vmatpush1.msra.mxu0 %v167
      %195 = vmatprep.subr.mxu0 0.0
      %196 = vmatpush1.msra.mxu0 %v166
      %197 = vmatprep.subr.mxu0 0.0
      %198 = vmatpush1.msra.mxu0 %v165
      %199 = vmatprep.subr.mxu0 0.0
      %200 = vmatpush1.msra.mxu0 %v164
      %201 = vmatprep.subr.mxu0 0.0
      %202 = vmatpush1.msra.mxu0 %v163
      %203 = vmatprep.subr.mxu0 0.0
      %204 = vmatpush1.msra.mxu0 %v162
      %205 = vmatprep.subr.mxu0 0.0
      %206 = vmatpush1.msra.mxu0 %v161
      %207 = vmatprep.subr.mxu0 0.0
      %208 = vmatpush1.msra.mxu0 %v160
      %209 = vmatprep.subr.mxu0 0.0
      %210 = vmatpush2.msra.mxu0 0.0
      %211 = vmatprep.subr.mxu0 0.0
      %212 = vmatpush2.msra.mxu0 0.0
      %213 = vmatprep.subr.mxu0 0.0
      %214 = vmatpush2.msra.mxu0 0.0
      %215 = vmatprep.subr.mxu0 0.0
      %216 = vmatpush2.msra.mxu0 0.0
      %217 = vmatprep.subr.mxu0 0.0
      %218 = vmatpush2.msra.mxu0 0.0
      %219 = vmatprep.subr.mxu0 0.0
      %220 = vmatpush2.msra.mxu0 0.0
      %221 = vmatprep.subr.mxu0 0.0
      %222 = vmatpush2.msra.mxu0 0.0
      %223 = vmatprep.subr.mxu0 0.0
      %224 = vmatpush2.msra.mxu0 0.0
      %225 = vmatprep.subr.mxu0 0.0
      %226 = vmatpush2.msra.mxu0 0.0
      %227 = vmatprep.subr.mxu0 0.0
      %228 = vmatpush2.msra.mxu0 0.0
      %229 = vmatprep.subr.mxu0 0.0
      %230 = vmatpush2.msra.mxu0 0.0
      %231 = vmatprep.subr.mxu0 0.0
      %232 = vmatpush2.msra.mxu0 0.0
      %233 = vmatprep.subr.mxu0 0.0
      %234 = vmatpush2.msra.mxu0 0.0
      %235 = vmatprep.subr.mxu0 0.0
      %236 = vmatpush2.msra.mxu0 0.0
      %237 = vmatprep.subr.mxu0 0.0
      %238 = vmatpush2.msra.mxu0 0.0
      %239 = vmatprep.subr.mxu0 0.0
      %240 = vmatpush2.msra.mxu0 0.0
      %241 = vmatprep.mubr.f32.mxu0 0.0
      %242 = vmatmul.mubr.f32.gmra.mxu0 %v156
      %v243 = vpop.f32.mrf.mxu0
      %v244 = vadd.f32 0.0, %v243
      %v245 = vpop.f32.mrf.mxu0
      %246 = vmatprep.mubr.f32.mxu0 0.0
      %247 = vmatmul.mubr.f32.gmra.mxu0 %v157
      %v248 = vpop.f32.mrf.mxu0
      %v249 = vadd.f32 0.0, %v248
      %v250 = vpop.f32.mrf.mxu0
      %251 = vmatprep.mubr.f32.mxu0 0.0
      %252 = vmatmul.mubr.f32.gmra.mxu0 %v158
      %v253 = vpop.f32.mrf.mxu0
      %v254 = vadd.f32 0.0, %v253
      %v255 = vpop.f32.mrf.mxu0
      %256 = vmatprep.mubr.f32.mxu0 0.0
      %257 = vmatmul.mubr.f32.gmra.mxu0 %v159
      %v258 = vpop.f32.mrf.mxu0
      %v259 = vadd.f32 0.0, %v258
      %v260 = vpop.f32.mrf.mxu0
      %261 = vdwg.mxu0
      %v262 = vtanh.pop %v244
      %v263 = vtanh.pop %v249
      %v264 = vtanh.pop %v254
      %v265 = vtanh.pop %v259
      %v267 = vlaneseq
      %v268 = vshrl.u32 %v267, 7
      %v269 = vsub.s32 0, %v268
      %v270 = vrot.slane %v176, %v269
      %v272 = vmul.f32 %v262, %v270
      %v273 = vmul.f32 %v263, %v270
      %v274 = vmul.f32 %v264, %v270
      %v275 = vmul.f32 %v265, %v270
      %vm276 = vcmask 261120
      %v277 = vsel %vm276, %v272, 0.0
      %278 = vadd.xlane.f32.xlu0 %v277
      %v279 = vpop.xlane.xlu0 %278
      %v280 = vsel %vm276, %v273, 0.0
      %281 = vadd.xlane.f32.xlu0 %v280
      %v282 = vpop.xlane.xlu0 %281
      %v283 = vsel %vm276, %v274, 0.0
      %284 = vadd.xlane.f32.xlu0 %v283
      %v285 = vpop.xlane.xlu0 %284
      %v286 = vsel %vm276, %v275, 0.0
      %287 = vadd.xlane.f32.xlu0 %v286
      %v288 = vpop.xlane.xlu0 %287
      %v289 = vsub.f32 %v279, %v285
      %v290 = vsub.f32 %v282, %v288
      %v291 = vxor.u32 %v289, 2147483648
      %v292 = vxor.u32 %v290, 2147483648
      %v293 = vmul.f32 %v291, 1.442695
      %v294 = vpow.pop %v293
      %v295 = vmul.f32 %v292, 1.442695
      %v296 = vpow.pop %v295
      %v297 = vadd.f32 %v294, 1.0
      %v298 = vadd.f32 %v296, 1.0
      %v299 = vrcp.pop %v297
      %v300 = vmul.f32 1.0, %v299
      %v301 = vrcp.pop %v298
      %v302 = vmul.f32 1.0, %v301
      %v303 = vmul.f32 %v300, %v156
      %v304 = vmul.f32 %v302, %v157
      %v305 = vsub.f32 1.0, %v300
      %v306 = vsub.f32 1.0, %v302
      %v307 = vmul.f32 %v305, %v158
      %v308 = vmul.f32 %v306, %v159
      %v309 = vadd.f32 %v303, %v307
      %v310 = vadd.f32 %v304, %v308
      %311 = vst [vmem:[#allocation2] sm:$0xff] %v309
      %312 = vst [vmem:[#allocation2 + $0x8] sm:$0xff] %v310
    $region103: #{tpu_custom_call.1} parent=1 // pred_fallthru
      _
    %v313 = vld [vmem:[#allocation2] sm:$0xff]
    %v314 = vld [vmem:[#allocation2 + $0x8] sm:$0xff]
    %v315 = vld [vmem:[#allocation4] sm:$0xf]
    %v316 = vld [vmem:[#allocation4 + $0x4] sm:$0xf]
    %v317 = vld [vmem:[#allocation4 + $0x8] sm:$0xf]
    %v318 = vld [vmem:[#allocation4 + $0xc] sm:$0xf]
    %v319 = vld [vmem:[#allocation4 + $0x10] sm:$0xf]
    %v320 = vld [vmem:[#allocation4 + $0x14] sm:$0xf]
    %v321 = vld [vmem:[#allocation4 + $0x18] sm:$0xf]
    %v322 = vld [vmem:[#allocation4 + $0x1c] sm:$0xf]
    %v323 = vld [vmem:[#allocation4 + $0x20] sm:$0xf]
    %v324 = vld [vmem:[#allocation4 + $0x24] sm:$0xf]
    %v325 = vld [vmem:[#allocation4 + $0x28] sm:$0xf]
    %v326 = vld [vmem:[#allocation4 + $0x2c] sm:$0xf]
    %v327 = vld [vmem:[#allocation4 + $0x30] sm:$0xf]
    %v328 = vld [vmem:[#allocation4 + $0x34] sm:$0xf]
    %v329 = vld [vmem:[#allocation4 + $0x38] sm:$0xf]
    %v330 = vld [vmem:[#allocation4 + $0x3c] sm:$0xf]
    %v331 = vld [vmem:[#allocation4 + $0x40] sm:$0xf]
    %v332 = vld [vmem:[#allocation4 + $0x44] sm:$0xf]
    %v333 = vld [vmem:[#allocation4 + $0x48] sm:$0xf]
    %v334 = vld [vmem:[#allocation4 + $0x4c] sm:$0xf]
    %v335 = vld [vmem:[#allocation4 + $0x50] sm:$0xf]
    %v336 = vld [vmem:[#allocation4 + $0x54] sm:$0xf]
    %v337 = vld [vmem:[#allocation4 + $0x58] sm:$0xf]
    %v338 = vld [vmem:[#allocation4 + $0x5c] sm:$0xf]
    %v339 = vld [vmem:[#allocation4 + $0x60] sm:$0xf]
    %v340 = vld [vmem:[#allocation4 + $0x64] sm:$0xf]
    %v341 = vld [vmem:[#allocation4 + $0x68] sm:$0xf]
    %v342 = vld [vmem:[#allocation4 + $0x6c] sm:$0xf]
    %v343 = vld [vmem:[#allocation4 + $0x70] sm:$0xf]
    %v344 = vld [vmem:[#allocation4 + $0x74] sm:$0xf]
    %v345 = vld [vmem:[#allocation4 + $0x78] sm:$0xf]
    %v346 = vld [vmem:[#allocation4 + $0x7c] sm:$0xf]
    %v347 = vld [vmem:[#allocation4 + $0x80] sm:$0xf]
    %v348 = vld [vmem:[#allocation4 + $0x84] sm:$0xf]
    %v349 = vld [vmem:[#allocation4 + $0x88] sm:$0xf]
    %v350 = vld [vmem:[#allocation4 + $0x8c] sm:$0xf]
    %v351 = vld [vmem:[#allocation4 + $0x90] sm:$0xf]
    %v352 = vld [vmem:[#allocation4 + $0x94] sm:$0xf]
    %v353 = vld [vmem:[#allocation4 + $0x98] sm:$0xf]
    %v354 = vld [vmem:[#allocation4 + $0x9c] sm:$0xf]
    %v355 = vld [vmem:[#allocation4 + $0xa0] sm:$0xf]
    %v356 = vld [vmem:[#allocation4 + $0xa4] sm:$0xf]
    %v357 = vld [vmem:[#allocation4 + $0xa8] sm:$0xf]
    %v358 = vld [vmem:[#allocation4 + $0xac] sm:$0xf]
    %v359 = vld [vmem:[#allocation4 + $0xb0] sm:$0xf]
    %v360 = vld [vmem:[#allocation4 + $0xb4] sm:$0xf]
    %v361 = vld [vmem:[#allocation4 + $0xb8] sm:$0xf]
    %v362 = vld [vmem:[#allocation4 + $0xbc] sm:$0xf]
    %v363 = vld [vmem:[#allocation4 + $0xc0] sm:$0xf]
    %v364 = vld [vmem:[#allocation4 + $0xc4] sm:$0xf]
    %v365 = vld [vmem:[#allocation4 + $0xc8] sm:$0xf]
    %v366 = vld [vmem:[#allocation4 + $0xcc] sm:$0xf]
    %v367 = vld [vmem:[#allocation4 + $0xd0] sm:$0xf]
    %v368 = vld [vmem:[#allocation4 + $0xd4] sm:$0xf]
    %v369 = vld [vmem:[#allocation4 + $0xd8] sm:$0xf]
    %v370 = vld [vmem:[#allocation4 + $0xdc] sm:$0xf]
    %v371 = vld [vmem:[#allocation4 + $0xe0] sm:$0xf]
    %v372 = vld [vmem:[#allocation4 + $0xe4] sm:$0xf]
    %v373 = vld [vmem:[#allocation4 + $0xe8] sm:$0xf]
    %v374 = vld [vmem:[#allocation4 + $0xec] sm:$0xf]
    %v375 = vld [vmem:[#allocation4 + $0xf0] sm:$0xf]
    %v376 = vld [vmem:[#allocation4 + $0xf4] sm:$0xf]
    %v377 = vld [vmem:[#allocation4 + $0xf8] sm:$0xf]
    %v378 = vld [vmem:[#allocation4 + $0xfc] sm:$0xf]
    %v379 = vld [vmem:[#allocation4 + $0x100] sm:$0xf]
    %v380 = vld [vmem:[#allocation4 + $0x104] sm:$0xf]
    %v381 = vld [vmem:[#allocation4 + $0x108] sm:$0xf]
    %v382 = vld [vmem:[#allocation4 + $0x10c] sm:$0xf]
    %v383 = vld [vmem:[#allocation4 + $0x110] sm:$0xf]
    %v384 = vld [vmem:[#allocation4 + $0x114] sm:$0xf]
    %v385 = vld [vmem:[#allocation4 + $0x118] sm:$0xf]
    %v386 = vld [vmem:[#allocation4 + $0x11c] sm:$0xf]
    %v387 = vld [vmem:[#allocation4 + $0x120] sm:$0xf]
    %v388 = vld [vmem:[#allocation4 + $0x124] sm:$0xf]
    %v389 = vld [vmem:[#allocation4 + $0x128] sm:$0xf]
    %v390 = vld [vmem:[#allocation4 + $0x12c] sm:$0xf]
    %v391 = vld [vmem:[#allocation4 + $0x130] sm:$0xf]
    %v392 = vld [vmem:[#allocation4 + $0x134] sm:$0xf]
    %v393 = vld [vmem:[#allocation4 + $0x138] sm:$0xf]
    %v394 = vld [vmem:[#allocation4 + $0x13c] sm:$0xf]
    %v395 = vld [vmem:[#allocation4 + $0x140] sm:$0xf]
    %v396 = vld [vmem:[#allocation4 + $0x144] sm:$0xf]
    %v397 = vld [vmem:[#allocation4 + $0x148] sm:$0xf]
    %v398 = vld [vmem:[#allocation4 + $0x14c] sm:$0xf]
    %v399 = vld [vmem:[#allocation4 + $0x150] sm:$0xf]
    %v400 = vld [vmem:[#allocation4 + $0x154] sm:$0xf]
    %v401 = vld [vmem:[#allocation4 + $0x158] sm:$0xf]
    %v402 = vld [vmem:[#allocation4 + $0x15c] sm:$0xf]
    %v403 = vld [vmem:[#allocation4 + $0x160] sm:$0xf]
    %v404 = vld [vmem:[#allocation4 + $0x164] sm:$0xf]
    %v405 = vld [vmem:[#allocation4 + $0x168] sm:$0xf]
    %v406 = vld [vmem:[#allocation4 + $0x16c] sm:$0xf]
    %v407 = vld [vmem:[#allocation4 + $0x170] sm:$0xf]
    %v408 = vld [vmem:[#allocation4 + $0x174] sm:$0xf]
    %v409 = vld [vmem:[#allocation4 + $0x178] sm:$0xf]
    %v410 = vld [vmem:[#allocation4 + $0x17c] sm:$0xf]
    %v411 = vld [vmem:[#allocation4 + $0x180] sm:$0xf]
    %v412 = vld [vmem:[#allocation4 + $0x184] sm:$0xf]
    %v413 = vld [vmem:[#allocation4 + $0x188] sm:$0xf]
    %v414 = vld [vmem:[#allocation4 + $0x18c] sm:$0xf]
    %v415 = vld [vmem:[#allocation4 + $0x190] sm:$0xf]
    %v416 = vld [vmem:[#allocation4 + $0x194] sm:$0xf]
    %v417 = vld [vmem:[#allocation4 + $0x198] sm:$0xf]
    %v418 = vld [vmem:[#allocation4 + $0x19c] sm:$0xf]
    %v419 = vld [vmem:[#allocation4 + $0x1a0] sm:$0xf]
    %v420 = vld [vmem:[#allocation4 + $0x1a4] sm:$0xf]
    %v421 = vld [vmem:[#allocation4 + $0x1a8] sm:$0xf]
    %v422 = vld [vmem:[#allocation4 + $0x1ac] sm:$0xf]
    %v423 = vld [vmem:[#allocation4 + $0x1b0] sm:$0xf]
    %v424 = vld [vmem:[#allocation4 + $0x1b4] sm:$0xf]
    %v425 = vld [vmem:[#allocation4 + $0x1b8] sm:$0xf]
    %v426 = vld [vmem:[#allocation4 + $0x1bc] sm:$0xf]
    %v427 = vld [vmem:[#allocation4 + $0x1c0] sm:$0xf]
    %v428 = vld [vmem:[#allocation4 + $0x1c4] sm:$0xf]
    %v429 = vld [vmem:[#allocation4 + $0x1c8] sm:$0xf]
    %v430 = vld [vmem:[#allocation4 + $0x1cc] sm:$0xf]
    %v431 = vld [vmem:[#allocation4 + $0x1d0] sm:$0xf]
    %v432 = vld [vmem:[#allocation4 + $0x1d4] sm:$0xf]
    %v433 = vld [vmem:[#allocation4 + $0x1d8] sm:$0xf]
    %v434 = vld [vmem:[#allocation4 + $0x1dc] sm:$0xf]
    %v435 = vld [vmem:[#allocation4 + $0x1e0] sm:$0xf]
    %v436 = vld [vmem:[#allocation4 + $0x1e4] sm:$0xf]
    %v437 = vld [vmem:[#allocation4 + $0x1e8] sm:$0xf]
    %v438 = vld [vmem:[#allocation4 + $0x1ec] sm:$0xf]
    %v439 = vld [vmem:[#allocation4 + $0x1f0] sm:$0xf]
    %v440 = vld [vmem:[#allocation4 + $0x1f4] sm:$0xf]
    %v441 = vld [vmem:[#allocation4 + $0x1f8] sm:$0xf]
    %v442 = vld [vmem:[#allocation4 + $0x1fc] sm:$0xf]
    %v443 = vld [vmem:[#allocation4 + $0x200] sm:$0xf]
    %v444 = vld [vmem:[#allocation4 + $0x204] sm:$0xf]
    %v445 = vld [vmem:[#allocation4 + $0x208] sm:$0xf]
    %v446 = vld [vmem:[#allocation4 + $0x20c] sm:$0xf]
    %v447 = vld [vmem:[#allocation4 + $0x210] sm:$0xf]
    %v448 = vld [vmem:[#allocation4 + $0x214] sm:$0xf]
    %v449 = vld [vmem:[#allocation4 + $0x218] sm:$0xf]
    %v450 = vld [vmem:[#allocation4 + $0x21c] sm:$0xf]
    %v451 = vld [vmem:[#allocation4 + $0x220] sm:$0xf]
    %v452 = vld [vmem:[#allocation4 + $0x224] sm:$0xf]
    %v453 = vld [vmem:[#allocation4 + $0x228] sm:$0xf]
    %v454 = vld [vmem:[#allocation4 + $0x22c] sm:$0xf]
    %v455 = vld [vmem:[#allocation4 + $0x230] sm:$0xf]
    %v456 = vld [vmem:[#allocation4 + $0x234] sm:$0xf]
    %v457 = vld [vmem:[#allocation4 + $0x238] sm:$0xf]
    %v458 = vld [vmem:[#allocation4 + $0x23c] sm:$0xf]
    %v459 = vld [vmem:[#allocation4 + $0x240] sm:$0xf]
    %v460 = vld [vmem:[#allocation4 + $0x244] sm:$0xf]
    %v461 = vld [vmem:[#allocation4 + $0x248] sm:$0xf]
    %v462 = vld [vmem:[#allocation4 + $0x24c] sm:$0xf]
    %v463 = vld [vmem:[#allocation4 + $0x250] sm:$0xf]
    %v464 = vld [vmem:[#allocation4 + $0x254] sm:$0xf]
    %v465 = vld [vmem:[#allocation4 + $0x258] sm:$0xf]
    %v466 = vld [vmem:[#allocation4 + $0x25c] sm:$0xf]
    %v467 = vld [vmem:[#allocation4 + $0x260] sm:$0xf]
    %v468 = vld [vmem:[#allocation4 + $0x264] sm:$0xf]
    %v469 = vld [vmem:[#allocation4 + $0x268] sm:$0xf]
    %v470 = vld [vmem:[#allocation4 + $0x26c] sm:$0xf]
    %v471 = vld [vmem:[#allocation4 + $0x270] sm:$0xf]
    %v472 = vld [vmem:[#allocation4 + $0x274] sm:$0xf]
    %v473 = vld [vmem:[#allocation4 + $0x278] sm:$0xf]
    %v474 = vld [vmem:[#allocation4 + $0x27c] sm:$0xf]
    %v475 = vld [vmem:[#allocation4 + $0x280] sm:$0xf]
    %v476 = vld [vmem:[#allocation4 + $0x284] sm:$0xf]
    %v477 = vld [vmem:[#allocation4 + $0x288] sm:$0xf]
    %v478 = vld [vmem:[#allocation4 + $0x28c] sm:$0xf]
    %v479 = vld [vmem:[#allocation4 + $0x290] sm:$0xf]
    %v480 = vld [vmem:[#allocation4 + $0x294] sm:$0xf]
    %v481 = vld [vmem:[#allocation4 + $0x298] sm:$0xf]
    %v482 = vld [vmem:[#allocation4 + $0x29c] sm:$0xf]
    %v483 = vld [vmem:[#allocation4 + $0x2a0] sm:$0xf]
    %v484 = vld [vmem:[#allocation4 + $0x2a4] sm:$0xf]
    %v485 = vld [vmem:[#allocation4 + $0x2a8] sm:$0xf]
    %v486 = vld [vmem:[#allocation4 + $0x2ac] sm:$0xf]
    %v487 = vld [vmem:[#allocation4 + $0x2b0] sm:$0xf]
    %v488 = vld [vmem:[#allocation4 + $0x2b4] sm:$0xf]
    %v489 = vld [vmem:[#allocation4 + $0x2b8] sm:$0xf]
    %v490 = vld [vmem:[#allocation4 + $0x2bc] sm:$0xf]
    %v491 = vld [vmem:[#allocation4 + $0x2c0] sm:$0xf]
    %v492 = vld [vmem:[#allocation4 + $0x2c4] sm:$0xf]
    %v493 = vld [vmem:[#allocation4 + $0x2c8] sm:$0xf]
    %v494 = vld [vmem:[#allocation4 + $0x2cc] sm:$0xf]
    %v495 = vld [vmem:[#allocation4 + $0x2d0] sm:$0xf]
    %v496 = vld [vmem:[#allocation4 + $0x2d4] sm:$0xf]
    %v497 = vld [vmem:[#allocation4 + $0x2d8] sm:$0xf]
    %v498 = vld [vmem:[#allocation4 + $0x2dc] sm:$0xf]
    %v499 = vld [vmem:[#allocation4 + $0x2e0] sm:$0xf]
    %v500 = vld [vmem:[#allocation4 + $0x2e4] sm:$0xf]
    %v501 = vld [vmem:[#allocation4 + $0x2e8] sm:$0xf]
    %v502 = vld [vmem:[#allocation4 + $0x2ec] sm:$0xf]
    %v503 = vld [vmem:[#allocation4 + $0x2f0] sm:$0xf]
    %v504 = vld [vmem:[#allocation4 + $0x2f4] sm:$0xf]
    %v505 = vld [vmem:[#allocation4 + $0x2f8] sm:$0xf]
    %v506 = vld [vmem:[#allocation4 + $0x2fc] sm:$0xf]
    %v507 = vld [vmem:[#allocation4 + $0x300] sm:$0xf]
    %v508 = vld [vmem:[#allocation4 + $0x304] sm:$0xf]
    %v509 = vld [vmem:[#allocation4 + $0x308] sm:$0xf]
    %v510 = vld [vmem:[#allocation4 + $0x30c] sm:$0xf]
    %v511 = vld [vmem:[#allocation4 + $0x310] sm:$0xf]
    %v512 = vld [vmem:[#allocation4 + $0x314] sm:$0xf]
    %v513 = vld [vmem:[#allocation4 + $0x318] sm:$0xf]
    %v514 = vld [vmem:[#allocation4 + $0x31c] sm:$0xf]
    %v515 = vld [vmem:[#allocation4 + $0x320] sm:$0xf]
    %v516 = vld [vmem:[#allocation4 + $0x324] sm:$0xf]
    %v517 = vld [vmem:[#allocation4 + $0x328] sm:$0xf]
    %v518 = vld [vmem:[#allocation4 + $0x32c] sm:$0xf]
    %v519 = vld [vmem:[#allocation4 + $0x330] sm:$0xf]
    %v520 = vld [vmem:[#allocation4 + $0x334] sm:$0xf]
    %v521 = vld [vmem:[#allocation4 + $0x338] sm:$0xf]
    %v522 = vld [vmem:[#allocation4 + $0x33c] sm:$0xf]
    %v523 = vld [vmem:[#allocation4 + $0x340] sm:$0xf]
    %v524 = vld [vmem:[#allocation4 + $0x344] sm:$0xf]
    %v525 = vld [vmem:[#allocation4 + $0x348] sm:$0xf]
    %v526 = vld [vmem:[#allocation4 + $0x34c] sm:$0xf]
    %v527 = vld [vmem:[#allocation4 + $0x350] sm:$0xf]
    %v528 = vld [vmem:[#allocation4 + $0x354] sm:$0xf]
    %v529 = vld [vmem:[#allocation4 + $0x358] sm:$0xf]
    %v530 = vld [vmem:[#allocation4 + $0x35c] sm:$0xf]
    %v531 = vld [vmem:[#allocation4 + $0x360] sm:$0xf]
    %v532 = vld [vmem:[#allocation4 + $0x364] sm:$0xf]
    %v533 = vld [vmem:[#allocation4 + $0x368] sm:$0xf]
    %v534 = vld [vmem:[#allocation4 + $0x36c] sm:$0xf]
    %v535 = vld [vmem:[#allocation4 + $0x370] sm:$0xf]
    %v536 = vld [vmem:[#allocation4 + $0x374] sm:$0xf]
    %v537 = vld [vmem:[#allocation4 + $0x378] sm:$0xf]
    %v538 = vld [vmem:[#allocation4 + $0x37c] sm:$0xf]
    %v539 = vld [vmem:[#allocation4 + $0x380] sm:$0xf]
    %v540 = vld [vmem:[#allocation4 + $0x384] sm:$0xf]
    %v541 = vld [vmem:[#allocation4 + $0x388] sm:$0xf]
    %v542 = vld [vmem:[#allocation4 + $0x38c] sm:$0xf]
    %v543 = vld [vmem:[#allocation4 + $0x390] sm:$0xf]
    %v544 = vld [vmem:[#allocation4 + $0x394] sm:$0xf]
    %v545 = vld [vmem:[#allocation4 + $0x398] sm:$0xf]
    %v546 = vld [vmem:[#allocation4 + $0x39c] sm:$0xf]
    %v547 = vld [vmem:[#allocation4 + $0x3a0] sm:$0xf]
    %v548 = vld [vmem:[#allocation4 + $0x3a4] sm:$0xf]
    %v549 = vld [vmem:[#allocation4 + $0x3a8] sm:$0xf]
    %v550 = vld [vmem:[#allocation4 + $0x3ac] sm:$0xf]
    %v551 = vld [vmem:[#allocation4 + $0x3b0] sm:$0xf]
    %v552 = vld [vmem:[#allocation4 + $0x3b4] sm:$0xf]
    %v553 = vld [vmem:[#allocation4 + $0x3b8] sm:$0xf]
    %v554 = vld [vmem:[#allocation4 + $0x3bc] sm:$0xf]
    %v555 = vld [vmem:[#allocation4 + $0x3c0] sm:$0xf]
    %v556 = vld [vmem:[#allocation4 + $0x3c4] sm:$0xf]
    %v557 = vld [vmem:[#allocation4 + $0x3c8] sm:$0xf]
    %v558 = vld [vmem:[#allocation4 + $0x3cc] sm:$0xf]
    %v559 = vld [vmem:[#allocation4 + $0x3d0] sm:$0xf]
    %v560 = vld [vmem:[#allocation4 + $0x3d4] sm:$0xf]
    %v561 = vld [vmem:[#allocation4 + $0x3d8] sm:$0xf]
    %v562 = vld [vmem:[#allocation4 + $0x3dc] sm:$0xf]
    %v563 = vld [vmem:[#allocation4 + $0x3e0] sm:$0xf]
    %v564 = vld [vmem:[#allocation4 + $0x3e4] sm:$0xf]
    %v565 = vld [vmem:[#allocation4 + $0x3e8] sm:$0xf]
    %v566 = vld [vmem:[#allocation4 + $0x3ec] sm:$0xf]
    %v567 = vld [vmem:[#allocation4 + $0x3f0] sm:$0xf]
    %v568 = vld [vmem:[#allocation4 + $0x3f4] sm:$0xf]
    %v569 = vld [vmem:[#allocation4 + $0x3f8] sm:$0xf]
    %v570 = vld [vmem:[#allocation4 + $0x3fc] sm:$0xf]
    %v573 = vcombine.high %v313, %v313
    %v575 = vunpack.c.l.s4 1966171168
    %v576 = vunpack.c.0.s8 %v575
    %v577 = vlaneseq
    %v578 = vshrl.u32 %v577, 7
    %v579 = vsub.s32 %v576, %v578
    %v580 = vrot.slane %v313, %v579
    %v582 = vunpack.c.l.s4 1966171168
    %v583 = vunpack.c.0.s8 %v582
    %v584 = vlaneseq
    %v585 = vshrl.u32 %v584, 7
    %v586 = vsub.s32 %v583, %v585
    %v587 = vrot.slane %v573, %v586
    %v588 = vcombine.high %v580, %v580
    %v589 = vcombine.high %v587, %v587
    %v591 = vunpack.c.l.s4 1966171168
    %v592 = vunpack.c.0.s8 %v591
    %v593 = vlaneseq
    %v594 = vshrl.u32 %v593, 7
    %v595 = vsub.s32 %v592, %v594
    %v596 = vrot.slane %v580, %v595
    %v598 = vunpack.c.l.s4 1966171168
    %v599 = vunpack.c.0.s8 %v598
    %v600 = vlaneseq
    %v601 = vshrl.u32 %v600, 7
    %v602 = vsub.s32 %v599, %v601
    %v603 = vrot.slane %v587, %v602
    %v605 = vunpack.c.l.s4 1966171168
    %v606 = vunpack.c.0.s8 %v605
    %v607 = vlaneseq
    %v608 = vshrl.u32 %v607, 7
    %v609 = vsub.s32 %v606, %v608
    %v610 = vrot.slane %v588, %v609
    %v612 = vunpack.c.l.s4 1966171168
    %v613 = vunpack.c.0.s8 %v612
    %v614 = vlaneseq
    %v615 = vshrl.u32 %v614, 7
    %v616 = vsub.s32 %v613, %v615
    %v617 = vrot.slane %v589, %v616
    %v618 = vcombine.high %v596, %v596
    %v619 = vcombine.high %v603, %v603
    %v620 = vcombine.high %v610, %v610
    %v621 = vcombine.high %v617, %v617
    %v622 = vcombine.high %v314, %v314
    %v624 = vunpack.c.l.s4 1966171168
    %v625 = vunpack.c.0.s8 %v624
    %v626 = vlaneseq
    %v627 = vshrl.u32 %v626, 7
    %v628 = vsub.s32 %v625, %v627
    %v629 = vrot.slane %v314, %v628
    %v631 = vunpack.c.l.s4 1966171168
    %v632 = vunpack.c.0.s8 %v631
    %v633 = vlaneseq
    %v634 = vshrl.u32 %v633, 7
    %v635 = vsub.s32 %v632, %v634
    %v636 = vrot.slane %v622, %v635
    %v637 = vcombine.high %v629, %v629
    %v638 = vcombine.high %v636, %v636
    %v640 = vunpack.c.l.s4 1966171168
    %v641 = vunpack.c.0.s8 %v640
    %v642 = vlaneseq
    %v643 = vshrl.u32 %v642, 7
    %v644 = vsub.s32 %v641, %v643
    %v645 = vrot.slane %v629, %v644
    %v647 = vunpack.c.l.s4 1966171168
    %v648 = vunpack.c.0.s8 %v647
    %v649 = vlaneseq
    %v650 = vshrl.u32 %v649, 7
    %v651 = vsub.s32 %v648, %v650
    %v652 = vrot.slane %v636, %v651
    %v654 = vunpack.c.l.s4 1966171168
    %v655 = vunpack.c.0.s8 %v654
    %v656 = vlaneseq
    %v657 = vshrl.u32 %v656, 7
    %v658 = vsub.s32 %v655, %v657
    %v659 = vrot.slane %v637, %v658
    %v661 = vunpack.c.l.s4 1966171168
    %v662 = vunpack.c.0.s8 %v661
    %v663 = vlaneseq
    %v664 = vshrl.u32 %v663, 7
    %v665 = vsub.s32 %v662, %v664
    %v666 = vrot.slane %v638, %v665
    %v667 = vcombine.high %v645, %v645
    %v668 = vcombine.high %v652, %v652
    %v669 = vcombine.high %v659, %v659
    %v670 = vcombine.high %v666, %v666
    %v671 = vunpack.c.l.bf16 %v315
    %v672 = vunpack.c.l.bf16 %v316
    %v673 = vunpack.c.l.bf16 %v317
    %v674 = vunpack.c.l.bf16 %v318
    %v675 = vunpack.c.l.bf16 %v319
    %v676 = vunpack.c.l.bf16 %v320
    %v677 = vunpack.c.l.bf16 %v321
    %v678 = vunpack.c.l.bf16 %v322
    %v679 = vunpack.c.l.bf16 %v323
    %v680 = vunpack.c.l.bf16 %v324
    %v681 = vunpack.c.l.bf16 %v325
    %v682 = vunpack.c.l.bf16 %v326
    %v683 = vunpack.c.l.bf16 %v327
    %v684 = vunpack.c.l.bf16 %v328
    %v685 = vunpack.c.l.bf16 %v329
    %v686 = vunpack.c.l.bf16 %v330
    %v687 = vunpack.c.l.bf16 %v331
    %v688 = vunpack.c.l.bf16 %v332
    %v689 = vunpack.c.l.bf16 %v333
    %v690 = vunpack.c.l.bf16 %v334
    %v691 = vunpack.c.l.bf16 %v335
    %v692 = vunpack.c.l.bf16 %v336
    %v693 = vunpack.c.l.bf16 %v337
    %v694 = vunpack.c.l.bf16 %v338
    %v695 = vunpack.c.l.bf16 %v339
    %v696 = vunpack.c.l.bf16 %v340
    %v697 = vunpack.c.l.bf16 %v341
    %v698 = vunpack.c.l.bf16 %v342
    %v699 = vunpack.c.l.bf16 %v343
    %v700 = vunpack.c.l.bf16 %v344
    %v701 = vunpack.c.l.bf16 %v345
    %v702 = vunpack.c.l.bf16 %v346
    %v703 = vunpack.c.l.bf16 %v347
    %v704 = vunpack.c.l.bf16 %v348
    %v705 = vunpack.c.l.bf16 %v349
    %v706 = vunpack.c.l.bf16 %v350
    %v707 = vunpack.c.l.bf16 %v351
    %v708 = vunpack.c.l.bf16 %v352
    %v709 = vunpack.c.l.bf16 %v353
    %v710 = vunpack.c.l.bf16 %v354
    %v711 = vunpack.c.l.bf16 %v355
    %v712 = vunpack.c.l.bf16 %v356
    %v713 = vunpack.c.l.bf16 %v357
    %v714 = vunpack.c.l.bf16 %v358
    %v715 = vunpack.c.l.bf16 %v359
    %v716 = vunpack.c.l.bf16 %v360
    %v717 = vunpack.c.l.bf16 %v361
    %v718 = vunpack.c.l.bf16 %v362
    %v719 = vunpack.c.l.bf16 %v363
    %v720 = vunpack.c.l.bf16 %v364
    %v721 = vunpack.c.l.bf16 %v365
    %v722 = vunpack.c.l.bf16 %v366
    %v723 = vunpack.c.l.bf16 %v367
    %v724 = vunpack.c.l.bf16 %v368
    %v725 = vunpack.c.l.bf16 %v369
    %v726 = vunpack.c.l.bf16 %v370
    %v727 = vunpack.c.l.bf16 %v371
    %v728 = vunpack.c.l.bf16 %v372
    %v729 = vunpack.c.l.bf16 %v373
    %v730 = vunpack.c.l.bf16 %v374
    %v731 = vunpack.c.l.bf16 %v375
    %v732 = vunpack.c.l.bf16 %v376
    %v733 = vunpack.c.l.bf16 %v377
    %v734 = vunpack.c.l.bf16 %v378
    %v735 = vunpack.c.l.bf16 %v379
    %v736 = vunpack.c.l.bf16 %v380
    %v737 = vunpack.c.l.bf16 %v381
    %v738 = vunpack.c.l.bf16 %v382
    %v739 = vunpack.c.l.bf16 %v383
    %v740 = vunpack.c.l.bf16 %v384
    %v741 = vunpack.c.l.bf16 %v385
    %v742 = vunpack.c.l.bf16 %v386
    %v743 = vunpack.c.l.bf16 %v387
    %v744 = vunpack.c.l.bf16 %v388
    %v745 = vunpack.c.l.bf16 %v389
    %v746 = vunpack.c.l.bf16 %v390
    %v747 = vunpack.c.l.bf16 %v391
    %v748 = vunpack.c.l.bf16 %v392
    %v749 = vunpack.c.l.bf16 %v393
    %v750 = vunpack.c.l.bf16 %v394
    %v751 = vunpack.c.l.bf16 %v395
    %v752 = vunpack.c.l.bf16 %v396
    %v753 = vunpack.c.l.bf16 %v397
    %v754 = vunpack.c.l.bf16 %v398
    %v755 = vunpack.c.l.bf16 %v399
    %v756 = vunpack.c.l.bf16 %v400
    %v757 = vunpack.c.l.bf16 %v401
    %v758 = vunpack.c.l.bf16 %v402
    %v759 = vunpack.c.l.bf16 %v403
    %v760 = vunpack.c.l.bf16 %v404
    %v761 = vunpack.c.l.bf16 %v405
    %v762 = vunpack.c.l.bf16 %v406
    %v763 = vunpack.c.l.bf16 %v407
    %v764 = vunpack.c.l.bf16 %v408
    %v765 = vunpack.c.l.bf16 %v409
    %v766 = vunpack.c.l.bf16 %v410
    %v767 = vunpack.c.l.bf16 %v411
    %v768 = vunpack.c.l.bf16 %v412
    %v769 = vunpack.c.l.bf16 %v413
    %v770 = vunpack.c.l.bf16 %v414
    %v771 = vunpack.c.l.bf16 %v415
    %v772 = vunpack.c.l.bf16 %v416
    %v773 = vunpack.c.l.bf16 %v417
    %v774 = vunpack.c.l.bf16 %v418
    %v775 = vunpack.c.l.bf16 %v419
    %v776 = vunpack.c.l.bf16 %v420
    %v777 = vunpack.c.l.bf16 %v421
    %v778 = vunpack.c.l.bf16 %v422
    %v779 = vunpack.c.l.bf16 %v423
    %v780 = vunpack.c.l.bf16 %v424
    %v781 = vunpack.c.l.bf16 %v425
    %v782 = vunpack.c.l.bf16 %v426
    %v783 = vunpack.c.l.bf16 %v427
    %v784 = vunpack.c.l.bf16 %v428
    %v785 = vunpack.c.l.bf16 %v429
    %v786 = vunpack.c.l.bf16 %v430
    %v787 = vunpack.c.l.bf16 %v431
    %v788 = vunpack.c.l.bf16 %v432
    %v789 = vunpack.c.l.bf16 %v433
    %v790 = vunpack.c.l.bf16 %v434
    %v791 = vunpack.c.l.bf16 %v435
    %v792 = vunpack.c.l.bf16 %v436
    %v793 = vunpack.c.l.bf16 %v437
    %v794 = vunpack.c.l.bf16 %v438
    %v795 = vunpack.c.l.bf16 %v439
    %v796 = vunpack.c.l.bf16 %v440
    %v797 = vunpack.c.l.bf16 %v441
    %v798 = vunpack.c.l.bf16 %v442
    %v799 = vunpack.c.l.bf16 %v443
    %v800 = vunpack.c.l.bf16 %v444
    %v801 = vunpack.c.l.bf16 %v445
    %v802 = vunpack.c.l.bf16 %v446
    %v803 = vunpack.c.l.bf16 %v447
    %v804 = vunpack.c.l.bf16 %v448
    %v805 = vunpack.c.l.bf16 %v449
    %v806 = vunpack.c.l.bf16 %v450
    %v807 = vunpack.c.l.bf16 %v451
    %v808 = vunpack.c.l.bf16 %v452
    %v809 = vunpack.c.l.bf16 %v453
    %v810 = vunpack.c.l.bf16 %v454
    %v811 = vunpack.c.l.bf16 %v455
    %v812 = vunpack.c.l.bf16 %v456
    %v813 = vunpack.c.l.bf16 %v457
    %v814 = vunpack.c.l.bf16 %v458
    %v815 = vunpack.c.l.bf16 %v459
    %v816 = vunpack.c.l.bf16 %v460
    %v817 = vunpack.c.l.bf16 %v461
    %v818 = vunpack.c.l.bf16 %v462
    %v819 = vunpack.c.l.bf16 %v463
    %v820 = vunpack.c.l.bf16 %v464
    %v821 = vunpack.c.l.bf16 %v465
    %v822 = vunpack.c.l.bf16 %v466
    %v823 = vunpack.c.l.bf16 %v467
    %v824 = vunpack.c.l.bf16 %v468
    %v825 = vunpack.c.l.bf16 %v469
    %v826 = vunpack.c.l.bf16 %v470
    %v827 = vunpack.c.l.bf16 %v471
    %v828 = vunpack.c.l.bf16 %v472
    %v829 = vunpack.c.l.bf16 %v473
    %v830 = vunpack.c.l.bf16 %v474
    %v831 = vunpack.c.l.bf16 %v475
    %v832 = vunpack.c.l.bf16 %v476
    %v833 = vunpack.c.l.bf16 %v477
    %v834 = vunpack.c.l.bf16 %v478
    %v835 = vunpack.c.l.bf16 %v479
    %v836 = vunpack.c.l.bf16 %v480
    %v837 = vunpack.c.l.bf16 %v481
    %v838 = vunpack.c.l.bf16 %v482
    %v839 = vunpack.c.l.bf16 %v483
    %v840 = vunpack.c.l.bf16 %v484
    %v841 = vunpack.c.l.bf16 %v485
    %v842 = vunpack.c.l.bf16 %v486
    %v843 = vunpack.c.l.bf16 %v487
    %v844 = vunpack.c.l.bf16 %v488
    %v845 = vunpack.c.l.bf16 %v489
    %v846 = vunpack.c.l.bf16 %v490
    %v847 = vunpack.c.l.bf16 %v491
    %v848 = vunpack.c.l.bf16 %v492
    %v849 = vunpack.c.l.bf16 %v493
    %v850 = vunpack.c.l.bf16 %v494
    %v851 = vunpack.c.l.bf16 %v495
    %v852 = vunpack.c.l.bf16 %v496
    %v853 = vunpack.c.l.bf16 %v497
    %v854 = vunpack.c.l.bf16 %v498
    %v855 = vunpack.c.l.bf16 %v499
    %v856 = vunpack.c.l.bf16 %v500
    %v857 = vunpack.c.l.bf16 %v501
    %v858 = vunpack.c.l.bf16 %v502
    %v859 = vunpack.c.l.bf16 %v503
    %v860 = vunpack.c.l.bf16 %v504
    %v861 = vunpack.c.l.bf16 %v505
    %v862 = vunpack.c.l.bf16 %v506
    %v863 = vunpack.c.l.bf16 %v507
    %v864 = vunpack.c.l.bf16 %v508
    %v865 = vunpack.c.l.bf16 %v509
    %v866 = vunpack.c.l.bf16 %v510
    %v867 = vunpack.c.l.bf16 %v511
    %v868 = vunpack.c.l.bf16 %v512
    %v869 = vunpack.c.l.bf16 %v513
    %v870 = vunpack.c.l.bf16 %v514
    %v871 = vunpack.c.l.bf16 %v515
    %v872 = vunpack.c.l.bf16 %v516
    %v873 = vunpack.c.l.bf16 %v517
    %v874 = vunpack.c.l.bf16 %v518
    %v875 = vunpack.c.l.bf16 %v519
    %v876 = vunpack.c.l.bf16 %v520
    %v877 = vunpack.c.l.bf16 %v521
    %v878 = vunpack.c.l.bf16 %v522
    %v879 = vunpack.c.l.bf16 %v523
    %v880 = vunpack.c.l.bf16 %v524
    %v881 = vunpack.c.l.bf16 %v525
    %v882 = vunpack.c.l.bf16 %v526
    %v883 = vunpack.c.l.bf16 %v527
    %v884 = vunpack.c.l.bf16 %v528
    %v885 = vunpack.c.l.bf16 %v529
    %v886 = vunpack.c.l.bf16 %v530
    %v887 = vunpack.c.l.bf16 %v531
    %v888 = vunpack.c.l.bf16 %v532
    %v889 = vunpack.c.l.bf16 %v533
    %v890 = vunpack.c.l.bf16 %v534
    %v891 = vunpack.c.l.bf16 %v535
    %v892 = vunpack.c.l.bf16 %v536
    %v893 = vunpack.c.l.bf16 %v537
    %v894 = vunpack.c.l.bf16 %v538
    %v895 = vunpack.c.l.bf16 %v539
    %v896 = vunpack.c.l.bf16 %v540
    %v897 = vunpack.c.l.bf16 %v541
    %v898 = vunpack.c.l.bf16 %v542
    %v899 = vunpack.c.l.bf16 %v543
    %v900 = vunpack.c.l.bf16 %v544
    %v901 = vunpack.c.l.bf16 %v545
    %v902 = vunpack.c.l.bf16 %v546
    %v903 = vunpack.c.l.bf16 %v547
    %v904 = vunpack.c.l.bf16 %v548
    %v905 = vunpack.c.l.bf16 %v549
    %v906 = vunpack.c.l.bf16 %v550
    %v907 = vunpack.c.l.bf16 %v551
    %v908 = vunpack.c.l.bf16 %v552
    %v909 = vunpack.c.l.bf16 %v553
    %v910 = vunpack.c.l.bf16 %v554
    %v911 = vunpack.c.l.bf16 %v555
    %v912 = vunpack.c.l.bf16 %v556
    %v913 = vunpack.c.l.bf16 %v557
    %v914 = vunpack.c.l.bf16 %v558
    %v915 = vunpack.c.l.bf16 %v559
    %v916 = vunpack.c.l.bf16 %v560
    %v917 = vunpack.c.l.bf16 %v561
    %v918 = vunpack.c.l.bf16 %v562
    %v919 = vunpack.c.l.bf16 %v563
    %v920 = vunpack.c.l.bf16 %v564
    %v921 = vunpack.c.l.bf16 %v565
    %v922 = vunpack.c.l.bf16 %v566
    %v923 = vunpack.c.l.bf16 %v567
    %v924 = vunpack.c.l.bf16 %v568
    %v925 = vunpack.c.l.bf16 %v569
    %v926 = vunpack.c.l.bf16 %v570
    %v927 = vlaneseq
    %v928 = vshrl.u32 %v927, 7
    %v929 = vsub.s32 0, %v928
    %v930 = vrot.slane %v596, %v929
    %v931 = vlaneseq
    %v932 = vshrl.u32 %v931, 7
    %v933 = vsub.s32 0, %v932
    %v934 = vrot.slane %v610, %v933
    %v935 = vlaneseq
    %v936 = vshrl.u32 %v935, 7
    %v937 = vsub.s32 0, %v936
    %v938 = vrot.slane %v618, %v937
    %v939 = vlaneseq
    %v940 = vshrl.u32 %v939, 7
    %v941 = vsub.s32 0, %v940
    %v942 = vrot.slane %v620, %v941
    %v943 = vlaneseq
    %v944 = vshrl.u32 %v943, 7
    %v945 = vsub.s32 0, %v944
    %v946 = vrot.slane %v603, %v945
    %v947 = vlaneseq
    %v948 = vshrl.u32 %v947, 7
    %v949 = vsub.s32 0, %v948
    %v950 = vrot.slane %v617, %v949
    %v951 = vlaneseq
    %v952 = vshrl.u32 %v951, 7
    %v953 = vsub.s32 0, %v952
    %v954 = vrot.slane %v619, %v953
    %v955 = vlaneseq
    %v956 = vshrl.u32 %v955, 7
    %v957 = vsub.s32 0, %v956
    %v958 = vrot.slane %v621, %v957
    %v959 = vlaneseq
    %v960 = vshrl.u32 %v959, 7
    %v961 = vsub.s32 0, %v960
    %v962 = vrot.slane %v645, %v961
    %v963 = vlaneseq
    %v964 = vshrl.u32 %v963, 7
    %v965 = vsub.s32 0, %v964
    %v966 = vrot.slane %v659, %v965
    %v967 = vlaneseq
    %v968 = vshrl.u32 %v967, 7
    %v969 = vsub.s32 0, %v968
    %v970 = vrot.slane %v667, %v969
    %v971 = vlaneseq
    %v972 = vshrl.u32 %v971, 7
    %v973 = vsub.s32 0, %v972
    %v974 = vrot.slane %v669, %v973
    %v975 = vlaneseq
    %v976 = vshrl.u32 %v975, 7
    %v977 = vsub.s32 0, %v976
    %v978 = vrot.slane %v652, %v977
    %v979 = vlaneseq
    %v980 = vshrl.u32 %v979, 7
    %v981 = vsub.s32 0, %v980
    %v982 = vrot.slane %v666, %v981
    %v983 = vlaneseq
    %v984 = vshrl.u32 %v983, 7
    %v985 = vsub.s32 0, %v984
    %v986 = vrot.slane %v668, %v985
    %v987 = vlaneseq
    %v988 = vshrl.u32 %v987, 7
    %v989 = vsub.s32 0, %v988
    %v990 = vrot.slane %v670, %v989
    %v1007 = vmul.f32 %v671, %v930
    %v1008 = vmul.f32 %v672, %v930
    %v1009 = vmul.f32 %v673, %v930
    %v1010 = vmul.f32 %v674, %v930
    %v1011 = vmul.f32 %v675, %v930
    %v1012 = vmul.f32 %v676, %v930
    %v1013 = vmul.f32 %v677, %v930
    %v1014 = vmul.f32 %v678, %v930
    %v1015 = vmul.f32 %v679, %v930
    %v1016 = vmul.f32 %v680, %v930
    %v1017 = vmul.f32 %v681, %v930
    %v1018 = vmul.f32 %v682, %v930
    %v1019 = vmul.f32 %v683, %v930
    %v1020 = vmul.f32 %v684, %v930
    %v1021 = vmul.f32 %v685, %v930
    %v1022 = vmul.f32 %v686, %v930
    %v1023 = vmul.f32 %v687, %v934
    %v1024 = vmul.f32 %v688, %v934
    %v1025 = vmul.f32 %v689, %v934
    %v1026 = vmul.f32 %v690, %v934
    %v1027 = vmul.f32 %v691, %v934
    %v1028 = vmul.f32 %v692, %v934
    %v1029 = vmul.f32 %v693, %v934
    %v1030 = vmul.f32 %v694, %v934
    %v1031 = vmul.f32 %v695, %v934
    %v1032 = vmul.f32 %v696, %v934
    %v1033 = vmul.f32 %v697, %v934
    %v1034 = vmul.f32 %v698, %v934
    %v1035 = vmul.f32 %v699, %v934
    %v1036 = vmul.f32 %v700, %v934
    %v1037 = vmul.f32 %v701, %v934
    %v1038 = vmul.f32 %v702, %v934
    %v1039 = vmul.f32 %v703, %v938
    %v1040 = vmul.f32 %v704, %v938
    %v1041 = vmul.f32 %v705, %v938
    %v1042 = vmul.f32 %v706, %v938
    %v1043 = vmul.f32 %v707, %v938
    %v1044 = vmul.f32 %v708, %v938
    %v1045 = vmul.f32 %v709, %v938
    %v1046 = vmul.f32 %v710, %v938
    %v1047 = vmul.f32 %v711, %v938
    %v1048 = vmul.f32 %v712, %v938
    %v1049 = vmul.f32 %v713, %v938
    %v1050 = vmul.f32 %v714, %v938
    %v1051 = vmul.f32 %v715, %v938
    %v1052 = vmul.f32 %v716, %v938
    %v1053 = vmul.f32 %v717, %v938
    %v1054 = vmul.f32 %v718, %v938
    %v1055 = vmul.f32 %v719, %v942
    %v1056 = vmul.f32 %v720, %v942
    %v1057 = vmul.f32 %v721, %v942
    %v1058 = vmul.f32 %v722, %v942
    %v1059 = vmul.f32 %v723, %v942
    %v1060 = vmul.f32 %v724, %v942
    %v1061 = vmul.f32 %v725, %v942
    %v1062 = vmul.f32 %v726, %v942
    %v1063 = vmul.f32 %v727, %v942
    %v1064 = vmul.f32 %v728, %v942
    %v1065 = vmul.f32 %v729, %v942
    %v1066 = vmul.f32 %v730, %v942
    %v1067 = vmul.f32 %v731, %v942
    %v1068 = vmul.f32 %v732, %v942
    %v1069 = vmul.f32 %v733, %v942
    %v1070 = vmul.f32 %v734, %v942
    %v1071 = vmul.f32 %v735, %v946
    %v1072 = vmul.f32 %v736, %v946
    %v1073 = vmul.f32 %v737, %v946
    %v1074 = vmul.f32 %v738, %v946
    %v1075 = vmul.f32 %v739, %v946
    %v1076 = vmul.f32 %v740, %v946
    %v1077 = vmul.f32 %v741, %v946
    %v1078 = vmul.f32 %v742, %v946
    %v1079 = vmul.f32 %v743, %v946
    %v1080 = vmul.f32 %v744, %v946
    %v1081 = vmul.f32 %v745, %v946
    %v1082 = vmul.f32 %v746, %v946
    %v1083 = vmul.f32 %v747, %v946
    %v1084 = vmul.f32 %v748, %v946
    %v1085 = vmul.f32 %v749, %v946
    %v1086 = vmul.f32 %v750, %v946
    %v1087 = vmul.f32 %v751, %v950
    %v1088 = vmul.f32 %v752, %v950
    %v1089 = vmul.f32 %v753, %v950
    %v1090 = vmul.f32 %v754, %v950
    %v1091 = vmul.f32 %v755, %v950
    %v1092 = vmul.f32 %v756, %v950
    %v1093 = vmul.f32 %v757, %v950
    %v1094 = vmul.f32 %v758, %v950
    %v1095 = vmul.f32 %v759, %v950
    %v1096 = vmul.f32 %v760, %v950
    %v1097 = vmul.f32 %v761, %v950
    %v1098 = vmul.f32 %v762, %v950
    %v1099 = vmul.f32 %v763, %v950
    %v1100 = vmul.f32 %v764, %v950
    %v1101 = vmul.f32 %v765, %v950
    %v1102 = vmul.f32 %v766, %v950
    %v1103 = vmul.f32 %v767, %v954
    %v1104 = vmul.f32 %v768, %v954
    %v1105 = vmul.f32 %v769, %v954
    %v1106 = vmul.f32 %v770, %v954
    %v1107 = vmul.f32 %v771, %v954
    %v1108 = vmul.f32 %v772, %v954
    %v1109 = vmul.f32 %v773, %v954
    %v1110 = vmul.f32 %v774, %v954
    %v1111 = vmul.f32 %v775, %v954
    %v1112 = vmul.f32 %v776, %v954
    %v1113 = vmul.f32 %v777, %v954
    %v1114 = vmul.f32 %v778, %v954
    %v1115 = vmul.f32 %v779, %v954
    %v1116 = vmul.f32 %v780, %v954
    %v1117 = vmul.f32 %v781, %v954
    %v1118 = vmul.f32 %v782, %v954
    %v1119 = vmul.f32 %v783, %v958
    %v1120 = vmul.f32 %v784, %v958
    %v1121 = vmul.f32 %v785, %v958
    %v1122 = vmul.f32 %v786, %v958
    %v1123 = vmul.f32 %v787, %v958
    %v1124 = vmul.f32 %v788, %v958
    %v1125 = vmul.f32 %v789, %v958
    %v1126 = vmul.f32 %v790, %v958
    %v1127 = vmul.f32 %v791, %v958
    %v1128 = vmul.f32 %v792, %v958
    %v1129 = vmul.f32 %v793, %v958
    %v1130 = vmul.f32 %v794, %v958
    %v1131 = vmul.f32 %v795, %v958
    %v1132 = vmul.f32 %v796, %v958
    %v1133 = vmul.f32 %v797, %v958
    %v1134 = vmul.f32 %v798, %v958
    %v1135 = vmul.f32 %v799, %v962
    %v1136 = vmul.f32 %v800, %v962
    %v1137 = vmul.f32 %v801, %v962
    %v1138 = vmul.f32 %v802, %v962
    %v1139 = vmul.f32 %v803, %v962
    %v1140 = vmul.f32 %v804, %v962
    %v1141 = vmul.f32 %v805, %v962
    %v1142 = vmul.f32 %v806, %v962
    %v1143 = vmul.f32 %v807, %v962
    %v1144 = vmul.f32 %v808, %v962
    %v1145 = vmul.f32 %v809, %v962
    %v1146 = vmul.f32 %v810, %v962
    %v1147 = vmul.f32 %v811, %v962
    %v1148 = vmul.f32 %v812, %v962
    %v1149 = vmul.f32 %v813, %v962
    %v1150 = vmul.f32 %v814, %v962
    %v1151 = vmul.f32 %v815, %v966
    %v1152 = vmul.f32 %v816, %v966
    %v1153 = vmul.f32 %v817, %v966
    %v1154 = vmul.f32 %v818, %v966
    %v1155 = vmul.f32 %v819, %v966
    %v1156 = vmul.f32 %v820, %v966
    %v1157 = vmul.f32 %v821, %v966
    %v1158 = vmul.f32 %v822, %v966
    %v1159 = vmul.f32 %v823, %v966
    %v1160 = vmul.f32 %v824, %v966
    %v1161 = vmul.f32 %v825, %v966
    %v1162 = vmul.f32 %v826, %v966
    %v1163 = vmul.f32 %v827, %v966
    %v1164 = vmul.f32 %v828, %v966
    %v1165 = vmul.f32 %v829, %v966
    %v1166 = vmul.f32 %v830, %v966
    %v1167 = vmul.f32 %v831, %v970
    %v1168 = vmul.f32 %v832, %v970
    %v1169 = vmul.f32 %v833, %v970
    %v1170 = vmul.f32 %v834, %v970
    %v1171 = vmul.f32 %v835, %v970
    %v1172 = vmul.f32 %v836, %v970
    %v1173 = vmul.f32 %v837, %v970
    %v1174 = vmul.f32 %v838, %v970
    %v1175 = vmul.f32 %v839, %v970
    %v1176 = vmul.f32 %v840, %v970
    %v1177 = vmul.f32 %v841, %v970
    %v1178 = vmul.f32 %v842, %v970
    %v1179 = vmul.f32 %v843, %v970
    %v1180 = vmul.f32 %v844, %v970
    %v1181 = vmul.f32 %v845, %v970
    %v1182 = vmul.f32 %v846, %v970
    %v1183 = vmul.f32 %v847, %v974
    %v1184 = vmul.f32 %v848, %v974
    %v1185 = vmul.f32 %v849, %v974
    %v1186 = vmul.f32 %v850, %v974
    %v1187 = vmul.f32 %v851, %v974
    %v1188 = vmul.f32 %v852, %v974
    %v1189 = vmul.f32 %v853, %v974
    %v1190 = vmul.f32 %v854, %v974
    %v1191 = vmul.f32 %v855, %v974
    %v1192 = vmul.f32 %v856, %v974
    %v1193 = vmul.f32 %v857, %v974
    %v1194 = vmul.f32 %v858, %v974
    %v1195 = vmul.f32 %v859, %v974
    %v1196 = vmul.f32 %v860, %v974
    %v1197 = vmul.f32 %v861, %v974
    %v1198 = vmul.f32 %v862, %v974
    %v1199 = vmul.f32 %v863, %v978
    %v1200 = vmul.f32 %v864, %v978
    %v1201 = vmul.f32 %v865, %v978
    %v1202 = vmul.f32 %v866, %v978
    %v1203 = vmul.f32 %v867, %v978
    %v1204 = vmul.f32 %v868, %v978
    %v1205 = vmul.f32 %v869, %v978
    %v1206 = vmul.f32 %v870, %v978
    %v1207 = vmul.f32 %v871, %v978
    %v1208 = vmul.f32 %v872, %v978
    %v1209 = vmul.f32 %v873, %v978
    %v1210 = vmul.f32 %v874, %v978
    %v1211 = vmul.f32 %v875, %v978
    %v1212 = vmul.f32 %v876, %v978
    %v1213 = vmul.f32 %v877, %v978
    %v1214 = vmul.f32 %v878, %v978
    %v1215 = vmul.f32 %v879, %v982
    %v1216 = vmul.f32 %v880, %v982
    %v1217 = vmul.f32 %v881, %v982
    %v1218 = vmul.f32 %v882, %v982
    %v1219 = vmul.f32 %v883, %v982
    %v1220 = vmul.f32 %v884, %v982
    %v1221 = vmul.f32 %v885, %v982
    %v1222 = vmul.f32 %v886, %v982
    %v1223 = vmul.f32 %v887, %v982
    %v1224 = vmul.f32 %v888, %v982
    %v1225 = vmul.f32 %v889, %v982
    %v1226 = vmul.f32 %v890, %v982
    %v1227 = vmul.f32 %v891, %v982
    %v1228 = vmul.f32 %v892, %v982
    %v1229 = vmul.f32 %v893, %v982
    %v1230 = vmul.f32 %v894, %v982
    %v1231 = vmul.f32 %v895, %v986
    %v1232 = vmul.f32 %v896, %v986
    %v1233 = vmul.f32 %v897, %v986
    %v1234 = vmul.f32 %v898, %v986
    %v1235 = vmul.f32 %v899, %v986
    %v1236 = vmul.f32 %v900, %v986
    %v1237 = vmul.f32 %v901, %v986
    %v1238 = vmul.f32 %v902, %v986
    %v1239 = vmul.f32 %v903, %v986
    %v1240 = vmul.f32 %v904, %v986
    %v1241 = vmul.f32 %v905, %v986
    %v1242 = vmul.f32 %v906, %v986
    %v1243 = vmul.f32 %v907, %v986
    %v1244 = vmul.f32 %v908, %v986
    %v1245 = vmul.f32 %v909, %v986
    %v1246 = vmul.f32 %v910, %v986
    %v1247 = vmul.f32 %v911, %v990
    %v1248 = vmul.f32 %v912, %v990
    %v1249 = vmul.f32 %v913, %v990
    %v1250 = vmul.f32 %v914, %v990
    %v1251 = vmul.f32 %v915, %v990
    %v1252 = vmul.f32 %v916, %v990
    %v1253 = vmul.f32 %v917, %v990
    %v1254 = vmul.f32 %v918, %v990
    %v1255 = vmul.f32 %v919, %v990
    %v1256 = vmul.f32 %v920, %v990
    %v1257 = vmul.f32 %v921, %v990
    %v1258 = vmul.f32 %v922, %v990
    %v1259 = vmul.f32 %v923, %v990
    %v1260 = vmul.f32 %v924, %v990
    %v1261 = vmul.f32 %v925, %v990
    %v1262 = vmul.f32 %v926, %v990
    %1263 = vadd.xlane.f32.xlu0 %v1007
    %v1264 = vpop.xlane.xlu0 %1263
    %1265 = vadd.xlane.f32.xlu0 %v1008
    %v1266 = vpop.xlane.xlu0 %1265
    %1267 = vadd.xlane.f32.xlu0 %v1009
    %v1268 = vpop.xlane.xlu0 %1267
    %1269 = vadd.xlane.f32.xlu0 %v1010
    %v1270 = vpop.xlane.xlu0 %1269
    %1271 = vadd.xlane.f32.xlu0 %v1011
    %v1272 = vpop.xlane.xlu0 %1271
    %1273 = vadd.xlane.f32.xlu0 %v1012
    %v1274 = vpop.xlane.xlu0 %1273
    %1275 = vadd.xlane.f32.xlu0 %v1013
    %v1276 = vpop.xlane.xlu0 %1275
    %1277 = vadd.xlane.f32.xlu0 %v1014
    %v1278 = vpop.xlane.xlu0 %1277
    %1279 = vadd.xlane.f32.xlu0 %v1015
    %v1280 = vpop.xlane.xlu0 %1279
    %1281 = vadd.xlane.f32.xlu0 %v1016
    %v1282 = vpop.xlane.xlu0 %1281
    %1283 = vadd.xlane.f32.xlu0 %v1017
    %v1284 = vpop.xlane.xlu0 %1283
    %1285 = vadd.xlane.f32.xlu0 %v1018
    %v1286 = vpop.xlane.xlu0 %1285
    %1287 = vadd.xlane.f32.xlu0 %v1019
    %v1288 = vpop.xlane.xlu0 %1287
    %1289 = vadd.xlane.f32.xlu0 %v1020
    %v1290 = vpop.xlane.xlu0 %1289
    %1291 = vadd.xlane.f32.xlu0 %v1021
    %v1292 = vpop.xlane.xlu0 %1291
    %1293 = vadd.xlane.f32.xlu0 %v1022
    %v1294 = vpop.xlane.xlu0 %1293
    %1295 = vadd.xlane.f32.xlu0 %v1023
    %v1296 = vpop.xlane.xlu0 %1295
    %1297 = vadd.xlane.f32.xlu0 %v1024
    %v1298 = vpop.xlane.xlu0 %1297
    %1299 = vadd.xlane.f32.xlu0 %v1025
    %v1300 = vpop.xlane.xlu0 %1299
    %1301 = vadd.xlane.f32.xlu0 %v1026
    %v1302 = vpop.xlane.xlu0 %1301
    %1303 = vadd.xlane.f32.xlu0 %v1027
    %v1304 = vpop.xlane.xlu0 %1303
    %1305 = vadd.xlane.f32.xlu0 %v1028
    %v1306 = vpop.xlane.xlu0 %1305
    %1307 = vadd.xlane.f32.xlu0 %v1029
    %v1308 = vpop.xlane.xlu0 %1307
    %1309 = vadd.xlane.f32.xlu0 %v1030
    %v1310 = vpop.xlane.xlu0 %1309
    %1311 = vadd.xlane.f32.xlu0 %v1031
    %v1312 = vpop.xlane.xlu0 %1311
    %1313 = vadd.xlane.f32.xlu0 %v1032
    %v1314 = vpop.xlane.xlu0 %1313
    %1315 = vadd.xlane.f32.xlu0 %v1033
    %v1316 = vpop.xlane.xlu0 %1315
    %1317 = vadd.xlane.f32.xlu0 %v1034
    %v1318 = vpop.xlane.xlu0 %1317
    %1319 = vadd.xlane.f32.xlu0 %v1035
    %v1320 = vpop.xlane.xlu0 %1319
    %1321 = vadd.xlane.f32.xlu0 %v1036
    %v1322 = vpop.xlane.xlu0 %1321
    %1323 = vadd.xlane.f32.xlu0 %v1037
    %v1324 = vpop.xlane.xlu0 %1323
    %1325 = vadd.xlane.f32.xlu0 %v1038
    %v1326 = vpop.xlane.xlu0 %1325
    %1327 = vadd.xlane.f32.xlu0 %v1039
    %v1328 = vpop.xlane.xlu0 %1327
    %1329 = vadd.xlane.f32.xlu0 %v1040
    %v1330 = vpop.xlane.xlu0 %1329
    %1331 = vadd.xlane.f32.xlu0 %v1041
    %v1332 = vpop.xlane.xlu0 %1331
    %1333 = vadd.xlane.f32.xlu0 %v1042
    %v1334 = vpop.xlane.xlu0 %1333
    %1335 = vadd.xlane.f32.xlu0 %v1043
    %v1336 = vpop.xlane.xlu0 %1335
    %1337 = vadd.xlane.f32.xlu0 %v1044
    %v1338 = vpop.xlane.xlu0 %1337
    %1339 = vadd.xlane.f32.xlu0 %v1045
    %v1340 = vpop.xlane.xlu0 %1339
    %1341 = vadd.xlane.f32.xlu0 %v1046
    %v1342 = vpop.xlane.xlu0 %1341
    %1343 = vadd.xlane.f32.xlu0 %v1047
    %v1344 = vpop.xlane.xlu0 %1343
    %1345 = vadd.xlane.f32.xlu0 %v1048
    %v1346 = vpop.xlane.xlu0 %1345
    %1347 = vadd.xlane.f32.xlu0 %v1049
    %v1348 = vpop.xlane.xlu0 %1347
    %1349 = vadd.xlane.f32.xlu0 %v1050
    %v1350 = vpop.xlane.xlu0 %1349
    %1351 = vadd.xlane.f32.xlu0 %v1051
    %v1352 = vpop.xlane.xlu0 %1351
    %1353 = vadd.xlane.f32.xlu0 %v1052
    %v1354 = vpop.xlane.xlu0 %1353
    %1355 = vadd.xlane.f32.xlu0 %v1053
    %v1356 = vpop.xlane.xlu0 %1355
    %1357 = vadd.xlane.f32.xlu0 %v1054
    %v1358 = vpop.xlane.xlu0 %1357
    %1359 = vadd.xlane.f32.xlu0 %v1055
    %v1360 = vpop.xlane.xlu0 %1359
    %1361 = vadd.xlane.f32.xlu0 %v1056
    %v1362 = vpop.xlane.xlu0 %1361
    %1363 = vadd.xlane.f32.xlu0 %v1057
    %v1364 = vpop.xlane.xlu0 %1363
    %1365 = vadd.xlane.f32.xlu0 %v1058
    %v1366 = vpop.xlane.xlu0 %1365
    %1367 = vadd.xlane.f32.xlu0 %v1059
    %v1368 = vpop.xlane.xlu0 %1367
    %1369 = vadd.xlane.f32.xlu0 %v1060
    %v1370 = vpop.xlane.xlu0 %1369
    %1371 = vadd.xlane.f32.xlu0 %v1061
    %v1372 = vpop.xlane.xlu0 %1371
    %1373 = vadd.xlane.f32.xlu0 %v1062
    %v1374 = vpop.xlane.xlu0 %1373
    %1375 = vadd.xlane.f32.xlu0 %v1063
    %v1376 = vpop.xlane.xlu0 %1375
    %1377 = vadd.xlane.f32.xlu0 %v1064
    %v1378 = vpop.xlane.xlu0 %1377
    %1379 = vadd.xlane.f32.xlu0 %v1065
    %v1380 = vpop.xlane.xlu0 %1379
    %1381 = vadd.xlane.f32.xlu0 %v1066
    %v1382 = vpop.xlane.xlu0 %1381
    %1383 = vadd.xlane.f32.xlu0 %v1067
    %v1384 = vpop.xlane.xlu0 %1383
    %1385 = vadd.xlane.f32.xlu0 %v1068
    %v1386 = vpop.xlane.xlu0 %1385
    %1387 = vadd.xlane.f32.xlu0 %v1069
    %v1388 = vpop.xlane.xlu0 %1387
    %1389 = vadd.xlane.f32.xlu0 %v1070
    %v1390 = vpop.xlane.xlu0 %1389
    %1391 = vadd.xlane.f32.xlu0 %v1071
    %v1392 = vpop.xlane.xlu0 %1391
    %1393 = vadd.xlane.f32.xlu0 %v1072
    %v1394 = vpop.xlane.xlu0 %1393
    %1395 = vadd.xlane.f32.xlu0 %v1073
    %v1396 = vpop.xlane.xlu0 %1395
    %1397 = vadd.xlane.f32.xlu0 %v1074
    %v1398 = vpop.xlane.xlu0 %1397
    %1399 = vadd.xlane.f32.xlu0 %v1075
    %v1400 = vpop.xlane.xlu0 %1399
    %1401 = vadd.xlane.f32.xlu0 %v1076
    %v1402 = vpop.xlane.xlu0 %1401
    %1403 = vadd.xlane.f32.xlu0 %v1077
    %v1404 = vpop.xlane.xlu0 %1403
    %1405 = vadd.xlane.f32.xlu0 %v1078
    %v1406 = vpop.xlane.xlu0 %1405
    %1407 = vadd.xlane.f32.xlu0 %v1079
    %v1408 = vpop.xlane.xlu0 %1407
    %1409 = vadd.xlane.f32.xlu0 %v1080
    %v1410 = vpop.xlane.xlu0 %1409
    %1411 = vadd.xlane.f32.xlu0 %v1081
    %v1412 = vpop.xlane.xlu0 %1411
    %1413 = vadd.xlane.f32.xlu0 %v1082
    %v1414 = vpop.xlane.xlu0 %1413
    %1415 = vadd.xlane.f32.xlu0 %v1083
    %v1416 = vpop.xlane.xlu0 %1415
    %1417 = vadd.xlane.f32.xlu0 %v1084
    %v1418 = vpop.xlane.xlu0 %1417
    %1419 = vadd.xlane.f32.xlu0 %v1085
    %v1420 = vpop.xlane.xlu0 %1419
    %1421 = vadd.xlane.f32.xlu0 %v1086
    %v1422 = vpop.xlane.xlu0 %1421
    %1423 = vadd.xlane.f32.xlu0 %v1087
    %v1424 = vpop.xlane.xlu0 %1423
    %1425 = vadd.xlane.f32.xlu0 %v1088
    %v1426 = vpop.xlane.xlu0 %1425
    %1427 = vadd.xlane.f32.xlu0 %v1089
    %v1428 = vpop.xlane.xlu0 %1427
    %1429 = vadd.xlane.f32.xlu0 %v1090
    %v1430 = vpop.xlane.xlu0 %1429
    %1431 = vadd.xlane.f32.xlu0 %v1091
    %v1432 = vpop.xlane.xlu0 %1431
    %1433 = vadd.xlane.f32.xlu0 %v1092
    %v1434 = vpop.xlane.xlu0 %1433
    %1435 = vadd.xlane.f32.xlu0 %v1093
    %v1436 = vpop.xlane.xlu0 %1435
    %1437 = vadd.xlane.f32.xlu0 %v1094
    %v1438 = vpop.xlane.xlu0 %1437
    %1439 = vadd.xlane.f32.xlu0 %v1095
    %v1440 = vpop.xlane.xlu0 %1439
    %1441 = vadd.xlane.f32.xlu0 %v1096
    %v1442 = vpop.xlane.xlu0 %1441
    %1443 = vadd.xlane.f32.xlu0 %v1097
    %v1444 = vpop.xlane.xlu0 %1443
    %1445 = vadd.xlane.f32.xlu0 %v1098
    %v1446 = vpop.xlane.xlu0 %1445
    %1447 = vadd.xlane.f32.xlu0 %v1099
    %v1448 = vpop.xlane.xlu0 %1447
    %1449 = vadd.xlane.f32.xlu0 %v1100
    %v1450 = vpop.xlane.xlu0 %1449
    %1451 = vadd.xlane.f32.xlu0 %v1101
    %v1452 = vpop.xlane.xlu0 %1451
    %1453 = vadd.xlane.f32.xlu0 %v1102
    %v1454 = vpop.xlane.xlu0 %1453
    %1455 = vadd.xlane.f32.xlu0 %v1103
    %v1456 = vpop.xlane.xlu0 %1455
    %1457 = vadd.xlane.f32.xlu0 %v1104
    %v1458 = vpop.xlane.xlu0 %1457
    %1459 = vadd.xlane.f32.xlu0 %v1105
    %v1460 = vpop.xlane.xlu0 %1459
    %1461 = vadd.xlane.f32.xlu0 %v1106
    %v1462 = vpop.xlane.xlu0 %1461
    %1463 = vadd.xlane.f32.xlu0 %v1107
    %v1464 = vpop.xlane.xlu0 %1463
    %1465 = vadd.xlane.f32.xlu0 %v1108
    %v1466 = vpop.xlane.xlu0 %1465
    %1467 = vadd.xlane.f32.xlu0 %v1109
    %v1468 = vpop.xlane.xlu0 %1467
    %1469 = vadd.xlane.f32.xlu0 %v1110
    %v1470 = vpop.xlane.xlu0 %1469
    %1471 = vadd.xlane.f32.xlu0 %v1111
    %v1472 = vpop.xlane.xlu0 %1471
    %1473 = vadd.xlane.f32.xlu0 %v1112
    %v1474 = vpop.xlane.xlu0 %1473
    %1475 = vadd.xlane.f32.xlu0 %v1113
    %v1476 = vpop.xlane.xlu0 %1475
    %1477 = vadd.xlane.f32.xlu0 %v1114
    %v1478 = vpop.xlane.xlu0 %1477
    %1479 = vadd.xlane.f32.xlu0 %v1115
    %v1480 = vpop.xlane.xlu0 %1479
    %1481 = vadd.xlane.f32.xlu0 %v1116
    %v1482 = vpop.xlane.xlu0 %1481
    %1483 = vadd.xlane.f32.xlu0 %v1117
    %v1484 = vpop.xlane.xlu0 %1483
    %1485 = vadd.xlane.f32.xlu0 %v1118
    %v1486 = vpop.xlane.xlu0 %1485
    %1487 = vadd.xlane.f32.xlu0 %v1119
    %v1488 = vpop.xlane.xlu0 %1487
    %1489 = vadd.xlane.f32.xlu0 %v1120
    %v1490 = vpop.xlane.xlu0 %1489
    %1491 = vadd.xlane.f32.xlu0 %v1121
    %v1492 = vpop.xlane.xlu0 %1491
    %1493 = vadd.xlane.f32.xlu0 %v1122
    %v1494 = vpop.xlane.xlu0 %1493
    %1495 = vadd.xlane.f32.xlu0 %v1123
    %v1496 = vpop.xlane.xlu0 %1495
    %1497 = vadd.xlane.f32.xlu0 %v1124
    %v1498 = vpop.xlane.xlu0 %1497
    %1499 = vadd.xlane.f32.xlu0 %v1125
    %v1500 = vpop.xlane.xlu0 %1499
    %1501 = vadd.xlane.f32.xlu0 %v1126
    %v1502 = vpop.xlane.xlu0 %1501
    %1503 = vadd.xlane.f32.xlu0 %v1127
    %v1504 = vpop.xlane.xlu0 %1503
    %1505 = vadd.xlane.f32.xlu0 %v1128
    %v1506 = vpop.xlane.xlu0 %1505
    %1507 = vadd.xlane.f32.xlu0 %v1129
    %v1508 = vpop.xlane.xlu0 %1507
    %1509 = vadd.xlane.f32.xlu0 %v1130
    %v1510 = vpop.xlane.xlu0 %1509
    %1511 = vadd.xlane.f32.xlu0 %v1131
    %v1512 = vpop.xlane.xlu0 %1511
    %1513 = vadd.xlane.f32.xlu0 %v1132
    %v1514 = vpop.xlane.xlu0 %1513
    %1515 = vadd.xlane.f32.xlu0 %v1133
    %v1516 = vpop.xlane.xlu0 %1515
    %1517 = vadd.xlane.f32.xlu0 %v1134
    %v1518 = vpop.xlane.xlu0 %1517
    %1519 = vadd.xlane.f32.xlu0 %v1135
    %v1520 = vpop.xlane.xlu0 %1519
    %1521 = vadd.xlane.f32.xlu0 %v1136
    %v1522 = vpop.xlane.xlu0 %1521
    %1523 = vadd.xlane.f32.xlu0 %v1137
    %v1524 = vpop.xlane.xlu0 %1523
    %1525 = vadd.xlane.f32.xlu0 %v1138
    %v1526 = vpop.xlane.xlu0 %1525
    %1527 = vadd.xlane.f32.xlu0 %v1139
    %v1528 = vpop.xlane.xlu0 %1527
    %1529 = vadd.xlane.f32.xlu0 %v1140
    %v1530 = vpop.xlane.xlu0 %1529
    %1531 = vadd.xlane.f32.xlu0 %v1141
    %v1532 = vpop.xlane.xlu0 %1531
    %1533 = vadd.xlane.f32.xlu0 %v1142
    %v1534 = vpop.xlane.xlu0 %1533
    %1535 = vadd.xlane.f32.xlu0 %v1143
    %v1536 = vpop.xlane.xlu0 %1535
    %1537 = vadd.xlane.f32.xlu0 %v1144
    %v1538 = vpop.xlane.xlu0 %1537
    %1539 = vadd.xlane.f32.xlu0 %v1145
    %v1540 = vpop.xlane.xlu0 %1539
    %1541 = vadd.xlane.f32.xlu0 %v1146
    %v1542 = vpop.xlane.xlu0 %1541
    %1543 = vadd.xlane.f32.xlu0 %v1147
    %v1544 = vpop.xlane.xlu0 %1543
    %1545 = vadd.xlane.f32.xlu0 %v1148
    %v1546 = vpop.xlane.xlu0 %1545
    %1547 = vadd.xlane.f32.xlu0 %v1149
    %v1548 = vpop.xlane.xlu0 %1547
    %1549 = vadd.xlane.f32.xlu0 %v1150
    %v1550 = vpop.xlane.xlu0 %1549
    %1551 = vadd.xlane.f32.xlu0 %v1151
    %v1552 = vpop.xlane.xlu0 %1551
    %1553 = vadd.xlane.f32.xlu0 %v1152
    %v1554 = vpop.xlane.xlu0 %1553
    %1555 = vadd.xlane.f32.xlu0 %v1153
    %v1556 = vpop.xlane.xlu0 %1555
    %1557 = vadd.xlane.f32.xlu0 %v1154
    %v1558 = vpop.xlane.xlu0 %1557
    %1559 = vadd.xlane.f32.xlu0 %v1155
    %v1560 = vpop.xlane.xlu0 %1559
    %1561 = vadd.xlane.f32.xlu0 %v1156
    %v1562 = vpop.xlane.xlu0 %1561
    %1563 = vadd.xlane.f32.xlu0 %v1157
    %v1564 = vpop.xlane.xlu0 %1563
    %1565 = vadd.xlane.f32.xlu0 %v1158
    %v1566 = vpop.xlane.xlu0 %1565
    %1567 = vadd.xlane.f32.xlu0 %v1159
    %v1568 = vpop.xlane.xlu0 %1567
    %1569 = vadd.xlane.f32.xlu0 %v1160
    %v1570 = vpop.xlane.xlu0 %1569
    %1571 = vadd.xlane.f32.xlu0 %v1161
    %v1572 = vpop.xlane.xlu0 %1571
    %1573 = vadd.xlane.f32.xlu0 %v1162
    %v1574 = vpop.xlane.xlu0 %1573
    %1575 = vadd.xlane.f32.xlu0 %v1163
    %v1576 = vpop.xlane.xlu0 %1575
    %1577 = vadd.xlane.f32.xlu0 %v1164
    %v1578 = vpop.xlane.xlu0 %1577
    %1579 = vadd.xlane.f32.xlu0 %v1165
    %v1580 = vpop.xlane.xlu0 %1579
    %1581 = vadd.xlane.f32.xlu0 %v1166
    %v1582 = vpop.xlane.xlu0 %1581
    %1583 = vadd.xlane.f32.xlu0 %v1167
    %v1584 = vpop.xlane.xlu0 %1583
    %1585 = vadd.xlane.f32.xlu0 %v1168
    %v1586 = vpop.xlane.xlu0 %1585
    %1587 = vadd.xlane.f32.xlu0 %v1169
    %v1588 = vpop.xlane.xlu0 %1587
    %1589 = vadd.xlane.f32.xlu0 %v1170
    %v1590 = vpop.xlane.xlu0 %1589
    %1591 = vadd.xlane.f32.xlu0 %v1171
    %v1592 = vpop.xlane.xlu0 %1591
    %1593 = vadd.xlane.f32.xlu0 %v1172
    %v1594 = vpop.xlane.xlu0 %1593
    %1595 = vadd.xlane.f32.xlu0 %v1173
    %v1596 = vpop.xlane.xlu0 %1595
    %1597 = vadd.xlane.f32.xlu0 %v1174
    %v1598 = vpop.xlane.xlu0 %1597
    %1599 = vadd.xlane.f32.xlu0 %v1175
    %v1600 = vpop.xlane.xlu0 %1599
    %1601 = vadd.xlane.f32.xlu0 %v1176
    %v1602 = vpop.xlane.xlu0 %1601
    %1603 = vadd.xlane.f32.xlu0 %v1177
    %v1604 = vpop.xlane.xlu0 %1603
    %1605 = vadd.xlane.f32.xlu0 %v1178
    %v1606 = vpop.xlane.xlu0 %1605
    %1607 = vadd.xlane.f32.xlu0 %v1179
    %v1608 = vpop.xlane.xlu0 %1607
    %1609 = vadd.xlane.f32.xlu0 %v1180
    %v1610 = vpop.xlane.xlu0 %1609
    %1611 = vadd.xlane.f32.xlu0 %v1181
    %v1612 = vpop.xlane.xlu0 %1611
    %1613 = vadd.xlane.f32.xlu0 %v1182
    %v1614 = vpop.xlane.xlu0 %1613
    %1615 = vadd.xlane.f32.xlu0 %v1183
    %v1616 = vpop.xlane.xlu0 %1615
    %1617 = vadd.xlane.f32.xlu0 %v1184
    %v1618 = vpop.xlane.xlu0 %1617
    %1619 = vadd.xlane.f32.xlu0 %v1185
    %v1620 = vpop.xlane.xlu0 %1619
    %1621 = vadd.xlane.f32.xlu0 %v1186
    %v1622 = vpop.xlane.xlu0 %1621
    %1623 = vadd.xlane.f32.xlu0 %v1187
    %v1624 = vpop.xlane.xlu0 %1623
    %1625 = vadd.xlane.f32.xlu0 %v1188
    %v1626 = vpop.xlane.xlu0 %1625
    %1627 = vadd.xlane.f32.xlu0 %v1189
    %v1628 = vpop.xlane.xlu0 %1627
    %1629 = vadd.xlane.f32.xlu0 %v1190
    %v1630 = vpop.xlane.xlu0 %1629
    %1631 = vadd.xlane.f32.xlu0 %v1191
    %v1632 = vpop.xlane.xlu0 %1631
    %1633 = vadd.xlane.f32.xlu0 %v1192
    %v1634 = vpop.xlane.xlu0 %1633
    %1635 = vadd.xlane.f32.xlu0 %v1193
    %v1636 = vpop.xlane.xlu0 %1635
    %1637 = vadd.xlane.f32.xlu0 %v1194
    %v1638 = vpop.xlane.xlu0 %1637
    %1639 = vadd.xlane.f32.xlu0 %v1195
    %v1640 = vpop.xlane.xlu0 %1639
    %1641 = vadd.xlane.f32.xlu0 %v1196
    %v1642 = vpop.xlane.xlu0 %1641
    %1643 = vadd.xlane.f32.xlu0 %v1197
    %v1644 = vpop.xlane.xlu0 %1643
    %1645 = vadd.xlane.f32.xlu0 %v1198
    %v1646 = vpop.xlane.xlu0 %1645
    %1647 = vadd.xlane.f32.xlu0 %v1199
    %v1648 = vpop.xlane.xlu0 %1647
    %1649 = vadd.xlane.f32.xlu0 %v1200
    %v1650 = vpop.xlane.xlu0 %1649
    %1651 = vadd.xlane.f32.xlu0 %v1201
    %v1652 = vpop.xlane.xlu0 %1651
    %1653 = vadd.xlane.f32.xlu0 %v1202
    %v1654 = vpop.xlane.xlu0 %1653
    %1655 = vadd.xlane.f32.xlu0 %v1203
    %v1656 = vpop.xlane.xlu0 %1655
    %1657 = vadd.xlane.f32.xlu0 %v1204
    %v1658 = vpop.xlane.xlu0 %1657
    %1659 = vadd.xlane.f32.xlu0 %v1205
    %v1660 = vpop.xlane.xlu0 %1659
    %1661 = vadd.xlane.f32.xlu0 %v1206
    %v1662 = vpop.xlane.xlu0 %1661
    %1663 = vadd.xlane.f32.xlu0 %v1207
    %v1664 = vpop.xlane.xlu0 %1663
    %1665 = vadd.xlane.f32.xlu0 %v1208
    %v1666 = vpop.xlane.xlu0 %1665
    %1667 = vadd.xlane.f32.xlu0 %v1209
    %v1668 = vpop.xlane.xlu0 %1667
    %1669 = vadd.xlane.f32.xlu0 %v1210
    %v1670 = vpop.xlane.xlu0 %1669
    %1671 = vadd.xlane.f32.xlu0 %v1211
    %v1672 = vpop.xlane.xlu0 %1671
    %1673 = vadd.xlane.f32.xlu0 %v1212
    %v1674 = vpop.xlane.xlu0 %1673
    %1675 = vadd.xlane.f32.xlu0 %v1213
    %v1676 = vpop.xlane.xlu0 %1675
    %1677 = vadd.xlane.f32.xlu0 %v1214
    %v1678 = vpop.xlane.xlu0 %1677
    %1679 = vadd.xlane.f32.xlu0 %v1215
    %v1680 = vpop.xlane.xlu0 %1679
    %1681 = vadd.xlane.f32.xlu0 %v1216
    %v1682 = vpop.xlane.xlu0 %1681
    %1683 = vadd.xlane.f32.xlu0 %v1217
    %v1684 = vpop.xlane.xlu0 %1683
    %1685 = vadd.xlane.f32.xlu0 %v1218
    %v1686 = vpop.xlane.xlu0 %1685
    %1687 = vadd.xlane.f32.xlu0 %v1219
    %v1688 = vpop.xlane.xlu0 %1687
    %1689 = vadd.xlane.f32.xlu0 %v1220
    %v1690 = vpop.xlane.xlu0 %1689
    %1691 = vadd.xlane.f32.xlu0 %v1221
    %v1692 = vpop.xlane.xlu0 %1691
    %1693 = vadd.xlane.f32.xlu0 %v1222
    %v1694 = vpop.xlane.xlu0 %1693
    %1695 = vadd.xlane.f32.xlu0 %v1223
    %v1696 = vpop.xlane.xlu0 %1695
    %1697 = vadd.xlane.f32.xlu0 %v1224
    %v1698 = vpop.xlane.xlu0 %1697
    %1699 = vadd.xlane.f32.xlu0 %v1225
    %v1700 = vpop.xlane.xlu0 %1699
    %1701 = vadd.xlane.f32.xlu0 %v1226
    %v1702 = vpop.xlane.xlu0 %1701
    %1703 = vadd.xlane.f32.xlu0 %v1227
    %v1704 = vpop.xlane.xlu0 %1703
    %1705 = vadd.xlane.f32.xlu0 %v1228
    %v1706 = vpop.xlane.xlu0 %1705
    %1707 = vadd.xlane.f32.xlu0 %v1229
    %v1708 = vpop.xlane.xlu0 %1707
    %1709 = vadd.xlane.f32.xlu0 %v1230
    %v1710 = vpop.xlane.xlu0 %1709
    %1711 = vadd.xlane.f32.xlu0 %v1231
    %v1712 = vpop.xlane.xlu0 %1711
    %1713 = vadd.xlane.f32.xlu0 %v1232
    %v1714 = vpop.xlane.xlu0 %1713
    %1715 = vadd.xlane.f32.xlu0 %v1233
    %v1716 = vpop.xlane.xlu0 %1715
    %1717 = vadd.xlane.f32.xlu0 %v1234
    %v1718 = vpop.xlane.xlu0 %1717
    %1719 = vadd.xlane.f32.xlu0 %v1235
    %v1720 = vpop.xlane.xlu0 %1719
    %1721 = vadd.xlane.f32.xlu0 %v1236
    %v1722 = vpop.xlane.xlu0 %1721
    %1723 = vadd.xlane.f32.xlu0 %v1237
    %v1724 = vpop.xlane.xlu0 %1723
    %1725 = vadd.xlane.f32.xlu0 %v1238
    %v1726 = vpop.xlane.xlu0 %1725
    %1727 = vadd.xlane.f32.xlu0 %v1239
    %v1728 = vpop.xlane.xlu0 %1727
    %1729 = vadd.xlane.f32.xlu0 %v1240
    %v1730 = vpop.xlane.xlu0 %1729
    %1731 = vadd.xlane.f32.xlu0 %v1241
    %v1732 = vpop.xlane.xlu0 %1731
    %1733 = vadd.xlane.f32.xlu0 %v1242
    %v1734 = vpop.xlane.xlu0 %1733
    %1735 = vadd.xlane.f32.xlu0 %v1243
    %v1736 = vpop.xlane.xlu0 %1735
    %1737 = vadd.xlane.f32.xlu0 %v1244
    %v1738 = vpop.xlane.xlu0 %1737
    %1739 = vadd.xlane.f32.xlu0 %v1245
    %v1740 = vpop.xlane.xlu0 %1739
    %1741 = vadd.xlane.f32.xlu0 %v1246
    %v1742 = vpop.xlane.xlu0 %1741
    %1743 = vadd.xlane.f32.xlu0 %v1247
    %v1744 = vpop.xlane.xlu0 %1743
    %1745 = vadd.xlane.f32.xlu0 %v1248
    %v1746 = vpop.xlane.xlu0 %1745
    %1747 = vadd.xlane.f32.xlu0 %v1249
    %v1748 = vpop.xlane.xlu0 %1747
    %1749 = vadd.xlane.f32.xlu0 %v1250
    %v1750 = vpop.xlane.xlu0 %1749
    %1751 = vadd.xlane.f32.xlu0 %v1251
    %v1752 = vpop.xlane.xlu0 %1751
    %1753 = vadd.xlane.f32.xlu0 %v1252
    %v1754 = vpop.xlane.xlu0 %1753
    %1755 = vadd.xlane.f32.xlu0 %v1253
    %v1756 = vpop.xlane.xlu0 %1755
    %1757 = vadd.xlane.f32.xlu0 %v1254
    %v1758 = vpop.xlane.xlu0 %1757
    %1759 = vadd.xlane.f32.xlu0 %v1255
    %v1760 = vpop.xlane.xlu0 %1759
    %1761 = vadd.xlane.f32.xlu0 %v1256
    %v1762 = vpop.xlane.xlu0 %1761
    %1763 = vadd.xlane.f32.xlu0 %v1257
    %v1764 = vpop.xlane.xlu0 %1763
    %1765 = vadd.xlane.f32.xlu0 %v1258
    %v1766 = vpop.xlane.xlu0 %1765
    %1767 = vadd.xlane.f32.xlu0 %v1259
    %v1768 = vpop.xlane.xlu0 %1767
    %1769 = vadd.xlane.f32.xlu0 %v1260
    %v1770 = vpop.xlane.xlu0 %1769
    %1771 = vadd.xlane.f32.xlu0 %v1261
    %v1772 = vpop.xlane.xlu0 %1771
    %1773 = vadd.xlane.f32.xlu0 %v1262
    %v1774 = vpop.xlane.xlu0 %1773
    %v2031 = vlaneseq
    %v2032 = vand.u32 %v2031, 127
    %v2033 = vlaneseq
    %v2034 = vshrl.u32 %v2033, 7
    %v2035 = vsub.s32 %v2032, %v2034
    %v2036 = vrot.slane %v1264, %v2035
    %v2037 = vadd.s32 %v2032, 4294967288
    %v2038 = vlaneseq
    %v2039 = vshrl.u32 %v2038, 7
    %v2040 = vsub.s32 %v2037, %v2039
    %v2041 = vrot.slane %v1266, %v2040
    %vm2042 = vcmask 130112
    %v2043 = vsel %vm2042, %v2041, %v2036
    %v2044 = vadd.s32 %v2032, 4294967280
    %v2045 = vlaneseq
    %v2046 = vshrl.u32 %v2045, 7
    %v2047 = vsub.s32 %v2044, %v2046
    %v2048 = vrot.slane %v1268, %v2047
    %vm2049 = vcmask 195712
    %v2050 = vsel %vm2049, %v2048, %v2043
    %v2051 = vadd.s32 %v2032, 4294967272
    %v2052 = vlaneseq
    %v2053 = vshrl.u32 %v2052, 7
    %v2054 = vsub.s32 %v2051, %v2053
    %v2055 = vrot.slane %v1270, %v2054
    %vm2056 = vcmask 261312
    %v2057 = vsel %vm2056, %v2055, %v2050
    %v2058 = vadd.s32 %v2032, 4294967264
    %v2059 = vlaneseq
    %v2060 = vshrl.u32 %v2059, 7
    %v2061 = vsub.s32 %v2058, %v2060
    %v2062 = vrot.slane %v1272, %v2061
    %vm2063 = vcmask 326912
    %v2064 = vsel %vm2063, %v2062, %v2057
    %v2065 = vadd.s32 %v2032, 4294967256
    %v2066 = vlaneseq
    %v2067 = vshrl.u32 %v2066, 7
    %v2068 = vsub.s32 %v2065, %v2067
    %v2069 = vrot.slane %v1274, %v2068
    %vm2070 = vcmask 392512
    %v2071 = vsel %vm2070, %v2069, %v2064
    %v2072 = vadd.s32 %v2032, 4294967248
    %v2073 = vlaneseq
    %v2074 = vshrl.u32 %v2073, 7
    %v2075 = vsub.s32 %v2072, %v2074
    %v2076 = vrot.slane %v1276, %v2075
    %vm2077 = vcmask 458112
    %v2078 = vsel %vm2077, %v2076, %v2071
    %v2079 = vadd.s32 %v2032, 4294967240
    %v2080 = vlaneseq
    %v2081 = vshrl.u32 %v2080, 7
    %v2082 = vsub.s32 %v2079, %v2081
    %v2083 = vrot.slane %v1278, %v2082
    %vm2084 = vcmask 523712
    %v2085 = vsel %vm2084, %v2083, %v2078
    %v2086 = vadd.s32 %v2032, 4294967232
    %v2087 = vlaneseq
    %v2088 = vshrl.u32 %v2087, 7
    %v2089 = vsub.s32 %v2086, %v2088
    %v2090 = vrot.slane %v1280, %v2089
    %vm2091 = vcmask 589312
    %v2092 = vsel %vm2091, %v2090, %v2085
    %v2093 = vadd.s32 %v2032, 4294967224
    %v2094 = vlaneseq
    %v2095 = vshrl.u32 %v2094, 7
    %v2096 = vsub.s32 %v2093, %v2095
    %v2097 = vrot.slane %v1282, %v2096
    %vm2098 = vcmask 654912
    %v2099 = vsel %vm2098, %v2097, %v2092
    %v2100 = vadd.s32 %v2032, 4294967216
    %v2101 = vlaneseq
    %v2102 = vshrl.u32 %v2101, 7
    %v2103 = vsub.s32 %v2100, %v2102
    %v2104 = vrot.slane %v1284, %v2103
    %vm2105 = vcmask 720512
    %v2106 = vsel %vm2105, %v2104, %v2099
    %v2107 = vadd.s32 %v2032, 4294967208
    %v2108 = vlaneseq
    %v2109 = vshrl.u32 %v2108, 7
    %v2110 = vsub.s32 %v2107, %v2109
    %v2111 = vrot.slane %v1286, %v2110
    %vm2112 = vcmask 786112
    %v2113 = vsel %vm2112, %v2111, %v2106
    %v2114 = vadd.s32 %v2032, 4294967200
    %v2115 = vlaneseq
    %v2116 = vshrl.u32 %v2115, 7
    %v2117 = vsub.s32 %v2114, %v2116
    %v2118 = vrot.slane %v1288, %v2117
    %vm2119 = vcmask 851712
    %v2120 = vsel %vm2119, %v2118, %v2113
    %v2121 = vadd.s32 %v2032, 4294967192
    %v2122 = vlaneseq
    %v2123 = vshrl.u32 %v2122, 7
    %v2124 = vsub.s32 %v2121, %v2123
    %v2125 = vrot.slane %v1290, %v2124
    %vm2126 = vcmask 917312
    %v2127 = vsel %vm2126, %v2125, %v2120
    %v2128 = vadd.s32 %v2032, 4294967184
    %v2129 = vlaneseq
    %v2130 = vshrl.u32 %v2129, 7
    %v2131 = vsub.s32 %v2128, %v2130
    %v2132 = vrot.slane %v1292, %v2131
    %vm2133 = vcmask 982912
    %v2134 = vsel %vm2133, %v2132, %v2127
    %v2135 = vadd.s32 %v2032, 4294967176
    %v2136 = vlaneseq
    %v2137 = vshrl.u32 %v2136, 7
    %v2138 = vsub.s32 %v2135, %v2137
    %v2139 = vrot.slane %v1294, %v2138
    %vm2140 = vcmask 1048512
    %v2141 = vsel %vm2140, %v2139, %v2134
    %v2142 = vlaneseq
    %v2143 = vshrl.u32 %v2142, 7
    %v2144 = vsub.s32 %v2032, %v2143
    %v2145 = vrot.slane %v1296, %v2144
    %v2146 = vlaneseq
    %v2147 = vshrl.u32 %v2146, 7
    %v2148 = vsub.s32 %v2037, %v2147
    %v2149 = vrot.slane %v1298, %v2148
    %v2150 = vsel %vm2042, %v2149, %v2145
    %v2151 = vlaneseq
    %v2152 = vshrl.u32 %v2151, 7
    %v2153 = vsub.s32 %v2044, %v2152
    %v2154 = vrot.slane %v1300, %v2153
    %v2155 = vsel %vm2049, %v2154, %v2150
    %v2156 = vlaneseq
    %v2157 = vshrl.u32 %v2156, 7
    %v2158 = vsub.s32 %v2051, %v2157
    %v2159 = vrot.slane %v1302, %v2158
    %v2160 = vsel %vm2056, %v2159, %v2155
    %v2161 = vlaneseq
    %v2162 = vshrl.u32 %v2161, 7
    %v2163 = vsub.s32 %v2058, %v2162
    %v2164 = vrot.slane %v1304, %v2163
    %v2165 = vsel %vm2063, %v2164, %v2160
    %v2166 = vlaneseq
    %v2167 = vshrl.u32 %v2166, 7
    %v2168 = vsub.s32 %v2065, %v2167
    %v2169 = vrot.slane %v1306, %v2168
    %v2170 = vsel %vm2070, %v2169, %v2165
    %v2171 = vlaneseq
    %v2172 = vshrl.u32 %v2171, 7
    %v2173 = vsub.s32 %v2072, %v2172
    %v2174 = vrot.slane %v1308, %v2173
    %v2175 = vsel %vm2077, %v2174, %v2170
    %v2176 = vlaneseq
    %v2177 = vshrl.u32 %v2176, 7
    %v2178 = vsub.s32 %v2079, %v2177
    %v2179 = vrot.slane %v1310, %v2178
    %v2180 = vsel %vm2084, %v2179, %v2175
    %v2181 = vlaneseq
    %v2182 = vshrl.u32 %v2181, 7
    %v2183 = vsub.s32 %v2086, %v2182
    %v2184 = vrot.slane %v1312, %v2183
    %v2185 = vsel %vm2091, %v2184, %v2180
    %v2186 = vlaneseq
    %v2187 = vshrl.u32 %v2186, 7
    %v2188 = vsub.s32 %v2093, %v2187
    %v2189 = vrot.slane %v1314, %v2188
    %v2190 = vsel %vm2098, %v2189, %v2185
    %v2191 = vlaneseq
    %v2192 = vshrl.u32 %v2191, 7
    %v2193 = vsub.s32 %v2100, %v2192
    %v2194 = vrot.slane %v1316, %v2193
    %v2195 = vsel %vm2105, %v2194, %v2190
    %v2196 = vlaneseq
    %v2197 = vshrl.u32 %v2196, 7
    %v2198 = vsub.s32 %v2107, %v2197
    %v2199 = vrot.slane %v1318, %v2198
    %v2200 = vsel %vm2112, %v2199, %v2195
    %v2201 = vlaneseq
    %v2202 = vshrl.u32 %v2201, 7
    %v2203 = vsub.s32 %v2114, %v2202
    %v2204 = vrot.slane %v1320, %v2203
    %v2205 = vsel %vm2119, %v2204, %v2200
    %v2206 = vlaneseq
    %v2207 = vshrl.u32 %v2206, 7
    %v2208 = vsub.s32 %v2121, %v2207
    %v2209 = vrot.slane %v1322, %v2208
    %v2210 = vsel %vm2126, %v2209, %v2205
    %v2211 = vlaneseq
    %v2212 = vshrl.u32 %v2211, 7
    %v2213 = vsub.s32 %v2128, %v2212
    %v2214 = vrot.slane %v1324, %v2213
    %v2215 = vsel %vm2133, %v2214, %v2210
    %v2216 = vlaneseq
    %v2217 = vshrl.u32 %v2216, 7
    %v2218 = vsub.s32 %v2135, %v2217
    %v2219 = vrot.slane %v1326, %v2218
    %v2220 = vsel %vm2140, %v2219, %v2215
    %v2221 = vlaneseq
    %v2222 = vshrl.u32 %v2221, 7
    %v2223 = vsub.s32 %v2032, %v2222
    %v2224 = vrot.slane %v1328, %v2223
    %v2225 = vlaneseq
    %v2226 = vshrl.u32 %v2225, 7
    %v2227 = vsub.s32 %v2037, %v2226
    %v2228 = vrot.slane %v1330, %v2227
    %v2229 = vsel %vm2042, %v2228, %v2224
    %v2230 = vlaneseq
    %v2231 = vshrl.u32 %v2230, 7
    %v2232 = vsub.s32 %v2044, %v2231
    %v2233 = vrot.slane %v1332, %v2232
    %v2234 = vsel %vm2049, %v2233, %v2229
    %v2235 = vlaneseq
    %v2236 = vshrl.u32 %v2235, 7
    %v2237 = vsub.s32 %v2051, %v2236
    %v2238 = vrot.slane %v1334, %v2237
    %v2239 = vsel %vm2056, %v2238, %v2234
    %v2240 = vlaneseq
    %v2241 = vshrl.u32 %v2240, 7
    %v2242 = vsub.s32 %v2058, %v2241
    %v2243 = vrot.slane %v1336, %v2242
    %v2244 = vsel %vm2063, %v2243, %v2239
    %v2245 = vlaneseq
    %v2246 = vshrl.u32 %v2245, 7
    %v2247 = vsub.s32 %v2065, %v2246
    %v2248 = vrot.slane %v1338, %v2247
    %v2249 = vsel %vm2070, %v2248, %v2244
    %v2250 = vlaneseq
    %v2251 = vshrl.u32 %v2250, 7
    %v2252 = vsub.s32 %v2072, %v2251
    %v2253 = vrot.slane %v1340, %v2252
    %v2254 = vsel %vm2077, %v2253, %v2249
    %v2255 = vlaneseq
    %v2256 = vshrl.u32 %v2255, 7
    %v2257 = vsub.s32 %v2079, %v2256
    %v2258 = vrot.slane %v1342, %v2257
    %v2259 = vsel %vm2084, %v2258, %v2254
    %v2260 = vlaneseq
    %v2261 = vshrl.u32 %v2260, 7
    %v2262 = vsub.s32 %v2086, %v2261
    %v2263 = vrot.slane %v1344, %v2262
    %v2264 = vsel %vm2091, %v2263, %v2259
    %v2265 = vlaneseq
    %v2266 = vshrl.u32 %v2265, 7
    %v2267 = vsub.s32 %v2093, %v2266
    %v2268 = vrot.slane %v1346, %v2267
    %v2269 = vsel %vm2098, %v2268, %v2264
    %v2270 = vlaneseq
    %v2271 = vshrl.u32 %v2270, 7
    %v2272 = vsub.s32 %v2100, %v2271
    %v2273 = vrot.slane %v1348, %v2272
    %v2274 = vsel %vm2105, %v2273, %v2269
    %v2275 = vlaneseq
    %v2276 = vshrl.u32 %v2275, 7
    %v2277 = vsub.s32 %v2107, %v2276
    %v2278 = vrot.slane %v1350, %v2277
    %v2279 = vsel %vm2112, %v2278, %v2274
    %v2280 = vlaneseq
    %v2281 = vshrl.u32 %v2280, 7
    %v2282 = vsub.s32 %v2114, %v2281
    %v2283 = vrot.slane %v1352, %v2282
    %v2284 = vsel %vm2119, %v2283, %v2279
    %v2285 = vlaneseq
    %v2286 = vshrl.u32 %v2285, 7
    %v2287 = vsub.s32 %v2121, %v2286
    %v2288 = vrot.slane %v1354, %v2287
    %v2289 = vsel %vm2126, %v2288, %v2284
    %v2290 = vlaneseq
    %v2291 = vshrl.u32 %v2290, 7
    %v2292 = vsub.s32 %v2128, %v2291
    %v2293 = vrot.slane %v1356, %v2292
    %v2294 = vsel %vm2133, %v2293, %v2289
    %v2295 = vlaneseq
    %v2296 = vshrl.u32 %v2295, 7
    %v2297 = vsub.s32 %v2135, %v2296
    %v2298 = vrot.slane %v1358, %v2297
    %v2299 = vsel %vm2140, %v2298, %v2294
    %v2300 = vlaneseq
    %v2301 = vshrl.u32 %v2300, 7
    %v2302 = vsub.s32 %v2032, %v2301
    %v2303 = vrot.slane %v1360, %v2302
    %v2304 = vlaneseq
    %v2305 = vshrl.u32 %v2304, 7
    %v2306 = vsub.s32 %v2037, %v2305
    %v2307 = vrot.slane %v1362, %v2306
    %v2308 = vsel %vm2042, %v2307, %v2303
    %v2309 = vlaneseq
    %v2310 = vshrl.u32 %v2309, 7
    %v2311 = vsub.s32 %v2044, %v2310
    %v2312 = vrot.slane %v1364, %v2311
    %v2313 = vsel %vm2049, %v2312, %v2308
    %v2314 = vlaneseq
    %v2315 = vshrl.u32 %v2314, 7
    %v2316 = vsub.s32 %v2051, %v2315
    %v2317 = vrot.slane %v1366, %v2316
    %v2318 = vsel %vm2056, %v2317, %v2313
    %v2319 = vlaneseq
    %v2320 = vshrl.u32 %v2319, 7
    %v2321 = vsub.s32 %v2058, %v2320
    %v2322 = vrot.slane %v1368, %v2321
    %v2323 = vsel %vm2063, %v2322, %v2318
    %v2324 = vlaneseq
    %v2325 = vshrl.u32 %v2324, 7
    %v2326 = vsub.s32 %v2065, %v2325
    %v2327 = vrot.slane %v1370, %v2326
    %v2328 = vsel %vm2070, %v2327, %v2323
    %v2329 = vlaneseq
    %v2330 = vshrl.u32 %v2329, 7
    %v2331 = vsub.s32 %v2072, %v2330
    %v2332 = vrot.slane %v1372, %v2331
    %v2333 = vsel %vm2077, %v2332, %v2328
    %v2334 = vlaneseq
    %v2335 = vshrl.u32 %v2334, 7
    %v2336 = vsub.s32 %v2079, %v2335
    %v2337 = vrot.slane %v1374, %v2336
    %v2338 = vsel %vm2084, %v2337, %v2333
    %v2339 = vlaneseq
    %v2340 = vshrl.u32 %v2339, 7
    %v2341 = vsub.s32 %v2086, %v2340
    %v2342 = vrot.slane %v1376, %v2341
    %v2343 = vsel %vm2091, %v2342, %v2338
    %v2344 = vlaneseq
    %v2345 = vshrl.u32 %v2344, 7
    %v2346 = vsub.s32 %v2093, %v2345
    %v2347 = vrot.slane %v1378, %v2346
    %v2348 = vsel %vm2098, %v2347, %v2343
    %v2349 = vlaneseq
    %v2350 = vshrl.u32 %v2349, 7
    %v2351 = vsub.s32 %v2100, %v2350
    %v2352 = vrot.slane %v1380, %v2351
    %v2353 = vsel %vm2105, %v2352, %v2348
    %v2354 = vlaneseq
    %v2355 = vshrl.u32 %v2354, 7
    %v2356 = vsub.s32 %v2107, %v2355
    %v2357 = vrot.slane %v1382, %v2356
    %v2358 = vsel %vm2112, %v2357, %v2353
    %v2359 = vlaneseq
    %v2360 = vshrl.u32 %v2359, 7
    %v2361 = vsub.s32 %v2114, %v2360
    %v2362 = vrot.slane %v1384, %v2361
    %v2363 = vsel %vm2119, %v2362, %v2358
    %v2364 = vlaneseq
    %v2365 = vshrl.u32 %v2364, 7
    %v2366 = vsub.s32 %v2121, %v2365
    %v2367 = vrot.slane %v1386, %v2366
    %v2368 = vsel %vm2126, %v2367, %v2363
    %v2369 = vlaneseq
    %v2370 = vshrl.u32 %v2369, 7
    %v2371 = vsub.s32 %v2128, %v2370
    %v2372 = vrot.slane %v1388, %v2371
    %v2373 = vsel %vm2133, %v2372, %v2368
    %v2374 = vlaneseq
    %v2375 = vshrl.u32 %v2374, 7
    %v2376 = vsub.s32 %v2135, %v2375
    %v2377 = vrot.slane %v1390, %v2376
    %v2378 = vsel %vm2140, %v2377, %v2373
    %v2379 = vlaneseq
    %v2380 = vshrl.u32 %v2379, 7
    %v2381 = vsub.s32 %v2032, %v2380
    %v2382 = vrot.slane %v1392, %v2381
    %v2383 = vlaneseq
    %v2384 = vshrl.u32 %v2383, 7
    %v2385 = vsub.s32 %v2037, %v2384
    %v2386 = vrot.slane %v1394, %v2385
    %v2387 = vsel %vm2042, %v2386, %v2382
    %v2388 = vlaneseq
    %v2389 = vshrl.u32 %v2388, 7
    %v2390 = vsub.s32 %v2044, %v2389
    %v2391 = vrot.slane %v1396, %v2390
    %v2392 = vsel %vm2049, %v2391, %v2387
    %v2393 = vlaneseq
    %v2394 = vshrl.u32 %v2393, 7
    %v2395 = vsub.s32 %v2051, %v2394
    %v2396 = vrot.slane %v1398, %v2395
    %v2397 = vsel %vm2056, %v2396, %v2392
    %v2398 = vlaneseq
    %v2399 = vshrl.u32 %v2398, 7
    %v2400 = vsub.s32 %v2058, %v2399
    %v2401 = vrot.slane %v1400, %v2400
    %v2402 = vsel %vm2063, %v2401, %v2397
    %v2403 = vlaneseq
    %v2404 = vshrl.u32 %v2403, 7
    %v2405 = vsub.s32 %v2065, %v2404
    %v2406 = vrot.slane %v1402, %v2405
    %v2407 = vsel %vm2070, %v2406, %v2402
    %v2408 = vlaneseq
    %v2409 = vshrl.u32 %v2408, 7
    %v2410 = vsub.s32 %v2072, %v2409
    %v2411 = vrot.slane %v1404, %v2410
    %v2412 = vsel %vm2077, %v2411, %v2407
    %v2413 = vlaneseq
    %v2414 = vshrl.u32 %v2413, 7
    %v2415 = vsub.s32 %v2079, %v2414
    %v2416 = vrot.slane %v1406, %v2415
    %v2417 = vsel %vm2084, %v2416, %v2412
    %v2418 = vlaneseq
    %v2419 = vshrl.u32 %v2418, 7
    %v2420 = vsub.s32 %v2086, %v2419
    %v2421 = vrot.slane %v1408, %v2420
    %v2422 = vsel %vm2091, %v2421, %v2417
    %v2423 = vlaneseq
    %v2424 = vshrl.u32 %v2423, 7
    %v2425 = vsub.s32 %v2093, %v2424
    %v2426 = vrot.slane %v1410, %v2425
    %v2427 = vsel %vm2098, %v2426, %v2422
    %v2428 = vlaneseq
    %v2429 = vshrl.u32 %v2428, 7
    %v2430 = vsub.s32 %v2100, %v2429
    %v2431 = vrot.slane %v1412, %v2430
    %v2432 = vsel %vm2105, %v2431, %v2427
    %v2433 = vlaneseq
    %v2434 = vshrl.u32 %v2433, 7
    %v2435 = vsub.s32 %v2107, %v2434
    %v2436 = vrot.slane %v1414, %v2435
    %v2437 = vsel %vm2112, %v2436, %v2432
    %v2438 = vlaneseq
    %v2439 = vshrl.u32 %v2438, 7
    %v2440 = vsub.s32 %v2114, %v2439
    %v2441 = vrot.slane %v1416, %v2440
    %v2442 = vsel %vm2119, %v2441, %v2437
    %v2443 = vlaneseq
    %v2444 = vshrl.u32 %v2443, 7
    %v2445 = vsub.s32 %v2121, %v2444
    %v2446 = vrot.slane %v1418, %v2445
    %v2447 = vsel %vm2126, %v2446, %v2442
    %v2448 = vlaneseq
    %v2449 = vshrl.u32 %v2448, 7
    %v2450 = vsub.s32 %v2128, %v2449
    %v2451 = vrot.slane %v1420, %v2450
    %v2452 = vsel %vm2133, %v2451, %v2447
    %v2453 = vlaneseq
    %v2454 = vshrl.u32 %v2453, 7
    %v2455 = vsub.s32 %v2135, %v2454
    %v2456 = vrot.slane %v1422, %v2455
    %v2457 = vsel %vm2140, %v2456, %v2452
    %v2458 = vlaneseq
    %v2459 = vshrl.u32 %v2458, 7
    %v2460 = vsub.s32 %v2032, %v2459
    %v2461 = vrot.slane %v1424, %v2460
    %v2462 = vlaneseq
    %v2463 = vshrl.u32 %v2462, 7
    %v2464 = vsub.s32 %v2037, %v2463
    %v2465 = vrot.slane %v1426, %v2464
    %v2466 = vsel %vm2042, %v2465, %v2461
    %v2467 = vlaneseq
    %v2468 = vshrl.u32 %v2467, 7
    %v2469 = vsub.s32 %v2044, %v2468
    %v2470 = vrot.slane %v1428, %v2469
    %v2471 = vsel %vm2049, %v2470, %v2466
    %v2472 = vlaneseq
    %v2473 = vshrl.u32 %v2472, 7
    %v2474 = vsub.s32 %v2051, %v2473
    %v2475 = vrot.slane %v1430, %v2474
    %v2476 = vsel %vm2056, %v2475, %v2471
    %v2477 = vlaneseq
    %v2478 = vshrl.u32 %v2477, 7
    %v2479 = vsub.s32 %v2058, %v2478
    %v2480 = vrot.slane %v1432, %v2479
    %v2481 = vsel %vm2063, %v2480, %v2476
    %v2482 = vlaneseq
    %v2483 = vshrl.u32 %v2482, 7
    %v2484 = vsub.s32 %v2065, %v2483
    %v2485 = vrot.slane %v1434, %v2484
    %v2486 = vsel %vm2070, %v2485, %v2481
    %v2487 = vlaneseq
    %v2488 = vshrl.u32 %v2487, 7
    %v2489 = vsub.s32 %v2072, %v2488
    %v2490 = vrot.slane %v1436, %v2489
    %v2491 = vsel %vm2077, %v2490, %v2486
    %v2492 = vlaneseq
    %v2493 = vshrl.u32 %v2492, 7
    %v2494 = vsub.s32 %v2079, %v2493
    %v2495 = vrot.slane %v1438, %v2494
    %v2496 = vsel %vm2084, %v2495, %v2491
    %v2497 = vlaneseq
    %v2498 = vshrl.u32 %v2497, 7
    %v2499 = vsub.s32 %v2086, %v2498
    %v2500 = vrot.slane %v1440, %v2499
    %v2501 = vsel %vm2091, %v2500, %v2496
    %v2502 = vlaneseq
    %v2503 = vshrl.u32 %v2502, 7
    %v2504 = vsub.s32 %v2093, %v2503
    %v2505 = vrot.slane %v1442, %v2504
    %v2506 = vsel %vm2098, %v2505, %v2501
    %v2507 = vlaneseq
    %v2508 = vshrl.u32 %v2507, 7
    %v2509 = vsub.s32 %v2100, %v2508
    %v2510 = vrot.slane %v1444, %v2509
    %v2511 = vsel %vm2105, %v2510, %v2506
    %v2512 = vlaneseq
    %v2513 = vshrl.u32 %v2512, 7
    %v2514 = vsub.s32 %v2107, %v2513
    %v2515 = vrot.slane %v1446, %v2514
    %v2516 = vsel %vm2112, %v2515, %v2511
    %v2517 = vlaneseq
    %v2518 = vshrl.u32 %v2517, 7
    %v2519 = vsub.s32 %v2114, %v2518
    %v2520 = vrot.slane %v1448, %v2519
    %v2521 = vsel %vm2119, %v2520, %v2516
    %v2522 = vlaneseq
    %v2523 = vshrl.u32 %v2522, 7
    %v2524 = vsub.s32 %v2121, %v2523
    %v2525 = vrot.slane %v1450, %v2524
    %v2526 = vsel %vm2126, %v2525, %v2521
    %v2527 = vlaneseq
    %v2528 = vshrl.u32 %v2527, 7
    %v2529 = vsub.s32 %v2128, %v2528
    %v2530 = vrot.slane %v1452, %v2529
    %v2531 = vsel %vm2133, %v2530, %v2526
    %v2532 = vlaneseq
    %v2533 = vshrl.u32 %v2532, 7
    %v2534 = vsub.s32 %v2135, %v2533
    %v2535 = vrot.slane %v1454, %v2534
    %v2536 = vsel %vm2140, %v2535, %v2531
    %v2537 = vlaneseq
    %v2538 = vshrl.u32 %v2537, 7
    %v2539 = vsub.s32 %v2032, %v2538
    %v2540 = vrot.slane %v1456, %v2539
    %v2541 = vlaneseq
    %v2542 = vshrl.u32 %v2541, 7
    %v2543 = vsub.s32 %v2037, %v2542
    %v2544 = vrot.slane %v1458, %v2543
    %v2545 = vsel %vm2042, %v2544, %v2540
    %v2546 = vlaneseq
    %v2547 = vshrl.u32 %v2546, 7
    %v2548 = vsub.s32 %v2044, %v2547
    %v2549 = vrot.slane %v1460, %v2548
    %v2550 = vsel %vm2049, %v2549, %v2545
    %v2551 = vlaneseq
    %v2552 = vshrl.u32 %v2551, 7
    %v2553 = vsub.s32 %v2051, %v2552
    %v2554 = vrot.slane %v1462, %v2553
    %v2555 = vsel %vm2056, %v2554, %v2550
    %v2556 = vlaneseq
    %v2557 = vshrl.u32 %v2556, 7
    %v2558 = vsub.s32 %v2058, %v2557
    %v2559 = vrot.slane %v1464, %v2558
    %v2560 = vsel %vm2063, %v2559, %v2555
    %v2561 = vlaneseq
    %v2562 = vshrl.u32 %v2561, 7
    %v2563 = vsub.s32 %v2065, %v2562
    %v2564 = vrot.slane %v1466, %v2563
    %v2565 = vsel %vm2070, %v2564, %v2560
    %v2566 = vlaneseq
    %v2567 = vshrl.u32 %v2566, 7
    %v2568 = vsub.s32 %v2072, %v2567
    %v2569 = vrot.slane %v1468, %v2568
    %v2570 = vsel %vm2077, %v2569, %v2565
    %v2571 = vlaneseq
    %v2572 = vshrl.u32 %v2571, 7
    %v2573 = vsub.s32 %v2079, %v2572
    %v2574 = vrot.slane %v1470, %v2573
    %v2575 = vsel %vm2084, %v2574, %v2570
    %v2576 = vlaneseq
    %v2577 = vshrl.u32 %v2576, 7
    %v2578 = vsub.s32 %v2086, %v2577
    %v2579 = vrot.slane %v1472, %v2578
    %v2580 = vsel %vm2091, %v2579, %v2575
    %v2581 = vlaneseq
    %v2582 = vshrl.u32 %v2581, 7
    %v2583 = vsub.s32 %v2093, %v2582
    %v2584 = vrot.slane %v1474, %v2583
    %v2585 = vsel %vm2098, %v2584, %v2580
    %v2586 = vlaneseq
    %v2587 = vshrl.u32 %v2586, 7
    %v2588 = vsub.s32 %v2100, %v2587
    %v2589 = vrot.slane %v1476, %v2588
    %v2590 = vsel %vm2105, %v2589, %v2585
    %v2591 = vlaneseq
    %v2592 = vshrl.u32 %v2591, 7
    %v2593 = vsub.s32 %v2107, %v2592
    %v2594 = vrot.slane %v1478, %v2593
    %v2595 = vsel %vm2112, %v2594, %v2590
    %v2596 = vlaneseq
    %v2597 = vshrl.u32 %v2596, 7
    %v2598 = vsub.s32 %v2114, %v2597
    %v2599 = vrot.slane %v1480, %v2598
    %v2600 = vsel %vm2119, %v2599, %v2595
    %v2601 = vlaneseq
    %v2602 = vshrl.u32 %v2601, 7
    %v2603 = vsub.s32 %v2121, %v2602
    %v2604 = vrot.slane %v1482, %v2603
    %v2605 = vsel %vm2126, %v2604, %v2600
    %v2606 = vlaneseq
    %v2607 = vshrl.u32 %v2606, 7
    %v2608 = vsub.s32 %v2128, %v2607
    %v2609 = vrot.slane %v1484, %v2608
    %v2610 = vsel %vm2133, %v2609, %v2605
    %v2611 = vlaneseq
    %v2612 = vshrl.u32 %v2611, 7
    %v2613 = vsub.s32 %v2135, %v2612
    %v2614 = vrot.slane %v1486, %v2613
    %v2615 = vsel %vm2140, %v2614, %v2610
    %v2616 = vlaneseq
    %v2617 = vshrl.u32 %v2616, 7
    %v2618 = vsub.s32 %v2032, %v2617
    %v2619 = vrot.slane %v1488, %v2618
    %v2620 = vlaneseq
    %v2621 = vshrl.u32 %v2620, 7
    %v2622 = vsub.s32 %v2037, %v2621
    %v2623 = vrot.slane %v1490, %v2622
    %v2624 = vsel %vm2042, %v2623, %v2619
    %v2625 = vlaneseq
    %v2626 = vshrl.u32 %v2625, 7
    %v2627 = vsub.s32 %v2044, %v2626
    %v2628 = vrot.slane %v1492, %v2627
    %v2629 = vsel %vm2049, %v2628, %v2624
    %v2630 = vlaneseq
    %v2631 = vshrl.u32 %v2630, 7
    %v2632 = vsub.s32 %v2051, %v2631
    %v2633 = vrot.slane %v1494, %v2632
    %v2634 = vsel %vm2056, %v2633, %v2629
    %v2635 = vlaneseq
    %v2636 = vshrl.u32 %v2635, 7
    %v2637 = vsub.s32 %v2058, %v2636
    %v2638 = vrot.slane %v1496, %v2637
    %v2639 = vsel %vm2063, %v2638, %v2634
    %v2640 = vlaneseq
    %v2641 = vshrl.u32 %v2640, 7
    %v2642 = vsub.s32 %v2065, %v2641
    %v2643 = vrot.slane %v1498, %v2642
    %v2644 = vsel %vm2070, %v2643, %v2639
    %v2645 = vlaneseq
    %v2646 = vshrl.u32 %v2645, 7
    %v2647 = vsub.s32 %v2072, %v2646
    %v2648 = vrot.slane %v1500, %v2647
    %v2649 = vsel %vm2077, %v2648, %v2644
    %v2650 = vlaneseq
    %v2651 = vshrl.u32 %v2650, 7
    %v2652 = vsub.s32 %v2079, %v2651
    %v2653 = vrot.slane %v1502, %v2652
    %v2654 = vsel %vm2084, %v2653, %v2649
    %v2655 = vlaneseq
    %v2656 = vshrl.u32 %v2655, 7
    %v2657 = vsub.s32 %v2086, %v2656
    %v2658 = vrot.slane %v1504, %v2657
    %v2659 = vsel %vm2091, %v2658, %v2654
    %v2660 = vlaneseq
    %v2661 = vshrl.u32 %v2660, 7
    %v2662 = vsub.s32 %v2093, %v2661
    %v2663 = vrot.slane %v1506, %v2662
    %v2664 = vsel %vm2098, %v2663, %v2659
    %v2665 = vlaneseq
    %v2666 = vshrl.u32 %v2665, 7
    %v2667 = vsub.s32 %v2100, %v2666
    %v2668 = vrot.slane %v1508, %v2667
    %v2669 = vsel %vm2105, %v2668, %v2664
    %v2670 = vlaneseq
    %v2671 = vshrl.u32 %v2670, 7
    %v2672 = vsub.s32 %v2107, %v2671
    %v2673 = vrot.slane %v1510, %v2672
    %v2674 = vsel %vm2112, %v2673, %v2669
    %v2675 = vlaneseq
    %v2676 = vshrl.u32 %v2675, 7
    %v2677 = vsub.s32 %v2114, %v2676
    %v2678 = vrot.slane %v1512, %v2677
    %v2679 = vsel %vm2119, %v2678, %v2674
    %v2680 = vlaneseq
    %v2681 = vshrl.u32 %v2680, 7
    %v2682 = vsub.s32 %v2121, %v2681
    %v2683 = vrot.slane %v1514, %v2682
    %v2684 = vsel %vm2126, %v2683, %v2679
    %v2685 = vlaneseq
    %v2686 = vshrl.u32 %v2685, 7
    %v2687 = vsub.s32 %v2128, %v2686
    %v2688 = vrot.slane %v1516, %v2687
    %v2689 = vsel %vm2133, %v2688, %v2684
    %v2690 = vlaneseq
    %v2691 = vshrl.u32 %v2690, 7
    %v2692 = vsub.s32 %v2135, %v2691
    %v2693 = vrot.slane %v1518, %v2692
    %v2694 = vsel %vm2140, %v2693, %v2689
    %v2695 = vlaneseq
    %v2696 = vshrl.u32 %v2695, 7
    %v2697 = vsub.s32 %v2032, %v2696
    %v2698 = vrot.slane %v1520, %v2697
    %v2699 = vlaneseq
    %v2700 = vshrl.u32 %v2699, 7
    %v2701 = vsub.s32 %v2037, %v2700
    %v2702 = vrot.slane %v1522, %v2701
    %v2703 = vsel %vm2042, %v2702, %v2698
    %v2704 = vlaneseq
    %v2705 = vshrl.u32 %v2704, 7
    %v2706 = vsub.s32 %v2044, %v2705
    %v2707 = vrot.slane %v1524, %v2706
    %v2708 = vsel %vm2049, %v2707, %v2703
    %v2709 = vlaneseq
    %v2710 = vshrl.u32 %v2709, 7
    %v2711 = vsub.s32 %v2051, %v2710
    %v2712 = vrot.slane %v1526, %v2711
    %v2713 = vsel %vm2056, %v2712, %v2708
    %v2714 = vlaneseq
    %v2715 = vshrl.u32 %v2714, 7
    %v2716 = vsub.s32 %v2058, %v2715
    %v2717 = vrot.slane %v1528, %v2716
    %v2718 = vsel %vm2063, %v2717, %v2713
    %v2719 = vlaneseq
    %v2720 = vshrl.u32 %v2719, 7
    %v2721 = vsub.s32 %v2065, %v2720
    %v2722 = vrot.slane %v1530, %v2721
    %v2723 = vsel %vm2070, %v2722, %v2718
    %v2724 = vlaneseq
    %v2725 = vshrl.u32 %v2724, 7
    %v2726 = vsub.s32 %v2072, %v2725
    %v2727 = vrot.slane %v1532, %v2726
    %v2728 = vsel %vm2077, %v2727, %v2723
    %v2729 = vlaneseq
    %v2730 = vshrl.u32 %v2729, 7
    %v2731 = vsub.s32 %v2079, %v2730
    %v2732 = vrot.slane %v1534, %v2731
    %v2733 = vsel %vm2084, %v2732, %v2728
    %v2734 = vlaneseq
    %v2735 = vshrl.u32 %v2734, 7
    %v2736 = vsub.s32 %v2086, %v2735
    %v2737 = vrot.slane %v1536, %v2736
    %v2738 = vsel %vm2091, %v2737, %v2733
    %v2739 = vlaneseq
    %v2740 = vshrl.u32 %v2739, 7
    %v2741 = vsub.s32 %v2093, %v2740
    %v2742 = vrot.slane %v1538, %v2741
    %v2743 = vsel %vm2098, %v2742, %v2738
    %v2744 = vlaneseq
    %v2745 = vshrl.u32 %v2744, 7
    %v2746 = vsub.s32 %v2100, %v2745
    %v2747 = vrot.slane %v1540, %v2746
    %v2748 = vsel %vm2105, %v2747, %v2743
    %v2749 = vlaneseq
    %v2750 = vshrl.u32 %v2749, 7
    %v2751 = vsub.s32 %v2107, %v2750
    %v2752 = vrot.slane %v1542, %v2751
    %v2753 = vsel %vm2112, %v2752, %v2748
    %v2754 = vlaneseq
    %v2755 = vshrl.u32 %v2754, 7
    %v2756 = vsub.s32 %v2114, %v2755
    %v2757 = vrot.slane %v1544, %v2756
    %v2758 = vsel %vm2119, %v2757, %v2753
    %v2759 = vlaneseq
    %v2760 = vshrl.u32 %v2759, 7
    %v2761 = vsub.s32 %v2121, %v2760
    %v2762 = vrot.slane %v1546, %v2761
    %v2763 = vsel %vm2126, %v2762, %v2758
    %v2764 = vlaneseq
    %v2765 = vshrl.u32 %v2764, 7
    %v2766 = vsub.s32 %v2128, %v2765
    %v2767 = vrot.slane %v1548, %v2766
    %v2768 = vsel %vm2133, %v2767, %v2763
    %v2769 = vlaneseq
    %v2770 = vshrl.u32 %v2769, 7
    %v2771 = vsub.s32 %v2135, %v2770
    %v2772 = vrot.slane %v1550, %v2771
    %v2773 = vsel %vm2140, %v2772, %v2768
    %v2774 = vlaneseq
    %v2775 = vshrl.u32 %v2774, 7
    %v2776 = vsub.s32 %v2032, %v2775
    %v2777 = vrot.slane %v1552, %v2776
    %v2778 = vlaneseq
    %v2779 = vshrl.u32 %v2778, 7
    %v2780 = vsub.s32 %v2037, %v2779
    %v2781 = vrot.slane %v1554, %v2780
    %v2782 = vsel %vm2042, %v2781, %v2777
    %v2783 = vlaneseq
    %v2784 = vshrl.u32 %v2783, 7
    %v2785 = vsub.s32 %v2044, %v2784
    %v2786 = vrot.slane %v1556, %v2785
    %v2787 = vsel %vm2049, %v2786, %v2782
    %v2788 = vlaneseq
    %v2789 = vshrl.u32 %v2788, 7
    %v2790 = vsub.s32 %v2051, %v2789
    %v2791 = vrot.slane %v1558, %v2790
    %v2792 = vsel %vm2056, %v2791, %v2787
    %v2793 = vlaneseq
    %v2794 = vshrl.u32 %v2793, 7
    %v2795 = vsub.s32 %v2058, %v2794
    %v2796 = vrot.slane %v1560, %v2795
    %v2797 = vsel %vm2063, %v2796, %v2792
    %v2798 = vlaneseq
    %v2799 = vshrl.u32 %v2798, 7
    %v2800 = vsub.s32 %v2065, %v2799
    %v2801 = vrot.slane %v1562, %v2800
    %v2802 = vsel %vm2070, %v2801, %v2797
    %v2803 = vlaneseq
    %v2804 = vshrl.u32 %v2803, 7
    %v2805 = vsub.s32 %v2072, %v2804
    %v2806 = vrot.slane %v1564, %v2805
    %v2807 = vsel %vm2077, %v2806, %v2802
    %v2808 = vlaneseq
    %v2809 = vshrl.u32 %v2808, 7
    %v2810 = vsub.s32 %v2079, %v2809
    %v2811 = vrot.slane %v1566, %v2810
    %v2812 = vsel %vm2084, %v2811, %v2807
    %v2813 = vlaneseq
    %v2814 = vshrl.u32 %v2813, 7
    %v2815 = vsub.s32 %v2086, %v2814
    %v2816 = vrot.slane %v1568, %v2815
    %v2817 = vsel %vm2091, %v2816, %v2812
    %v2818 = vlaneseq
    %v2819 = vshrl.u32 %v2818, 7
    %v2820 = vsub.s32 %v2093, %v2819
    %v2821 = vrot.slane %v1570, %v2820
    %v2822 = vsel %vm2098, %v2821, %v2817
    %v2823 = vlaneseq
    %v2824 = vshrl.u32 %v2823, 7
    %v2825 = vsub.s32 %v2100, %v2824
    %v2826 = vrot.slane %v1572, %v2825
    %v2827 = vsel %vm2105, %v2826, %v2822
    %v2828 = vlaneseq
    %v2829 = vshrl.u32 %v2828, 7
    %v2830 = vsub.s32 %v2107, %v2829
    %v2831 = vrot.slane %v1574, %v2830
    %v2832 = vsel %vm2112, %v2831, %v2827
    %v2833 = vlaneseq
    %v2834 = vshrl.u32 %v2833, 7
    %v2835 = vsub.s32 %v2114, %v2834
    %v2836 = vrot.slane %v1576, %v2835
    %v2837 = vsel %vm2119, %v2836, %v2832
    %v2838 = vlaneseq
    %v2839 = vshrl.u32 %v2838, 7
    %v2840 = vsub.s32 %v2121, %v2839
    %v2841 = vrot.slane %v1578, %v2840
    %v2842 = vsel %vm2126, %v2841, %v2837
    %v2843 = vlaneseq
    %v2844 = vshrl.u32 %v2843, 7
    %v2845 = vsub.s32 %v2128, %v2844
    %v2846 = vrot.slane %v1580, %v2845
    %v2847 = vsel %vm2133, %v2846, %v2842
    %v2848 = vlaneseq
    %v2849 = vshrl.u32 %v2848, 7
    %v2850 = vsub.s32 %v2135, %v2849
    %v2851 = vrot.slane %v1582, %v2850
    %v2852 = vsel %vm2140, %v2851, %v2847
    %v2853 = vlaneseq
    %v2854 = vshrl.u32 %v2853, 7
    %v2855 = vsub.s32 %v2032, %v2854
    %v2856 = vrot.slane %v1584, %v2855
    %v2857 = vlaneseq
    %v2858 = vshrl.u32 %v2857, 7
    %v2859 = vsub.s32 %v2037, %v2858
    %v2860 = vrot.slane %v1586, %v2859
    %v2861 = vsel %vm2042, %v2860, %v2856
    %v2862 = vlaneseq
    %v2863 = vshrl.u32 %v2862, 7
    %v2864 = vsub.s32 %v2044, %v2863
    %v2865 = vrot.slane %v1588, %v2864
    %v2866 = vsel %vm2049, %v2865, %v2861
    %v2867 = vlaneseq
    %v2868 = vshrl.u32 %v2867, 7
    %v2869 = vsub.s32 %v2051, %v2868
    %v2870 = vrot.slane %v1590, %v2869
    %v2871 = vsel %vm2056, %v2870, %v2866
    %v2872 = vlaneseq
    %v2873 = vshrl.u32 %v2872, 7
    %v2874 = vsub.s32 %v2058, %v2873
    %v2875 = vrot.slane %v1592, %v2874
    %v2876 = vsel %vm2063, %v2875, %v2871
    %v2877 = vlaneseq
    %v2878 = vshrl.u32 %v2877, 7
    %v2879 = vsub.s32 %v2065, %v2878
    %v2880 = vrot.slane %v1594, %v2879
    %v2881 = vsel %vm2070, %v2880, %v2876
    %v2882 = vlaneseq
    %v2883 = vshrl.u32 %v2882, 7
    %v2884 = vsub.s32 %v2072, %v2883
    %v2885 = vrot.slane %v1596, %v2884
    %v2886 = vsel %vm2077, %v2885, %v2881
    %v2887 = vlaneseq
    %v2888 = vshrl.u32 %v2887, 7
    %v2889 = vsub.s32 %v2079, %v2888
    %v2890 = vrot.slane %v1598, %v2889
    %v2891 = vsel %vm2084, %v2890, %v2886
    %v2892 = vlaneseq
    %v2893 = vshrl.u32 %v2892, 7
    %v2894 = vsub.s32 %v2086, %v2893
    %v2895 = vrot.slane %v1600, %v2894
    %v2896 = vsel %vm2091, %v2895, %v2891
    %v2897 = vlaneseq
    %v2898 = vshrl.u32 %v2897, 7
    %v2899 = vsub.s32 %v2093, %v2898
    %v2900 = vrot.slane %v1602, %v2899
    %v2901 = vsel %vm2098, %v2900, %v2896
    %v2902 = vlaneseq
    %v2903 = vshrl.u32 %v2902, 7
    %v2904 = vsub.s32 %v2100, %v2903
    %v2905 = vrot.slane %v1604, %v2904
    %v2906 = vsel %vm2105, %v2905, %v2901
    %v2907 = vlaneseq
    %v2908 = vshrl.u32 %v2907, 7
    %v2909 = vsub.s32 %v2107, %v2908
    %v2910 = vrot.slane %v1606, %v2909
    %v2911 = vsel %vm2112, %v2910, %v2906
    %v2912 = vlaneseq
    %v2913 = vshrl.u32 %v2912, 7
    %v2914 = vsub.s32 %v2114, %v2913
    %v2915 = vrot.slane %v1608, %v2914
    %v2916 = vsel %vm2119, %v2915, %v2911
    %v2917 = vlaneseq
    %v2918 = vshrl.u32 %v2917, 7
    %v2919 = vsub.s32 %v2121, %v2918
    %v2920 = vrot.slane %v1610, %v2919
    %v2921 = vsel %vm2126, %v2920, %v2916
    %v2922 = vlaneseq
    %v2923 = vshrl.u32 %v2922, 7
    %v2924 = vsub.s32 %v2128, %v2923
    %v2925 = vrot.slane %v1612, %v2924
    %v2926 = vsel %vm2133, %v2925, %v2921
    %v2927 = vlaneseq
    %v2928 = vshrl.u32 %v2927, 7
    %v2929 = vsub.s32 %v2135, %v2928
    %v2930 = vrot.slane %v1614, %v2929
    %v2931 = vsel %vm2140, %v2930, %v2926
    %v2932 = vlaneseq
    %v2933 = vshrl.u32 %v2932, 7
    %v2934 = vsub.s32 %v2032, %v2933
    %v2935 = vrot.slane %v1616, %v2934
    %v2936 = vlaneseq
    %v2937 = vshrl.u32 %v2936, 7
    %v2938 = vsub.s32 %v2037, %v2937
    %v2939 = vrot.slane %v1618, %v2938
    %v2940 = vsel %vm2042, %v2939, %v2935
    %v2941 = vlaneseq
    %v2942 = vshrl.u32 %v2941, 7
    %v2943 = vsub.s32 %v2044, %v2942
    %v2944 = vrot.slane %v1620, %v2943
    %v2945 = vsel %vm2049, %v2944, %v2940
    %v2946 = vlaneseq
    %v2947 = vshrl.u32 %v2946, 7
    %v2948 = vsub.s32 %v2051, %v2947
    %v2949 = vrot.slane %v1622, %v2948
    %v2950 = vsel %vm2056, %v2949, %v2945
    %v2951 = vlaneseq
    %v2952 = vshrl.u32 %v2951, 7
    %v2953 = vsub.s32 %v2058, %v2952
    %v2954 = vrot.slane %v1624, %v2953
    %v2955 = vsel %vm2063, %v2954, %v2950
    %v2956 = vlaneseq
    %v2957 = vshrl.u32 %v2956, 7
    %v2958 = vsub.s32 %v2065, %v2957
    %v2959 = vrot.slane %v1626, %v2958
    %v2960 = vsel %vm2070, %v2959, %v2955
    %v2961 = vlaneseq
    %v2962 = vshrl.u32 %v2961, 7
    %v2963 = vsub.s32 %v2072, %v2962
    %v2964 = vrot.slane %v1628, %v2963
    %v2965 = vsel %vm2077, %v2964, %v2960
    %v2966 = vlaneseq
    %v2967 = vshrl.u32 %v2966, 7
    %v2968 = vsub.s32 %v2079, %v2967
    %v2969 = vrot.slane %v1630, %v2968
    %v2970 = vsel %vm2084, %v2969, %v2965
    %v2971 = vlaneseq
    %v2972 = vshrl.u32 %v2971, 7
    %v2973 = vsub.s32 %v2086, %v2972
    %v2974 = vrot.slane %v1632, %v2973
    %v2975 = vsel %vm2091, %v2974, %v2970
    %v2976 = vlaneseq
    %v2977 = vshrl.u32 %v2976, 7
    %v2978 = vsub.s32 %v2093, %v2977
    %v2979 = vrot.slane %v1634, %v2978
    %v2980 = vsel %vm2098, %v2979, %v2975
    %v2981 = vlaneseq
    %v2982 = vshrl.u32 %v2981, 7
    %v2983 = vsub.s32 %v2100, %v2982
    %v2984 = vrot.slane %v1636, %v2983
    %v2985 = vsel %vm2105, %v2984, %v2980
    %v2986 = vlaneseq
    %v2987 = vshrl.u32 %v2986, 7
    %v2988 = vsub.s32 %v2107, %v2987
    %v2989 = vrot.slane %v1638, %v2988
    %v2990 = vsel %vm2112, %v2989, %v2985
    %v2991 = vlaneseq
    %v2992 = vshrl.u32 %v2991, 7
    %v2993 = vsub.s32 %v2114, %v2992
    %v2994 = vrot.slane %v1640, %v2993
    %v2995 = vsel %vm2119, %v2994, %v2990
    %v2996 = vlaneseq
    %v2997 = vshrl.u32 %v2996, 7
    %v2998 = vsub.s32 %v2121, %v2997
    %v2999 = vrot.slane %v1642, %v2998
    %v3000 = vsel %vm2126, %v2999, %v2995
    %v3001 = vlaneseq
    %v3002 = vshrl.u32 %v3001, 7
    %v3003 = vsub.s32 %v2128, %v3002
    %v3004 = vrot.slane %v1644, %v3003
    %v3005 = vsel %vm2133, %v3004, %v3000
    %v3006 = vlaneseq
    %v3007 = vshrl.u32 %v3006, 7
    %v3008 = vsub.s32 %v2135, %v3007
    %v3009 = vrot.slane %v1646, %v3008
    %v3010 = vsel %vm2140, %v3009, %v3005
    %v3011 = vlaneseq
    %v3012 = vshrl.u32 %v3011, 7
    %v3013 = vsub.s32 %v2032, %v3012
    %v3014 = vrot.slane %v1648, %v3013
    %v3015 = vlaneseq
    %v3016 = vshrl.u32 %v3015, 7
    %v3017 = vsub.s32 %v2037, %v3016
    %v3018 = vrot.slane %v1650, %v3017
    %v3019 = vsel %vm2042, %v3018, %v3014
    %v3020 = vlaneseq
    %v3021 = vshrl.u32 %v3020, 7
    %v3022 = vsub.s32 %v2044, %v3021
    %v3023 = vrot.slane %v1652, %v3022
    %v3024 = vsel %vm2049, %v3023, %v3019
    %v3025 = vlaneseq
    %v3026 = vshrl.u32 %v3025, 7
    %v3027 = vsub.s32 %v2051, %v3026
    %v3028 = vrot.slane %v1654, %v3027
    %v3029 = vsel %vm2056, %v3028, %v3024
    %v3030 = vlaneseq
    %v3031 = vshrl.u32 %v3030, 7
    %v3032 = vsub.s32 %v2058, %v3031
    %v3033 = vrot.slane %v1656, %v3032
    %v3034 = vsel %vm2063, %v3033, %v3029
    %v3035 = vlaneseq
    %v3036 = vshrl.u32 %v3035, 7
    %v3037 = vsub.s32 %v2065, %v3036
    %v3038 = vrot.slane %v1658, %v3037
    %v3039 = vsel %vm2070, %v3038, %v3034
    %v3040 = vlaneseq
    %v3041 = vshrl.u32 %v3040, 7
    %v3042 = vsub.s32 %v2072, %v3041
    %v3043 = vrot.slane %v1660, %v3042
    %v3044 = vsel %vm2077, %v3043, %v3039
    %v3045 = vlaneseq
    %v3046 = vshrl.u32 %v3045, 7
    %v3047 = vsub.s32 %v2079, %v3046
    %v3048 = vrot.slane %v1662, %v3047
    %v3049 = vsel %vm2084, %v3048, %v3044
    %v3050 = vlaneseq
    %v3051 = vshrl.u32 %v3050, 7
    %v3052 = vsub.s32 %v2086, %v3051
    %v3053 = vrot.slane %v1664, %v3052
    %v3054 = vsel %vm2091, %v3053, %v3049
    %v3055 = vlaneseq
    %v3056 = vshrl.u32 %v3055, 7
    %v3057 = vsub.s32 %v2093, %v3056
    %v3058 = vrot.slane %v1666, %v3057
    %v3059 = vsel %vm2098, %v3058, %v3054
    %v3060 = vlaneseq
    %v3061 = vshrl.u32 %v3060, 7
    %v3062 = vsub.s32 %v2100, %v3061
    %v3063 = vrot.slane %v1668, %v3062
    %v3064 = vsel %vm2105, %v3063, %v3059
    %v3065 = vlaneseq
    %v3066 = vshrl.u32 %v3065, 7
    %v3067 = vsub.s32 %v2107, %v3066
    %v3068 = vrot.slane %v1670, %v3067
    %v3069 = vsel %vm2112, %v3068, %v3064
    %v3070 = vlaneseq
    %v3071 = vshrl.u32 %v3070, 7
    %v3072 = vsub.s32 %v2114, %v3071
    %v3073 = vrot.slane %v1672, %v3072
    %v3074 = vsel %vm2119, %v3073, %v3069
    %v3075 = vlaneseq
    %v3076 = vshrl.u32 %v3075, 7
    %v3077 = vsub.s32 %v2121, %v3076
    %v3078 = vrot.slane %v1674, %v3077
    %v3079 = vsel %vm2126, %v3078, %v3074
    %v3080 = vlaneseq
    %v3081 = vshrl.u32 %v3080, 7
    %v3082 = vsub.s32 %v2128, %v3081
    %v3083 = vrot.slane %v1676, %v3082
    %v3084 = vsel %vm2133, %v3083, %v3079
    %v3085 = vlaneseq
    %v3086 = vshrl.u32 %v3085, 7
    %v3087 = vsub.s32 %v2135, %v3086
    %v3088 = vrot.slane %v1678, %v3087
    %v3089 = vsel %vm2140, %v3088, %v3084
    %v3090 = vlaneseq
    %v3091 = vshrl.u32 %v3090, 7
    %v3092 = vsub.s32 %v2032, %v3091
    %v3093 = vrot.slane %v1680, %v3092
    %v3094 = vlaneseq
    %v3095 = vshrl.u32 %v3094, 7
    %v3096 = vsub.s32 %v2037, %v3095
    %v3097 = vrot.slane %v1682, %v3096
    %v3098 = vsel %vm2042, %v3097, %v3093
    %v3099 = vlaneseq
    %v3100 = vshrl.u32 %v3099, 7
    %v3101 = vsub.s32 %v2044, %v3100
    %v3102 = vrot.slane %v1684, %v3101
    %v3103 = vsel %vm2049, %v3102, %v3098
    %v3104 = vlaneseq
    %v3105 = vshrl.u32 %v3104, 7
    %v3106 = vsub.s32 %v2051, %v3105
    %v3107 = vrot.slane %v1686, %v3106
    %v3108 = vsel %vm2056, %v3107, %v3103
    %v3109 = vlaneseq
    %v3110 = vshrl.u32 %v3109, 7
    %v3111 = vsub.s32 %v2058, %v3110
    %v3112 = vrot.slane %v1688, %v3111
    %v3113 = vsel %vm2063, %v3112, %v3108
    %v3114 = vlaneseq
    %v3115 = vshrl.u32 %v3114, 7
    %v3116 = vsub.s32 %v2065, %v3115
    %v3117 = vrot.slane %v1690, %v3116
    %v3118 = vsel %vm2070, %v3117, %v3113
    %v3119 = vlaneseq
    %v3120 = vshrl.u32 %v3119, 7
    %v3121 = vsub.s32 %v2072, %v3120
    %v3122 = vrot.slane %v1692, %v3121
    %v3123 = vsel %vm2077, %v3122, %v3118
    %v3124 = vlaneseq
    %v3125 = vshrl.u32 %v3124, 7
    %v3126 = vsub.s32 %v2079, %v3125
    %v3127 = vrot.slane %v1694, %v3126
    %v3128 = vsel %vm2084, %v3127, %v3123
    %v3129 = vlaneseq
    %v3130 = vshrl.u32 %v3129, 7
    %v3131 = vsub.s32 %v2086, %v3130
    %v3132 = vrot.slane %v1696, %v3131
    %v3133 = vsel %vm2091, %v3132, %v3128
    %v3134 = vlaneseq
    %v3135 = vshrl.u32 %v3134, 7
    %v3136 = vsub.s32 %v2093, %v3135
    %v3137 = vrot.slane %v1698, %v3136
    %v3138 = vsel %vm2098, %v3137, %v3133
    %v3139 = vlaneseq
    %v3140 = vshrl.u32 %v3139, 7
    %v3141 = vsub.s32 %v2100, %v3140
    %v3142 = vrot.slane %v1700, %v3141
    %v3143 = vsel %vm2105, %v3142, %v3138
    %v3144 = vlaneseq
    %v3145 = vshrl.u32 %v3144, 7
    %v3146 = vsub.s32 %v2107, %v3145
    %v3147 = vrot.slane %v1702, %v3146
    %v3148 = vsel %vm2112, %v3147, %v3143
    %v3149 = vlaneseq
    %v3150 = vshrl.u32 %v3149, 7
    %v3151 = vsub.s32 %v2114, %v3150
    %v3152 = vrot.slane %v1704, %v3151
    %v3153 = vsel %vm2119, %v3152, %v3148
    %v3154 = vlaneseq
    %v3155 = vshrl.u32 %v3154, 7
    %v3156 = vsub.s32 %v2121, %v3155
    %v3157 = vrot.slane %v1706, %v3156
    %v3158 = vsel %vm2126, %v3157, %v3153
    %v3159 = vlaneseq
    %v3160 = vshrl.u32 %v3159, 7
    %v3161 = vsub.s32 %v2128, %v3160
    %v3162 = vrot.slane %v1708, %v3161
    %v3163 = vsel %vm2133, %v3162, %v3158
    %v3164 = vlaneseq
    %v3165 = vshrl.u32 %v3164, 7
    %v3166 = vsub.s32 %v2135, %v3165
    %v3167 = vrot.slane %v1710, %v3166
    %v3168 = vsel %vm2140, %v3167, %v3163
    %v3169 = vlaneseq
    %v3170 = vshrl.u32 %v3169, 7
    %v3171 = vsub.s32 %v2032, %v3170
    %v3172 = vrot.slane %v1712, %v3171
    %v3173 = vlaneseq
    %v3174 = vshrl.u32 %v3173, 7
    %v3175 = vsub.s32 %v2037, %v3174
    %v3176 = vrot.slane %v1714, %v3175
    %v3177 = vsel %vm2042, %v3176, %v3172
    %v3178 = vlaneseq
    %v3179 = vshrl.u32 %v3178, 7
    %v3180 = vsub.s32 %v2044, %v3179
    %v3181 = vrot.slane %v1716, %v3180
    %v3182 = vsel %vm2049, %v3181, %v3177
    %v3183 = vlaneseq
    %v3184 = vshrl.u32 %v3183, 7
    %v3185 = vsub.s32 %v2051, %v3184
    %v3186 = vrot.slane %v1718, %v3185
    %v3187 = vsel %vm2056, %v3186, %v3182
    %v3188 = vlaneseq
    %v3189 = vshrl.u32 %v3188, 7
    %v3190 = vsub.s32 %v2058, %v3189
    %v3191 = vrot.slane %v1720, %v3190
    %v3192 = vsel %vm2063, %v3191, %v3187
    %v3193 = vlaneseq
    %v3194 = vshrl.u32 %v3193, 7
    %v3195 = vsub.s32 %v2065, %v3194
    %v3196 = vrot.slane %v1722, %v3195
    %v3197 = vsel %vm2070, %v3196, %v3192
    %v3198 = vlaneseq
    %v3199 = vshrl.u32 %v3198, 7
    %v3200 = vsub.s32 %v2072, %v3199
    %v3201 = vrot.slane %v1724, %v3200
    %v3202 = vsel %vm2077, %v3201, %v3197
    %v3203 = vlaneseq
    %v3204 = vshrl.u32 %v3203, 7
    %v3205 = vsub.s32 %v2079, %v3204
    %v3206 = vrot.slane %v1726, %v3205
    %v3207 = vsel %vm2084, %v3206, %v3202
    %v3208 = vlaneseq
    %v3209 = vshrl.u32 %v3208, 7
    %v3210 = vsub.s32 %v2086, %v3209
    %v3211 = vrot.slane %v1728, %v3210
    %v3212 = vsel %vm2091, %v3211, %v3207
    %v3213 = vlaneseq
    %v3214 = vshrl.u32 %v3213, 7
    %v3215 = vsub.s32 %v2093, %v3214
    %v3216 = vrot.slane %v1730, %v3215
    %v3217 = vsel %vm2098, %v3216, %v3212
    %v3218 = vlaneseq
    %v3219 = vshrl.u32 %v3218, 7
    %v3220 = vsub.s32 %v2100, %v3219
    %v3221 = vrot.slane %v1732, %v3220
    %v3222 = vsel %vm2105, %v3221, %v3217
    %v3223 = vlaneseq
    %v3224 = vshrl.u32 %v3223, 7
    %v3225 = vsub.s32 %v2107, %v3224
    %v3226 = vrot.slane %v1734, %v3225
    %v3227 = vsel %vm2112, %v3226, %v3222
    %v3228 = vlaneseq
    %v3229 = vshrl.u32 %v3228, 7
    %v3230 = vsub.s32 %v2114, %v3229
    %v3231 = vrot.slane %v1736, %v3230
    %v3232 = vsel %vm2119, %v3231, %v3227
    %v3233 = vlaneseq
    %v3234 = vshrl.u32 %v3233, 7
    %v3235 = vsub.s32 %v2121, %v3234
    %v3236 = vrot.slane %v1738, %v3235
    %v3237 = vsel %vm2126, %v3236, %v3232
    %v3238 = vlaneseq
    %v3239 = vshrl.u32 %v3238, 7
    %v3240 = vsub.s32 %v2128, %v3239
    %v3241 = vrot.slane %v1740, %v3240
    %v3242 = vsel %vm2133, %v3241, %v3237
    %v3243 = vlaneseq
    %v3244 = vshrl.u32 %v3243, 7
    %v3245 = vsub.s32 %v2135, %v3244
    %v3246 = vrot.slane %v1742, %v3245
    %v3247 = vsel %vm2140, %v3246, %v3242
    %v3248 = vlaneseq
    %v3249 = vshrl.u32 %v3248, 7
    %v3250 = vsub.s32 %v2032, %v3249
    %v3251 = vrot.slane %v1744, %v3250
    %v3252 = vlaneseq
    %v3253 = vshrl.u32 %v3252, 7
    %v3254 = vsub.s32 %v2037, %v3253
    %v3255 = vrot.slane %v1746, %v3254
    %v3256 = vsel %vm2042, %v3255, %v3251
    %v3257 = vlaneseq
    %v3258 = vshrl.u32 %v3257, 7
    %v3259 = vsub.s32 %v2044, %v3258
    %v3260 = vrot.slane %v1748, %v3259
    %v3261 = vsel %vm2049, %v3260, %v3256
    %v3262 = vlaneseq
    %v3263 = vshrl.u32 %v3262, 7
    %v3264 = vsub.s32 %v2051, %v3263
    %v3265 = vrot.slane %v1750, %v3264
    %v3266 = vsel %vm2056, %v3265, %v3261
    %v3267 = vlaneseq
    %v3268 = vshrl.u32 %v3267, 7
    %v3269 = vsub.s32 %v2058, %v3268
    %v3270 = vrot.slane %v1752, %v3269
    %v3271 = vsel %vm2063, %v3270, %v3266
    %v3272 = vlaneseq
    %v3273 = vshrl.u32 %v3272, 7
    %v3274 = vsub.s32 %v2065, %v3273
    %v3275 = vrot.slane %v1754, %v3274
    %v3276 = vsel %vm2070, %v3275, %v3271
    %v3277 = vlaneseq
    %v3278 = vshrl.u32 %v3277, 7
    %v3279 = vsub.s32 %v2072, %v3278
    %v3280 = vrot.slane %v1756, %v3279
    %v3281 = vsel %vm2077, %v3280, %v3276
    %v3282 = vlaneseq
    %v3283 = vshrl.u32 %v3282, 7
    %v3284 = vsub.s32 %v2079, %v3283
    %v3285 = vrot.slane %v1758, %v3284
    %v3286 = vsel %vm2084, %v3285, %v3281
    %v3287 = vlaneseq
    %v3288 = vshrl.u32 %v3287, 7
    %v3289 = vsub.s32 %v2086, %v3288
    %v3290 = vrot.slane %v1760, %v3289
    %v3291 = vsel %vm2091, %v3290, %v3286
    %v3292 = vlaneseq
    %v3293 = vshrl.u32 %v3292, 7
    %v3294 = vsub.s32 %v2093, %v3293
    %v3295 = vrot.slane %v1762, %v3294
    %v3296 = vsel %vm2098, %v3295, %v3291
    %v3297 = vlaneseq
    %v3298 = vshrl.u32 %v3297, 7
    %v3299 = vsub.s32 %v2100, %v3298
    %v3300 = vrot.slane %v1764, %v3299
    %v3301 = vsel %vm2105, %v3300, %v3296
    %v3302 = vlaneseq
    %v3303 = vshrl.u32 %v3302, 7
    %v3304 = vsub.s32 %v2107, %v3303
    %v3305 = vrot.slane %v1766, %v3304
    %v3306 = vsel %vm2112, %v3305, %v3301
    %v3307 = vlaneseq
    %v3308 = vshrl.u32 %v3307, 7
    %v3309 = vsub.s32 %v2114, %v3308
    %v3310 = vrot.slane %v1768, %v3309
    %v3311 = vsel %vm2119, %v3310, %v3306
    %v3312 = vlaneseq
    %v3313 = vshrl.u32 %v3312, 7
    %v3314 = vsub.s32 %v2121, %v3313
    %v3315 = vrot.slane %v1770, %v3314
    %v3316 = vsel %vm2126, %v3315, %v3311
    %v3317 = vlaneseq
    %v3318 = vshrl.u32 %v3317, 7
    %v3319 = vsub.s32 %v2128, %v3318
    %v3320 = vrot.slane %v1772, %v3319
    %v3321 = vsel %vm2133, %v3320, %v3316
    %v3322 = vlaneseq
    %v3323 = vshrl.u32 %v3322, 7
    %v3324 = vsub.s32 %v2135, %v3323
    %v3325 = vrot.slane %v1774, %v3324
    %v3326 = vsel %vm2140, %v3325, %v3321
    %vm3327 = vcmask 1041409
    %v3328 = vsel %vm3327, %v2220, %v2141
    %vm3329 = vcmask 1042434
    %v3330 = vsel %vm3329, %v2299, %v3328
    %vm3331 = vcmask 1043459
    %v3332 = vsel %vm3331, %v2378, %v3330
    %vm3333 = vcmask 1044484
    %v3334 = vsel %vm3333, %v2457, %v3332
    %vm3335 = vcmask 1045509
    %v3336 = vsel %vm3335, %v2536, %v3334
    %vm3337 = vcmask 1046534
    %v3338 = vsel %vm3337, %v2615, %v3336
    %vm3339 = vcmask 1047559
    %v3340 = vsel %vm3339, %v2694, %v3338
    %v3341 = vsel %vm3327, %v2852, %v2773
    %v3342 = vsel %vm3329, %v2931, %v3341
    %v3343 = vsel %vm3331, %v3010, %v3342
    %v3344 = vsel %vm3333, %v3089, %v3343
    %v3345 = vsel %vm3335, %v3168, %v3344
    %v3346 = vsel %vm3337, %v3247, %v3345
    %v3347 = vsel %vm3339, %v3326, %v3346
    %3350 = vst [vmem:[#allocation5] sm:$0xff] %v3340
    %3351 = vst [vmem:[#allocation5 + $0x8] sm:$0xff] %v3347
    // Predicated region
    $region104: #{tpu_custom_call.1} parent=1 // pred_check
      _
    $region105: #{tpu_custom_call.1} parent=1 // pred_check_branch
      %3353 = sbr.rel (0) target = $region107
    $region106: #{tpu_custom_call.1} parent=1 // pred_region
      %s3355 = ssub.s32 256, 64
      %3356 = vsyncadd [#allocation6], %s3355
      %s3357 = sshll.u32 [#allocation5], 4
      %s3358 = int_to_ptr.vmem [resolvable:$true] %s3357
      %3363 = dma.vmem_to_hbm [thread:$0]  %s3358, 64, %s4, [#allocation6], 64, 64, 4
    $region107: #{tpu_custom_call.1} parent=1 // pred_fallthru
      _
    // Predicated region
    $region108: #{tpu_custom_call.1} parent=1 // pred_check
      _
    $region109: #{tpu_custom_call.1} parent=1 // pred_check_branch
      %3365 = sbr.rel (0) target = $region111
    $region110: #{tpu_custom_call.1} parent=1 // pred_region
      %3366 = dma.done [#allocation6], 256
    $region111: #{tpu_custom_call.1} parent=1 // pred_fallthru
      _
    %3367 = vsyncpa [#allocation6], 1

</llo_original>
